<compile_context>
chip_gen: v7x
topology: tpu7x:2x2x1
jax: 0.10.0
libtpu: 0.0.40
codegen_flags: <defaults>
</compile_context>

<pallas_src>
import functools

import jax
import jax.numpy as jnp
from jax.experimental import pallas as pl
from jax.experimental.pallas import tpu as pltpu


def gating_kernel(x_ref, w12_ref, b12_ref, w3_ref, g_ref, out_ref, *, num_expert):
    """One grid step: `tr` packed rows (pack samples each) -> probabilities.

    x_ref   : (tr, pack*F)        packed activations (pack samples per row)
    w12_ref : (2, pack*F, pack*F) block-diagonal fc1 / fc2 weights
    b12_ref : (2, 1, pack*F)      tiled fc1 / fc2 biases
    w3_ref  : (pack*F, pack*E)    block-diagonal fc3 weight (no bias)
    g_ref   : (2, pack*E, pack*E) [within-group rotate-by-1, within-group ones]
    out_ref : (tr, pack*E)        per-sample softmax, groups of E lanes
    """
    hp = jax.lax.Precision.HIGHEST

    # Hoist the tiny, VMEM-resident parameter loads once per grid step.
    w1 = w12_ref[0]
    w2 = w12_ref[1]
    b1 = b12_ref[0]
    b2 = b12_ref[1]
    rot = g_ref[0]
    gsum = g_ref[1]

    x = x_ref[...]
    h1 = jnp.maximum(
        jnp.dot(x, w1, precision=hp, preferred_element_type=jnp.float32) + b1, 0.0)
    h2 = jnp.maximum(
        jnp.dot(h1, w2, precision=hp, preferred_element_type=jnp.float32) + b2, 0.0)
    z = jnp.dot(h2, w3_ref[...], precision=hp,
                preferred_element_type=jnp.float32)            # (tr, pack*E)

    # Numerically-stable softmax over each group of E lanes.  The group max is
    # built from E-1 within-group cyclic rotations (exact permutation matmuls),
    # the group sum from one block-ones matmul; both broadcast the reduction
    # back to every lane of its group without any lane-crossing reshape.
    m = z
    t = z
    for _ in range(num_expert - 1):
        t = jnp.dot(t, rot, precision=hp, preferred_element_type=jnp.float32)
        m = jnp.maximum(m, t)
    e = jnp.exp(z - m)
    s = jnp.dot(e, gsum, precision=hp, preferred_element_type=jnp.float32)
    out_ref[...] = e / s


def prepare_params(w1, b1, w2, b2, w3):
    """Pack the per-layer parameters once (call outside the jitted forward).

    `pack` samples are laid out per 128-lane row; every weight becomes the
    block-diagonal kron(I_pack, W) so the packed layout is preserved layer to
    layer.  Also builds the two tiny softmax helper matrices.
    """
    F = w1.shape[0]
    E = w3.shape[1]
    pack = 128 // F if (128 % F == 0) else 1            # samples per vreg row
    eye = jnp.eye(pack, dtype=jnp.float32)

    w12 = jnp.stack([jnp.kron(eye, w1.astype(jnp.float32)),
                     jnp.kron(eye, w2.astype(jnp.float32))])          # (2,pF,pF)
    b12 = jnp.stack([jnp.tile(b1.astype(jnp.float32), (1, pack)),
                     jnp.tile(b2.astype(jnp.float32), (1, pack))])    # (2,1,pF)
    w3p = jnp.kron(eye, w3.astype(jnp.float32))                       # (pF,pE)

    rot = jnp.kron(eye, jnp.roll(jnp.eye(E, dtype=jnp.float32), 1, axis=1))
    ones_g = jnp.kron(eye, jnp.ones((E, E), dtype=jnp.float32))
    gmat = jnp.stack([rot, ones_g])                                   # (2,pE,pE)
    return w12, b12, w3p, gmat


def _rows_per_step(num_rows):
    # Aim for >=4 grid steps (keeps both v7x TensorCores fed and lets the
    # input/output DMAs double-buffer) while amortizing the ~0.35us per-step
    # overhead with the largest tile that stays well inside every generation's
    # VMEM: 8192 packed f32 rows -> ~16 MiB of double-buffered x/out tiles.
    cap = 8192
    if num_rows <= 32:
        return num_rows                      # tiny problem: one full block
    tgt = -(-num_rows // 4)                  # cdiv(num_rows, 4)
    tgt = -(-tgt // 8) * 8                   # round up to a sublane multiple
    return min(cap, tgt)


@functools.partial(jax.jit, static_argnames=("rows_per_step",))
def gating_forward(encoding, params, *, rows_per_step=None):
    """encoding: (B, F) float32.  Returns softmax gating probs, (B, E) f32."""
    w12, b12, w3p, gmat = params
    B, F = encoding.shape
    PF = w12.shape[-1]
    pack = PF // F
    PE = w3p.shape[-1]
    E = PE // pack

    # Pack `pack` consecutive samples per 128-lane row (free: row-major
    # contiguous).  Pad the batch with zero rows if it is ragged.
    Bp = -(-B // pack) * pack
    x = encoding.astype(jnp.float32)
    if Bp != B:
        x = jnp.pad(x, ((0, Bp - B), (0, 0)))
    xp = x.reshape(Bp // pack, PF)
    R = Bp // pack

    tr = int(rows_per_step) if rows_per_step is not None else _rows_per_step(R)
    grid = (pl.cdiv(R, tr),)

    out = pl.pallas_call(
        functools.partial(gating_kernel, num_expert=E),
        out_shape=jax.ShapeDtypeStruct((R, PE), jnp.float32),
        grid=grid,
        in_specs=[
            pl.BlockSpec((tr, PF), lambda i: (i, 0)),        # packed activations
            pl.BlockSpec((2, PF, PF), lambda i: (0, 0, 0)),  # fc1/fc2 (resident)
            pl.BlockSpec((2, 1, PF), lambda i: (0, 0, 0)),   # biases  (resident)
            pl.BlockSpec((PF, PE), lambda i: (0, 0)),        # fc3     (resident)
            pl.BlockSpec((2, PE, PE), lambda i: (0, 0, 0)),  # softmax helpers
        ],
        out_specs=pl.BlockSpec((tr, PE), lambda i: (i, 0)),
        compiler_params=pltpu.CompilerParams(
            dimension_semantics=("parallel",),       # megacore sharding on v7x
            vmem_limit_bytes=32 * 1024 * 1024,       # headroom for 8192-row tiles
        ),
    )(xp, w12, b12, w3p, gmat)

    # (R, pack*E) row-major is exactly (Bp, E) row-major -> free reshape+slice.
    return out.reshape(Bp, E)[:B]


def init_params(key, num_filter, num_expert):
    """Deterministic PyTorch-Linear-style init (uniform +-1/sqrt(fan_in))."""
    ks = jax.random.split(key, 5)
    bound = 1.0 / (num_filter ** 0.5)
    # PyTorch stores Linear weight as (out, in); transpose to (in, out).
    w1 = jax.random.uniform(ks[0], (num_filter, num_filter), jnp.float32, -bound, bound).T
    b1 = jax.random.uniform(ks[1], (1, num_filter), jnp.float32, -bound, bound)
    w2 = jax.random.uniform(ks[2], (num_filter, num_filter), jnp.float32, -bound, bound).T
    b2 = jax.random.uniform(ks[3], (1, num_filter), jnp.float32, -bound, bound)
    w3 = jax.random.uniform(ks[4], (num_expert, num_filter), jnp.float32, -bound, bound).T
    return w1, b1, w2, b2, w3


def reference(encoding, w1, b1, w2, b2, w3):
    hp = jax.lax.Precision.HIGHEST
    h1 = jnp.maximum(jnp.dot(encoding, w1, precision=hp) + b1, 0.0)
    h2 = jnp.maximum(jnp.dot(h1, w2, precision=hp) + b2, 0.0)
    z = jnp.dot(h2, w3, precision=hp)
    return jax.nn.softmax(z, axis=-1).astype(jnp.float32)


if __name__ == "__main__":
    num_filter = 32
    num_expert = 4

    key = jax.random.PRNGKey(0)
    k_x1, k_x2, k_p = jax.random.split(key, 3)
    w1, b1, w2, b2, w3 = init_params(k_p, num_filter, num_expert)
    params = prepare_params(w1, b1, w2, b2, w3)   # packed once, outside the jit

    # Case 1: batch divisible by the packing factor -> 4-step pipelined grid.
    batch = 256
    enc = jax.random.normal(k_x1, (batch, num_filter), dtype=jnp.float32)
    prob = jax.block_until_ready(gating_forward(enc, params))
    ref = reference(enc, w1, b1, w2, b2, w3)
    assert prob.shape == (batch, num_expert)
    assert prob.dtype == jnp.float32
    assert jnp.allclose(jnp.sum(prob, axis=-1), 1.0, atol=1e-3)
    assert jnp.allclose(prob, ref, atol=2e-3, rtol=2e-3)

    # Case 2: ragged batch (pack-padding in the wrapper + masked last grid block).
    batch2 = 101
    enc2 = jax.random.normal(k_x2, (batch2, num_filter), dtype=jnp.float32)
    prob2 = jax.block_until_ready(gating_forward(enc2, params, rows_per_step=8))
    ref2 = reference(enc2, w1, b1, w2, b2, w3)
    assert prob2.shape == (batch2, num_expert)
    assert jnp.allclose(jnp.sum(prob2, axis=-1), 1.0, atol=1e-3)
    assert jnp.allclose(prob2, ref2, atol=2e-3, rtol=2e-3)

    print("KERNEL_OK")
</pallas_src>

<mosaic_0001>
module attributes {stable_mosaic.version = 11 : i64} {
  func.func @gating_kernel(%arg0: i32, %arg1: memref<16x128xf32, #tpu.memory_space<vmem>>, %arg2: memref<2x128x128xf32, #tpu.memory_space<vmem>>, %arg3: memref<2x1x128xf32, #tpu.memory_space<vmem>>, %arg4: memref<128x16xf32, #tpu.memory_space<vmem>>, %arg5: memref<2x16x16xf32, #tpu.memory_space<vmem>>, %arg6: memref<16x16xf32, #tpu.memory_space<vmem>>) attributes {dimension_semantics = [#tpu.dimension_semantics<parallel>], iteration_bounds = array<i64: 4>, scalar_prefetch = 0 : i64, scratch_operands = 0 : i64, tpu.core_type = #tpu.core_type<tc>, window_params = [{transform_indices = @transform_0, window_bounds = array<i64: 16, 128>}, {pipeline_mode = #tpu.pipeline_mode<synchronous>, transform_indices = @transform_1, window_bounds = array<i64: 2, 128, 128>}, {pipeline_mode = #tpu.pipeline_mode<synchronous>, transform_indices = @transform_2, window_bounds = array<i64: 2, 1, 128>}, {pipeline_mode = #tpu.pipeline_mode<synchronous>, transform_indices = @transform_3, window_bounds = array<i64: 128, 16>}, {pipeline_mode = #tpu.pipeline_mode<synchronous>, transform_indices = @transform_4, window_bounds = array<i64: 2, 16, 16>}, {transform_indices = @transform_5, window_bounds = array<i64: 16, 16>}]} {
    %c0 = arith.constant 0 : index
    %c0_0 = arith.constant 0 : index
    %c0_1 = arith.constant 0 : index
    %0 = vector.load %arg2[%c0, %c0_0, %c0_1] : memref<2x128x128xf32, #tpu.memory_space<vmem>>, vector<1x128x128xf32>
    %1 = vector.shape_cast %0 : vector<1x128x128xf32> to vector<128x128xf32>
    %c1 = arith.constant 1 : index
    %c0_2 = arith.constant 0 : index
    %c0_3 = arith.constant 0 : index
    %2 = vector.load %arg2[%c1, %c0_2, %c0_3] : memref<2x128x128xf32, #tpu.memory_space<vmem>>, vector<1x128x128xf32>
    %3 = vector.shape_cast %2 : vector<1x128x128xf32> to vector<128x128xf32>
    %c0_4 = arith.constant 0 : index
    %c0_5 = arith.constant 0 : index
    %c0_6 = arith.constant 0 : index
    %4 = vector.load %arg3[%c0_4, %c0_5, %c0_6] : memref<2x1x128xf32, #tpu.memory_space<vmem>>, vector<1x1x128xf32>
    %5 = vector.shape_cast %4 : vector<1x1x128xf32> to vector<1x128xf32>
    %c1_7 = arith.constant 1 : index
    %c0_8 = arith.constant 0 : index
    %c0_9 = arith.constant 0 : index
    %6 = vector.load %arg3[%c1_7, %c0_8, %c0_9] : memref<2x1x128xf32, #tpu.memory_space<vmem>>, vector<1x1x128xf32>
    %7 = vector.shape_cast %6 : vector<1x1x128xf32> to vector<1x128xf32>
    %c0_10 = arith.constant 0 : index
    %c0_11 = arith.constant 0 : index
    %c0_12 = arith.constant 0 : index
    %8 = vector.load %arg5[%c0_10, %c0_11, %c0_12] : memref<2x16x16xf32, #tpu.memory_space<vmem>>, vector<1x16x16xf32>
    %9 = vector.shape_cast %8 : vector<1x16x16xf32> to vector<16x16xf32>
    %c1_13 = arith.constant 1 : index
    %c0_14 = arith.constant 0 : index
    %c0_15 = arith.constant 0 : index
    %10 = vector.load %arg5[%c1_13, %c0_14, %c0_15] : memref<2x16x16xf32, #tpu.memory_space<vmem>>, vector<1x16x16xf32>
    %11 = vector.shape_cast %10 : vector<1x16x16xf32> to vector<16x16xf32>
    %c0_16 = arith.constant 0 : index
    %c0_17 = arith.constant 0 : index
    %12 = vector.load %arg1[%c0_16, %c0_17] : memref<16x128xf32, #tpu.memory_space<vmem>>, vector<16x128xf32>
    %cst = arith.constant dense<0.000000e+00> : vector<16x128xf32>
    %13 = tpu.matmul %12, %1, %cst {dimension_numbers = #tpu.dot_dimension_numbers<[1], [0], [0], [1], [0, 0, 1, 1], [], []>, precision = #tpu.contract_precision<fp32>} : vector<16x128xf32>, vector<128x128xf32>, vector<16x128xf32> -> vector<16x128xf32>
    %14 = vector.broadcast %5 : vector<1x128xf32> to vector<16x128xf32>
    %15 = arith.addf %13, %14 : vector<16x128xf32>
    %cst_18 = arith.constant 0.000000e+00 : f32
    %16 = vector.broadcast %cst_18 : f32 to vector<16x128xf32>
    %17 = arith.maximumf %15, %16 : vector<16x128xf32>
    %cst_19 = arith.constant dense<0.000000e+00> : vector<16x128xf32>
    %18 = tpu.matmul %17, %3, %cst_19 {dimension_numbers = #tpu.dot_dimension_numbers<[1], [0], [0], [1], [0, 0, 1, 1], [], []>, precision = #tpu.contract_precision<fp32>} : vector<16x128xf32>, vector<128x128xf32>, vector<16x128xf32> -> vector<16x128xf32>
    %19 = vector.broadcast %7 : vector<1x128xf32> to vector<16x128xf32>
    %20 = arith.addf %18, %19 : vector<16x128xf32>
    %cst_20 = arith.constant 0.000000e+00 : f32
    %21 = vector.broadcast %cst_20 : f32 to vector<16x128xf32>
    %22 = arith.maximumf %20, %21 : vector<16x128xf32>
    %c0_21 = arith.constant 0 : index
    %c0_22 = arith.constant 0 : index
    %23 = vector.load %arg4[%c0_21, %c0_22] : memref<128x16xf32, #tpu.memory_space<vmem>>, vector<128x16xf32>
    %cst_23 = arith.constant dense<0.000000e+00> : vector<16x16xf32>
    %24 = tpu.matmul %22, %23, %cst_23 {dimension_numbers = #tpu.dot_dimension_numbers<[1], [0], [0], [1], [0, 0, 1, 1], [], []>, precision = #tpu.contract_precision<fp32>} : vector<16x128xf32>, vector<128x16xf32>, vector<16x16xf32> -> vector<16x16xf32>
    %cst_24 = arith.constant dense<0.000000e+00> : vector<16x16xf32>
    %25 = tpu.matmul %24, %9, %cst_24 {dimension_numbers = #tpu.dot_dimension_numbers<[1], [0], [0], [1], [0, 0, 1, 1], [], []>, precision = #tpu.contract_precision<fp32>} : vector<16x16xf32>, vector<16x16xf32>, vector<16x16xf32> -> vector<16x16xf32>
    %26 = arith.maximumf %24, %25 : vector<16x16xf32>
    %cst_25 = arith.constant dense<0.000000e+00> : vector<16x16xf32>
    %27 = tpu.matmul %25, %9, %cst_25 {dimension_numbers = #tpu.dot_dimension_numbers<[1], [0], [0], [1], [0, 0, 1, 1], [], []>, precision = #tpu.contract_precision<fp32>} : vector<16x16xf32>, vector<16x16xf32>, vector<16x16xf32> -> vector<16x16xf32>
    %28 = arith.maximumf %26, %27 : vector<16x16xf32>
    %cst_26 = arith.constant dense<0.000000e+00> : vector<16x16xf32>
    %29 = tpu.matmul %27, %9, %cst_26 {dimension_numbers = #tpu.dot_dimension_numbers<[1], [0], [0], [1], [0, 0, 1, 1], [], []>, precision = #tpu.contract_precision<fp32>} : vector<16x16xf32>, vector<16x16xf32>, vector<16x16xf32> -> vector<16x16xf32>
    %30 = arith.maximumf %28, %29 : vector<16x16xf32>
    %31 = arith.subf %24, %30 : vector<16x16xf32>
    %32 = math.exp %31 : vector<16x16xf32>
    %cst_27 = arith.constant dense<0.000000e+00> : vector<16x16xf32>
    %33 = tpu.matmul %32, %11, %cst_27 {dimension_numbers = #tpu.dot_dimension_numbers<[1], [0], [0], [1], [0, 0, 1, 1], [], []>, precision = #tpu.contract_precision<fp32>} : vector<16x16xf32>, vector<16x16xf32>, vector<16x16xf32> -> vector<16x16xf32>
    %34 = arith.divf %32, %33 : vector<16x16xf32>
    %c0_28 = arith.constant 0 : index
    %c0_29 = arith.constant 0 : index
    %35 = vector.load %arg6[%c0_28, %c0_29] : memref<16x16xf32, #tpu.memory_space<vmem>>, vector<16x16xf32>
    tpu.vector_store %arg6[%c0_28, %c0_29], %34 {strides = array<i32>} : memref<16x16xf32, #tpu.memory_space<vmem>>, vector<16x16xf32>,
    return
  }
  func.func @transform_0(%arg0: i32) -> (i32, i32) {
    %c0_i32 = arith.constant 0 : i32
    %c0_i32_0 = arith.constant 0 : i32
    return %arg0, %c0_i32 : i32, i32
  }
  func.func @transform_1(%arg0: i32) -> (i32, i32, i32) {
    %c0_i32 = arith.constant 0 : i32
    %c0_i32_0 = arith.constant 0 : i32
    %c0_i32_1 = arith.constant 0 : i32
    %c0_i32_2 = arith.constant 0 : i32
    return %c0_i32, %c0_i32_0, %c0_i32_1 : i32, i32, i32
  }
  func.func @transform_2(%arg0: i32) -> (i32, i32, i32) {
    %c0_i32 = arith.constant 0 : i32
    %c0_i32_0 = arith.constant 0 : i32
    %c0_i32_1 = arith.constant 0 : i32
    %c0_i32_2 = arith.constant 0 : i32
    return %c0_i32, %c0_i32_0, %c0_i32_1 : i32, i32, i32
  }
  func.func @transform_3(%arg0: i32) -> (i32, i32) {
    %c0_i32 = arith.constant 0 : i32
    %c0_i32_0 = arith.constant 0 : i32
    %c0_i32_1 = arith.constant 0 : i32
    return %c0_i32, %c0_i32_0 : i32, i32
  }
  func.func @transform_4(%arg0: i32) -> (i32, i32, i32) {
    %c0_i32 = arith.constant 0 : i32
    %c0_i32_0 = arith.constant 0 : i32
    %c0_i32_1 = arith.constant 0 : i32
    %c0_i32_2 = arith.constant 0 : i32
    return %c0_i32, %c0_i32_0, %c0_i32_1 : i32, i32, i32
  }
  func.func @transform_5(%arg0: i32) -> (i32, i32) {
    %c0_i32 = arith.constant 0 : i32
    %c0_i32_0 = arith.constant 0 : i32
    return %arg0, %c0_i32 : i32, i32
  }
}

</mosaic_0001>

<llo_original>
// kernel: gating_forward.1
$region0: #{gating_forward.1}
  #allocation0 [shape = 'u32[]', space=smem, size = 0x4, offset = 0x4, fixed_abs, tag = 'smem constant byte address 0x4 - core index']
  #allocation1 [shape = 'u32[144,128]{1,0:T(1,128)}', space=vmem, size = 0x12000, scoped, tag = 'internal scratch']
  %s0 = inlined_call_operand.vmem [shape: f32[64,128], index: 0, kind: input, shape index: {}]
  %s1 = inlined_call_operand.vmem [shape: f32[2,128,128], index: 1, kind: input, shape index: {}]
  %s2 = inlined_call_operand.vmem [shape: f32[2,1,128], index: 2, kind: input, shape index: {}]
  %s3 = inlined_call_operand.vmem [shape: f32[128,16], index: 3, kind: input, shape index: {}]
  %s4 = inlined_call_operand.vmem [shape: f32[2,16,16], index: 4, kind: input, shape index: {}]
  %s5 = inlined_call_operand.vmem [shape: f32[64,16], index: 5, kind: output, shape index: {}]
  %s6 = sld [smem:[#allocation0]]
  $region53: #{gating_forward.1} parent=0
    _
  %s8 = ssub.s32 1, %s6
  %s9 = scalar_select 0, %s8, %s6
  loop: start=0, step=1, limit=6
  $region2: #{gating_forward.1} parent=0 // loop_pre_header
    _
  $region3: #{gating_forward.1} parent=0 // loop_header
    %s11 = sphi 0, %s15
    %p12 = scmp.ge.s32.totalorder %s11, 6
    %s21 = sphi 0, %s23
    %s24 = sphi 0, %s21
    %s25 = sphi 0, %s24
    %s41 = sphi 0, %s25
    %s45 = sphi 0, %s45
    %s47 = sphi 0, %s45
    %s48 = sphi 0, %s47
    %s62 = sphi 0, %s48
    %s66 = sphi 0, %s66
    %s68 = sphi 0, %s66
    %s69 = sphi 0, %s68
    %s83 = sphi 0, %s69
    %s87 = sphi 0, %s87
    %s89 = sphi 0, %s87
    %s90 = sphi 0, %s89
    %s104 = sphi 0, %s90
    %s108 = sphi 0, %s108
    %s110 = sphi 0, %s108
    %s111 = sphi 0, %s110
    %s125 = sphi 0, %s111
    %s131 = sphi 0, %s133
    %s134 = sphi 0, %s131
    %s135 = sphi 0, %s134
    %s151 = sphi 0, %s135
  $region4: #{gating_forward.1} parent=0 // loop_header_branch
    %14 = sbr.rel (%p12) target = $region8
  $region5: #{gating_forward.1} parent=0 // loop_body
    %s16 = ssub.s32 %s11, 1
    %s17 = ssub.s32 %s11, 2
    %s18 = sadd.s32 %s11, 1
    %s19 = ssub.s32 %s11, %s18
    %p20 = scmp.eq.s32.totalorder %s19, 0
    %s22 = sadd.s32 %s21, 1
    %s23 = scalar_select %p20, %s21, %s22
    %p26 = pneg %p20
    %p27 = scmp.eq.s32.totalorder %s11, 3
    %p28 = por %p26, %p27
    %p29 = scmp.ne.s32.totalorder %s21, %s24
    %p30 = scmp.eq.s32.totalorder %s11, 0
    %p31 = por %p29, %p30
    %p32 = scmp.ne.s32.totalorder %s21, %s24
    %p33 = scmp.eq.s32.totalorder %s16, 3
    %p34 = por %p32, %p33
    %p35 = scmp.ne.s32.totalorder %s24, %s25
    %p36 = scmp.eq.s32.totalorder %s16, 0
    %p37 = por %p35, %p36
    %p38 = scmp.ne.s32.totalorder %s24, %s25
    %p39 = scmp.eq.s32.totalorder %s17, 3
    %p40 = por %p38, %p39
    %p42 = scmp.ne.s32.totalorder %s25, %s41
    %p43 = scmp.eq.s32.totalorder %s17, 0
    %p44 = por %p42, %p43
    %s46 = sadd.s32 %s45, 1
    %p49 = scmp.eq.s32.totalorder %s11, 3
    %p50 = scmp.ne.s32.totalorder %s45, %s47
    %p51 = scmp.eq.s32.totalorder %s11, 0
    %p52 = por %p50, %p51
    %p53 = scmp.ne.s32.totalorder %s45, %s47
    %p54 = scmp.eq.s32.totalorder %s16, 3
    %p55 = por %p53, %p54
    %p56 = scmp.ne.s32.totalorder %s47, %s48
    %p57 = scmp.eq.s32.totalorder %s16, 0
    %p58 = por %p56, %p57
    %p59 = scmp.ne.s32.totalorder %s47, %s48
    %p60 = scmp.eq.s32.totalorder %s17, 3
    %p61 = por %p59, %p60
    %p63 = scmp.ne.s32.totalorder %s48, %s62
    %p64 = scmp.eq.s32.totalorder %s17, 0
    %p65 = por %p63, %p64
    %s67 = sadd.s32 %s66, 1
    %p70 = scmp.eq.s32.totalorder %s11, 3
    %p71 = scmp.ne.s32.totalorder %s66, %s68
    %p72 = scmp.eq.s32.totalorder %s11, 0
    %p73 = por %p71, %p72
    %p74 = scmp.ne.s32.totalorder %s66, %s68
    %p75 = scmp.eq.s32.totalorder %s16, 3
    %p76 = por %p74, %p75
    %p77 = scmp.ne.s32.totalorder %s68, %s69
    %p78 = scmp.eq.s32.totalorder %s16, 0
    %p79 = por %p77, %p78
    %p80 = scmp.ne.s32.totalorder %s68, %s69
    %p81 = scmp.eq.s32.totalorder %s17, 3
    %p82 = por %p80, %p81
    %p84 = scmp.ne.s32.totalorder %s69, %s83
    %p85 = scmp.eq.s32.totalorder %s17, 0
    %p86 = por %p84, %p85
    %s88 = sadd.s32 %s87, 1
    %p91 = scmp.eq.s32.totalorder %s11, 3
    %p92 = scmp.ne.s32.totalorder %s87, %s89
    %p93 = scmp.eq.s32.totalorder %s11, 0
    %p94 = por %p92, %p93
    %p95 = scmp.ne.s32.totalorder %s87, %s89
    %p96 = scmp.eq.s32.totalorder %s16, 3
    %p97 = por %p95, %p96
    %p98 = scmp.ne.s32.totalorder %s89, %s90
    %p99 = scmp.eq.s32.totalorder %s16, 0
    %p100 = por %p98, %p99
    %p101 = scmp.ne.s32.totalorder %s89, %s90
    %p102 = scmp.eq.s32.totalorder %s17, 3
    %p103 = por %p101, %p102
    %p105 = scmp.ne.s32.totalorder %s90, %s104
    %p106 = scmp.eq.s32.totalorder %s17, 0
    %p107 = por %p105, %p106
    %s109 = sadd.s32 %s108, 1
    %p112 = scmp.eq.s32.totalorder %s11, 3
    %p113 = scmp.ne.s32.totalorder %s108, %s110
    %p114 = scmp.eq.s32.totalorder %s11, 0
    %p115 = por %p113, %p114
    %p116 = scmp.ne.s32.totalorder %s108, %s110
    %p117 = scmp.eq.s32.totalorder %s16, 3
    %p118 = por %p116, %p117
    %p119 = scmp.ne.s32.totalorder %s110, %s111
    %p120 = scmp.eq.s32.totalorder %s16, 0
    %p121 = por %p119, %p120
    %p122 = scmp.ne.s32.totalorder %s110, %s111
    %p123 = scmp.eq.s32.totalorder %s17, 3
    %p124 = por %p122, %p123
    %p126 = scmp.ne.s32.totalorder %s111, %s125
    %p127 = scmp.eq.s32.totalorder %s17, 0
    %p128 = por %p126, %p127
    %s129 = ssub.s32 %s11, %s18
    %p130 = scmp.eq.s32.totalorder %s129, 0
    %s132 = sadd.s32 %s131, 1
    %s133 = scalar_select %p130, %s131, %s132
    %p136 = pneg %p130
    %p137 = scmp.eq.s32.totalorder %s11, 3
    %p138 = por %p136, %p137
    %p139 = scmp.ne.s32.totalorder %s131, %s134
    %p140 = scmp.eq.s32.totalorder %s11, 0
    %p141 = por %p139, %p140
    %p142 = scmp.ne.s32.totalorder %s131, %s134
    %p143 = scmp.eq.s32.totalorder %s16, 3
    %p144 = por %p142, %p143
    %p145 = scmp.ne.s32.totalorder %s134, %s135
    %p146 = scmp.eq.s32.totalorder %s16, 0
    %p147 = por %p145, %p146
    %p148 = scmp.ne.s32.totalorder %s134, %s135
    %p149 = scmp.eq.s32.totalorder %s17, 3
    %p150 = por %p148, %p149
    %p152 = scmp.ne.s32.totalorder %s135, %s151
    %p153 = scmp.eq.s32.totalorder %s17, 0
    %p154 = por %p152, %p153
    %p155 = scmp.le.s32.totalorder 1, %s11
    %p156 = scmp.lt.s32.totalorder %s11, 5
    %p157 = pnand %p155, %p156
    %p158 = pneg %p157
    // Predicated region
    $region9: #{gating_forward.1} parent=5 // pred_check
      _
    $region10: #{gating_forward.1} parent=5 // pred_check_branch
      %160 = sbr.rel (%p157) target = $region12
    $region11: #{gating_forward.1} parent=5 // pred_region
      %s161 = ssub.s32 %s11, 1
      // Predicated region
      $region13: #{gating_forward.1} parent=11 // pred_check
        %p162 = pneg %p58
      $region14: #{gating_forward.1} parent=11 // pred_check_branch
        %164 = sbr.rel (%p162) target = $region16
      $region15: #{gating_forward.1} parent=11 // pred_region
        _
      $region16: #{gating_forward.1} parent=11 // pred_fallthru
        _
      // Predicated region
      $region17: #{gating_forward.1} parent=11 // pred_check
        %p165 = pneg %p79
      $region18: #{gating_forward.1} parent=11 // pred_check_branch
        %167 = sbr.rel (%p165) target = $region20
      $region19: #{gating_forward.1} parent=11 // pred_region
        _
      $region20: #{gating_forward.1} parent=11 // pred_fallthru
        _
      // Predicated region
      $region21: #{gating_forward.1} parent=11 // pred_check
        %p168 = pneg %p100
      $region22: #{gating_forward.1} parent=11 // pred_check_branch
        %170 = sbr.rel (%p168) target = $region24
      $region23: #{gating_forward.1} parent=11 // pred_region
        _
      $region24: #{gating_forward.1} parent=11 // pred_fallthru
        _
      // Predicated region
      $region25: #{gating_forward.1} parent=11 // pred_check
        %p171 = pneg %p121
      $region26: #{gating_forward.1} parent=11 // pred_check_branch
        %173 = sbr.rel (%p171) target = $region28
      $region27: #{gating_forward.1} parent=11 // pred_region
        _
      $region28: #{gating_forward.1} parent=11 // pred_fallthru
        _
    $region12: #{gating_forward.1} parent=5 // pred_fallthru
      _
    %p174 = scmp.lt.s32.totalorder %s11, 4
    // Predicated region
    $region29: #{gating_forward.1} parent=5 // pred_check
      %p175 = pneg %p174
    $region30: #{gating_forward.1} parent=5 // pred_check_branch
      %177 = sbr.rel (%p175) target = $region32
    $region31: #{gating_forward.1} parent=5 // pred_region
      // Predicated region
      $region33: #{gating_forward.1} parent=31 // pred_check
        %p178 = pneg %p31
      $region34: #{gating_forward.1} parent=31 // pred_check_branch
        %180 = sbr.rel (%p178) target = $region36
      $region35: #{gating_forward.1} parent=31 // pred_region
        %s181 = smul.u32 2, %s11
        %p182 = scmp.lt.s32.totalorder %s181, 7
        %s183 = scalar_select %p182, %s181, 7
        %s184 = smul.addr %s183, 8
        %s185 = scalar_lea.vmem %s0, %s184
        %s186 = smul.u32 2, %s11
      $region36: #{gating_forward.1} parent=31 // pred_fallthru
        _
    $region32: #{gating_forward.1} parent=5 // pred_fallthru
      _
    %p187 = scmp.le.s32.totalorder 1, %s11
    %p188 = scmp.lt.s32.totalorder %s11, 5
    %p189 = pnand %p187, %p188
    %p190 = pneg %p189
    // Predicated region
    $region37: #{gating_forward.1} parent=5 // pred_check
      _
    $region38: #{gating_forward.1} parent=5 // pred_check_branch
      %192 = sbr.rel (%p189) target = $region40
    $region39: #{gating_forward.1} parent=5 // pred_region
      %s193 = ssub.s32 %s11, 1
      %s194 = smul.u32 2, %s16
      %p195 = scmp.lt.s32.totalorder %s194, 7
      %s196 = scalar_select %p195, %s194, 7
      %s197 = smul.addr %s196, 8
      %s198 = scalar_lea.vmem %s0, %s197
      %p199 = pneg %p37
      %p200 = pneg %p34
      %p201 = pneg %p58
      %p202 = pneg %p55
      %p203 = pneg %p79
      %p204 = pneg %p76
      %p205 = pneg %p100
      %p206 = pneg %p97
      %p207 = pneg %p121
      %p208 = pneg %p118
      %p209 = pneg %p147
      %p210 = pneg %p144
      %s211 = smul.u32 2, %s16
      %p212 = scmp.lt.s32.totalorder %s211, 7
      %s213 = scalar_select %p212, %s211, 7
      %s214 = smul.addr %s213, 8
      %s215 = scalar_lea.vmem %s5, %s214
      %s216 = smul.u32 2, %s16
      %p217 = scmp.lt.s32.totalorder %s216, 7
      %s218 = scalar_select %p217, %s216, 7
      %s219 = smul.addr %s218, 8
      %s220 = scalar_lea.vmem %s0, %s219
      %s221 = smul.u32 2, %s16
      %s222 = smul.u32 2, %s16
      %p223 = scmp.lt.s32.totalorder %s222, 7
      %s224 = scalar_select %p223, %s222, 7
      %s225 = smul.addr %s224, 8
      %s226 = scalar_lea.vmem %s5, %s225
      %s227 = smul.u32 2, %s16
      %v228 = vld [vmem:[%s1] sm:$0xff]
      %v229 = vld [vmem:[%s1 + $0x8] sm:$0xff]
      %v230 = vld [vmem:[%s1 + $0x10] sm:$0xff]
      %v231 = vld [vmem:[%s1 + $0x18] sm:$0xff]
      %v232 = vld [vmem:[%s1 + $0x20] sm:$0xff]
      %v233 = vld [vmem:[%s1 + $0x28] sm:$0xff]
      %v234 = vld [vmem:[%s1 + $0x30] sm:$0xff]
      %v235 = vld [vmem:[%s1 + $0x38] sm:$0xff]
      %v236 = vld [vmem:[%s1 + $0x40] sm:$0xff]
      %v237 = vld [vmem:[%s1 + $0x48] sm:$0xff]
      %v238 = vld [vmem:[%s1 + $0x50] sm:$0xff]
      %v239 = vld [vmem:[%s1 + $0x58] sm:$0xff]
      %v240 = vld [vmem:[%s1 + $0x60] sm:$0xff]
      %v241 = vld [vmem:[%s1 + $0x68] sm:$0xff]
      %v242 = vld [vmem:[%s1 + $0x70] sm:$0xff]
      %v243 = vld [vmem:[%s1 + $0x78] sm:$0xff]
      %s244 = scalar_lea.vmem %s1, 128
      %v245 = vld [vmem:[%s244] sm:$0xff]
      %v246 = vld [vmem:[%s244 + $0x8] sm:$0xff]
      %v247 = vld [vmem:[%s244 + $0x10] sm:$0xff]
      %v248 = vld [vmem:[%s244 + $0x18] sm:$0xff]
      %v249 = vld [vmem:[%s244 + $0x20] sm:$0xff]
      %v250 = vld [vmem:[%s244 + $0x28] sm:$0xff]
      %v251 = vld [vmem:[%s244 + $0x30] sm:$0xff]
      %v252 = vld [vmem:[%s244 + $0x38] sm:$0xff]
      %v253 = vld [vmem:[%s244 + $0x40] sm:$0xff]
      %v254 = vld [vmem:[%s244 + $0x48] sm:$0xff]
      %v255 = vld [vmem:[%s244 + $0x50] sm:$0xff]
      %v256 = vld [vmem:[%s244 + $0x58] sm:$0xff]
      %v257 = vld [vmem:[%s244 + $0x60] sm:$0xff]
      %v258 = vld [vmem:[%s244 + $0x68] sm:$0xff]
      %v259 = vld [vmem:[%s244 + $0x70] sm:$0xff]
      %v260 = vld [vmem:[%s244 + $0x78] sm:$0xff]
      %v261 = vld [vmem:[%s2] sm:$0x1]
      %s262 = scalar_lea.vmem %s2, 1
      %v263 = vld [vmem:[%s262] sm:$0x1]
      %v264 = vld [vmem:[%s4] sm:$0xff]
      %v265 = vld [vmem:[%s4 + $0x8] sm:$0xff]
      %s266 = scalar_lea.vmem %s4, 16
      %v267 = vld [vmem:[%s266] sm:$0xff]
      %v268 = vld [vmem:[%s266 + $0x8] sm:$0xff]
      %v269 = vld [vmem:[%s220] sm:$0xff]
      %v270 = vld [vmem:[%s220 + $0x8] sm:$0xff]
      %v272 = vlaneseq
      %v273 = vshrl.u32 %v272, 7
      %v274 = vsub.s32 0, %v273
      %v275 = vrot.slane %v261, %v274
      %277 = vmatprep.subr.mxu0 0.0
      %v278 = vand.u32 %v228, 4294901760
      %279 = vmatpush1.msra.mxu0 %v278
      %280 = vmatprep.subr.mxu0 0.0
      %v281 = vand.u32 %v229, 4294901760
      %282 = vmatpush1.msra.mxu0 %v281
      %283 = vmatprep.subr.mxu0 0.0
      %v284 = vand.u32 %v230, 4294901760
      %285 = vmatpush1.msra.mxu0 %v284
      %286 = vmatprep.subr.mxu0 0.0
      %v287 = vand.u32 %v231, 4294901760
      %288 = vmatpush1.msra.mxu0 %v287
      %289 = vmatprep.subr.mxu0 0.0
      %v290 = vand.u32 %v232, 4294901760
      %291 = vmatpush1.msra.mxu0 %v290
      %292 = vmatprep.subr.mxu0 0.0
      %v293 = vand.u32 %v233, 4294901760
      %294 = vmatpush1.msra.mxu0 %v293
      %295 = vmatprep.subr.mxu0 0.0
      %v296 = vand.u32 %v234, 4294901760
      %297 = vmatpush1.msra.mxu0 %v296
      %298 = vmatprep.subr.mxu0 0.0
      %v299 = vand.u32 %v235, 4294901760
      %300 = vmatpush1.msra.mxu0 %v299
      %301 = vmatprep.subr.mxu0 0.0
      %v302 = vand.u32 %v236, 4294901760
      %303 = vmatpush1.msra.mxu0 %v302
      %304 = vmatprep.subr.mxu0 0.0
      %v305 = vand.u32 %v237, 4294901760
      %306 = vmatpush1.msra.mxu0 %v305
      %307 = vmatprep.subr.mxu0 0.0
      %v308 = vand.u32 %v238, 4294901760
      %309 = vmatpush1.msra.mxu0 %v308
      %310 = vmatprep.subr.mxu0 0.0
      %v311 = vand.u32 %v239, 4294901760
      %312 = vmatpush1.msra.mxu0 %v311
      %313 = vmatprep.subr.mxu0 0.0
      %v314 = vand.u32 %v240, 4294901760
      %315 = vmatpush1.msra.mxu0 %v314
      %316 = vmatprep.subr.mxu0 0.0
      %v317 = vand.u32 %v241, 4294901760
      %318 = vmatpush1.msra.mxu0 %v317
      %319 = vmatprep.subr.mxu0 0.0
      %v320 = vand.u32 %v242, 4294901760
      %321 = vmatpush1.msra.mxu0 %v320
      %322 = vmatprep.subr.mxu0 0.0
      %v323 = vand.u32 %v243, 4294901760
      %324 = vmatpush1.msra.mxu0 %v323
      %325 = vmatprep.subr.mxu0 0.0
      %326 = vmatpush1.msra.mxu0 0.0
      %327 = vmatprep.subr.mxu0 0.0
      %328 = vmatpush1.msra.mxu0 0.0
      %329 = vmatprep.subr.mxu0 0.0
      %330 = vmatpush1.msra.mxu0 0.0
      %331 = vmatprep.subr.mxu0 0.0
      %332 = vmatpush1.msra.mxu0 0.0
      %333 = vmatprep.subr.mxu0 0.0
      %334 = vmatpush1.msra.mxu0 0.0
      %335 = vmatprep.subr.mxu0 0.0
      %336 = vmatpush1.msra.mxu0 0.0
      %337 = vmatprep.subr.mxu0 0.0
      %338 = vmatpush1.msra.mxu0 0.0
      %339 = vmatprep.subr.mxu0 0.0
      %340 = vmatpush1.msra.mxu0 0.0
      %341 = vmatprep.subr.mxu0 0.0
      %342 = vmatpush1.msra.mxu0 0.0
      %343 = vmatprep.subr.mxu0 0.0
      %344 = vmatpush1.msra.mxu0 0.0
      %345 = vmatprep.subr.mxu0 0.0
      %346 = vmatpush1.msra.mxu0 0.0
      %347 = vmatprep.subr.mxu0 0.0
      %348 = vmatpush1.msra.mxu0 0.0
      %349 = vmatprep.subr.mxu0 0.0
      %350 = vmatpush1.msra.mxu0 0.0
      %351 = vmatprep.subr.mxu0 0.0
      %352 = vmatpush1.msra.mxu0 0.0
      %353 = vmatprep.subr.mxu0 0.0
      %354 = vmatpush1.msra.mxu0 0.0
      %355 = vmatprep.subr.mxu0 0.0
      %356 = vmatpush1.msra.mxu0 0.0
      %357 = vmatprep.mubr.f32.mxu0 0.0
      %v358 = vand.u32 %v269, 4294901760
      %v359 = vsub.f32 %v269, %v358
      %v360 = vand.u32 %v359, 4294901760
      %v361 = vsub.f32 %v359, %v360
      %v362 = vand.u32 %v361, 4294901760
      %363 = vmatmul.mubr.f32.gmra.mrb[0].mxu0 %v362
      %v364 = vpop.f32.mrb[0].mxu0
      %v365 = vadd.f32 %v275, %v364
      %v366 = vpop.f32.mrb[0].mxu0
      %367 = vmatprep.mubr.f32.mxu0 0.0
      %v368 = vand.u32 %v270, 4294901760
      %v369 = vsub.f32 %v270, %v368
      %v370 = vand.u32 %v369, 4294901760
      %v371 = vsub.f32 %v369, %v370
      %v372 = vand.u32 %v371, 4294901760
      %373 = vmatmul.mubr.f32.gmra.mrb[0].mxu0 %v372
      %v374 = vpop.f32.mrb[0].mxu0
      %v375 = vadd.f32 %v275, %v374
      %v376 = vpop.f32.mrb[0].mxu0
      %377 = vdwg.mxu0
      %378 = vmatprep.subr.mxu0 0.0
      %v379 = vand.u32 %v228, 4294901760
      %v380 = vsub.f32 %v228, %v379
      %v381 = vand.u32 %v380, 4294901760
      %v382 = vsub.f32 %v380, %v381
      %v383 = vand.u32 %v382, 4294901760
      %384 = vmatpush1.msra.mxu0 %v383
      %385 = vmatprep.subr.mxu0 0.0
      %v386 = vand.u32 %v229, 4294901760
      %v387 = vsub.f32 %v229, %v386
      %v388 = vand.u32 %v387, 4294901760
      %v389 = vsub.f32 %v387, %v388
      %v390 = vand.u32 %v389, 4294901760
      %391 = vmatpush1.msra.mxu0 %v390
      %392 = vmatprep.subr.mxu0 0.0
      %v393 = vand.u32 %v230, 4294901760
      %v394 = vsub.f32 %v230, %v393
      %v395 = vand.u32 %v394, 4294901760
      %v396 = vsub.f32 %v394, %v395
      %v397 = vand.u32 %v396, 4294901760
      %398 = vmatpush1.msra.mxu0 %v397
      %399 = vmatprep.subr.mxu0 0.0
      %v400 = vand.u32 %v231, 4294901760
      %v401 = vsub.f32 %v231, %v400
      %v402 = vand.u32 %v401, 4294901760
      %v403 = vsub.f32 %v401, %v402
      %v404 = vand.u32 %v403, 4294901760
      %405 = vmatpush1.msra.mxu0 %v404
      %406 = vmatprep.subr.mxu0 0.0
      %v407 = vand.u32 %v232, 4294901760
      %v408 = vsub.f32 %v232, %v407
      %v409 = vand.u32 %v408, 4294901760
      %v410 = vsub.f32 %v408, %v409
      %v411 = vand.u32 %v410, 4294901760
      %412 = vmatpush1.msra.mxu0 %v411
      %413 = vmatprep.subr.mxu0 0.0
      %v414 = vand.u32 %v233, 4294901760
      %v415 = vsub.f32 %v233, %v414
      %v416 = vand.u32 %v415, 4294901760
      %v417 = vsub.f32 %v415, %v416
      %v418 = vand.u32 %v417, 4294901760
      %419 = vmatpush1.msra.mxu0 %v418
      %420 = vmatprep.subr.mxu0 0.0
      %v421 = vand.u32 %v234, 4294901760
      %v422 = vsub.f32 %v234, %v421
      %v423 = vand.u32 %v422, 4294901760
      %v424 = vsub.f32 %v422, %v423
      %v425 = vand.u32 %v424, 4294901760
      %426 = vmatpush1.msra.mxu0 %v425
      %427 = vmatprep.subr.mxu0 0.0
      %v428 = vand.u32 %v235, 4294901760
      %v429 = vsub.f32 %v235, %v428
      %v430 = vand.u32 %v429, 4294901760
      %v431 = vsub.f32 %v429, %v430
      %v432 = vand.u32 %v431, 4294901760
      %433 = vmatpush1.msra.mxu0 %v432
      %434 = vmatprep.subr.mxu0 0.0
      %v435 = vand.u32 %v236, 4294901760
      %v436 = vsub.f32 %v236, %v435
      %v437 = vand.u32 %v436, 4294901760
      %v438 = vsub.f32 %v436, %v437
      %v439 = vand.u32 %v438, 4294901760
      %440 = vmatpush1.msra.mxu0 %v439
      %441 = vmatprep.subr.mxu0 0.0
      %v442 = vand.u32 %v237, 4294901760
      %v443 = vsub.f32 %v237, %v442
      %v444 = vand.u32 %v443, 4294901760
      %v445 = vsub.f32 %v443, %v444
      %v446 = vand.u32 %v445, 4294901760
      %447 = vmatpush1.msra.mxu0 %v446
      %448 = vmatprep.subr.mxu0 0.0
      %v449 = vand.u32 %v238, 4294901760
      %v450 = vsub.f32 %v238, %v449
      %v451 = vand.u32 %v450, 4294901760
      %v452 = vsub.f32 %v450, %v451
      %v453 = vand.u32 %v452, 4294901760
      %454 = vmatpush1.msra.mxu0 %v453
      %455 = vmatprep.subr.mxu0 0.0
      %v456 = vand.u32 %v239, 4294901760
      %v457 = vsub.f32 %v239, %v456
      %v458 = vand.u32 %v457, 4294901760
      %v459 = vsub.f32 %v457, %v458
      %v460 = vand.u32 %v459, 4294901760
      %461 = vmatpush1.msra.mxu0 %v460
      %462 = vmatprep.subr.mxu0 0.0
      %v463 = vand.u32 %v240, 4294901760
      %v464 = vsub.f32 %v240, %v463
      %v465 = vand.u32 %v464, 4294901760
      %v466 = vsub.f32 %v464, %v465
      %v467 = vand.u32 %v466, 4294901760
      %468 = vmatpush1.msra.mxu0 %v467
      %469 = vmatprep.subr.mxu0 0.0
      %v470 = vand.u32 %v241, 4294901760
      %v471 = vsub.f32 %v241, %v470
      %v472 = vand.u32 %v471, 4294901760
      %v473 = vsub.f32 %v471, %v472
      %v474 = vand.u32 %v473, 4294901760
      %475 = vmatpush1.msra.mxu0 %v474
      %476 = vmatprep.subr.mxu0 0.0
      %v477 = vand.u32 %v242, 4294901760
      %v478 = vsub.f32 %v242, %v477
      %v479 = vand.u32 %v478, 4294901760
      %v480 = vsub.f32 %v478, %v479
      %v481 = vand.u32 %v480, 4294901760
      %482 = vmatpush1.msra.mxu0 %v481
      %483 = vmatprep.subr.mxu0 0.0
      %v484 = vand.u32 %v243, 4294901760
      %v485 = vsub.f32 %v243, %v484
      %v486 = vand.u32 %v485, 4294901760
      %v487 = vsub.f32 %v485, %v486
      %v488 = vand.u32 %v487, 4294901760
      %489 = vmatpush1.msra.mxu0 %v488
      %490 = vmatprep.subr.mxu0 0.0
      %491 = vmatpush1.msra.mxu0 0.0
      %492 = vmatprep.subr.mxu0 0.0
      %493 = vmatpush1.msra.mxu0 0.0
      %494 = vmatprep.subr.mxu0 0.0
      %495 = vmatpush1.msra.mxu0 0.0
      %496 = vmatprep.subr.mxu0 0.0
      %497 = vmatpush1.msra.mxu0 0.0
      %498 = vmatprep.subr.mxu0 0.0
      %499 = vmatpush1.msra.mxu0 0.0
      %500 = vmatprep.subr.mxu0 0.0
      %501 = vmatpush1.msra.mxu0 0.0
      %502 = vmatprep.subr.mxu0 0.0
      %503 = vmatpush1.msra.mxu0 0.0
      %504 = vmatprep.subr.mxu0 0.0
      %505 = vmatpush1.msra.mxu0 0.0
      %506 = vmatprep.subr.mxu0 0.0
      %507 = vmatpush1.msra.mxu0 0.0
      %508 = vmatprep.subr.mxu0 0.0
      %509 = vmatpush1.msra.mxu0 0.0
      %510 = vmatprep.subr.mxu0 0.0
      %511 = vmatpush1.msra.mxu0 0.0
      %512 = vmatprep.subr.mxu0 0.0
      %513 = vmatpush1.msra.mxu0 0.0
      %514 = vmatprep.subr.mxu0 0.0
      %515 = vmatpush1.msra.mxu0 0.0
      %516 = vmatprep.subr.mxu0 0.0
      %517 = vmatpush1.msra.mxu0 0.0
      %518 = vmatprep.subr.mxu0 0.0
      %519 = vmatpush1.msra.mxu0 0.0
      %520 = vmatprep.subr.mxu0 0.0
      %521 = vmatpush1.msra.mxu0 0.0
      %522 = vmatprep.mubr.f32.mxu0 0.0
      %v523 = vand.u32 %v269, 4294901760
      %524 = vmatmul.mubr.f32.gmra.mrb[0].mxu0 %v523
      %v525 = vpop.f32.mrb[0].mxu0
      %v526 = vadd.f32 %v365, %v525
      %v527 = vpop.f32.mrb[0].mxu0
      %528 = vmatprep.mubr.f32.mxu0 0.0
      %v529 = vand.u32 %v270, 4294901760
      %530 = vmatmul.mubr.f32.gmra.mrb[0].mxu0 %v529
      %v531 = vpop.f32.mrb[0].mxu0
      %v532 = vadd.f32 %v375, %v531
      %v533 = vpop.f32.mrb[0].mxu0
      %534 = vdwg.mxu0
      %535 = vmatprep.subr.mxu0 0.0
      %v536 = vand.u32 %v228, 4294901760
      %v537 = vsub.f32 %v228, %v536
      %538 = vmatpush1.msra.mxu0 %v537
      %539 = vmatprep.subr.mxu0 0.0
      %v540 = vand.u32 %v229, 4294901760
      %v541 = vsub.f32 %v229, %v540
      %542 = vmatpush1.msra.mxu0 %v541
      %543 = vmatprep.subr.mxu0 0.0
      %v544 = vand.u32 %v230, 4294901760
      %v545 = vsub.f32 %v230, %v544
      %546 = vmatpush1.msra.mxu0 %v545
      %547 = vmatprep.subr.mxu0 0.0
      %v548 = vand.u32 %v231, 4294901760
      %v549 = vsub.f32 %v231, %v548
      %550 = vmatpush1.msra.mxu0 %v549
      %551 = vmatprep.subr.mxu0 0.0
      %v552 = vand.u32 %v232, 4294901760
      %v553 = vsub.f32 %v232, %v552
      %554 = vmatpush1.msra.mxu0 %v553
      %555 = vmatprep.subr.mxu0 0.0
      %v556 = vand.u32 %v233, 4294901760
      %v557 = vsub.f32 %v233, %v556
      %558 = vmatpush1.msra.mxu0 %v557
      %559 = vmatprep.subr.mxu0 0.0
      %v560 = vand.u32 %v234, 4294901760
      %v561 = vsub.f32 %v234, %v560
      %562 = vmatpush1.msra.mxu0 %v561
      %563 = vmatprep.subr.mxu0 0.0
      %v564 = vand.u32 %v235, 4294901760
      %v565 = vsub.f32 %v235, %v564
      %566 = vmatpush1.msra.mxu0 %v565
      %567 = vmatprep.subr.mxu0 0.0
      %v568 = vand.u32 %v236, 4294901760
      %v569 = vsub.f32 %v236, %v568
      %570 = vmatpush1.msra.mxu0 %v569
      %571 = vmatprep.subr.mxu0 0.0
      %v572 = vand.u32 %v237, 4294901760
      %v573 = vsub.f32 %v237, %v572
      %574 = vmatpush1.msra.mxu0 %v573
      %575 = vmatprep.subr.mxu0 0.0
      %v576 = vand.u32 %v238, 4294901760
      %v577 = vsub.f32 %v238, %v576
      %578 = vmatpush1.msra.mxu0 %v577
      %579 = vmatprep.subr.mxu0 0.0
      %v580 = vand.u32 %v239, 4294901760
      %v581 = vsub.f32 %v239, %v580
      %582 = vmatpush1.msra.mxu0 %v581
      %583 = vmatprep.subr.mxu0 0.0
      %v584 = vand.u32 %v240, 4294901760
      %v585 = vsub.f32 %v240, %v584
      %586 = vmatpush1.msra.mxu0 %v585
      %587 = vmatprep.subr.mxu0 0.0
      %v588 = vand.u32 %v241, 4294901760
      %v589 = vsub.f32 %v241, %v588
      %590 = vmatpush1.msra.mxu0 %v589
      %591 = vmatprep.subr.mxu0 0.0
      %v592 = vand.u32 %v242, 4294901760
      %v593 = vsub.f32 %v242, %v592
      %594 = vmatpush1.msra.mxu0 %v593
      %595 = vmatprep.subr.mxu0 0.0
      %v596 = vand.u32 %v243, 4294901760
      %v597 = vsub.f32 %v243, %v596
      %598 = vmatpush1.msra.mxu0 %v597
      %599 = vmatprep.subr.mxu0 0.0
      %600 = vmatpush1.msra.mxu0 0.0
      %601 = vmatprep.subr.mxu0 0.0
      %602 = vmatpush1.msra.mxu0 0.0
      %603 = vmatprep.subr.mxu0 0.0
      %604 = vmatpush1.msra.mxu0 0.0
      %605 = vmatprep.subr.mxu0 0.0
      %606 = vmatpush1.msra.mxu0 0.0
      %607 = vmatprep.subr.mxu0 0.0
      %608 = vmatpush1.msra.mxu0 0.0
      %609 = vmatprep.subr.mxu0 0.0
      %610 = vmatpush1.msra.mxu0 0.0
      %611 = vmatprep.subr.mxu0 0.0
      %612 = vmatpush1.msra.mxu0 0.0
      %613 = vmatprep.subr.mxu0 0.0
      %614 = vmatpush1.msra.mxu0 0.0
      %615 = vmatprep.subr.mxu0 0.0
      %616 = vmatpush1.msra.mxu0 0.0
      %617 = vmatprep.subr.mxu0 0.0
      %618 = vmatpush1.msra.mxu0 0.0
      %619 = vmatprep.subr.mxu0 0.0
      %620 = vmatpush1.msra.mxu0 0.0
      %621 = vmatprep.subr.mxu0 0.0
      %622 = vmatpush1.msra.mxu0 0.0
      %623 = vmatprep.subr.mxu0 0.0
      %624 = vmatpush1.msra.mxu0 0.0
      %625 = vmatprep.subr.mxu0 0.0
      %626 = vmatpush1.msra.mxu0 0.0
      %627 = vmatprep.subr.mxu0 0.0
      %628 = vmatpush1.msra.mxu0 0.0
      %629 = vmatprep.subr.mxu0 0.0
      %630 = vmatpush1.msra.mxu0 0.0
      %631 = vmatprep.mubr.f32.mxu0 0.0
      %v632 = vand.u32 %v269, 4294901760
      %v633 = vsub.f32 %v269, %v632
      %634 = vmatmul.mubr.f32.gmra.mrb[0].mxu0 %v633
      %v635 = vpop.f32.mrb[0].mxu0
      %v636 = vadd.f32 %v526, %v635
      %v637 = vpop.f32.mrb[0].mxu0
      %638 = vmatprep.mubr.f32.mxu0 0.0
      %v639 = vand.u32 %v270, 4294901760
      %v640 = vsub.f32 %v270, %v639
      %641 = vmatmul.mubr.f32.gmra.mrb[0].mxu0 %v640
      %v642 = vpop.f32.mrb[0].mxu0
      %v643 = vadd.f32 %v532, %v642
      %v644 = vpop.f32.mrb[0].mxu0
      %645 = vdwg.mxu0
      %646 = vmatprep.subr.mxu0 0.0
      %v647 = vand.u32 %v228, 4294901760
      %648 = vmatpush1.msra.mxu0 %v647
      %649 = vmatprep.subr.mxu0 0.0
      %v650 = vand.u32 %v229, 4294901760
      %651 = vmatpush1.msra.mxu0 %v650
      %652 = vmatprep.subr.mxu0 0.0
      %v653 = vand.u32 %v230, 4294901760
      %654 = vmatpush1.msra.mxu0 %v653
      %655 = vmatprep.subr.mxu0 0.0
      %v656 = vand.u32 %v231, 4294901760
      %657 = vmatpush1.msra.mxu0 %v656
      %658 = vmatprep.subr.mxu0 0.0
      %v659 = vand.u32 %v232, 4294901760
      %660 = vmatpush1.msra.mxu0 %v659
      %661 = vmatprep.subr.mxu0 0.0
      %v662 = vand.u32 %v233, 4294901760
      %663 = vmatpush1.msra.mxu0 %v662
      %664 = vmatprep.subr.mxu0 0.0
      %v665 = vand.u32 %v234, 4294901760
      %666 = vmatpush1.msra.mxu0 %v665
      %667 = vmatprep.subr.mxu0 0.0
      %v668 = vand.u32 %v235, 4294901760
      %669 = vmatpush1.msra.mxu0 %v668
      %670 = vmatprep.subr.mxu0 0.0
      %v671 = vand.u32 %v236, 4294901760
      %672 = vmatpush1.msra.mxu0 %v671
      %673 = vmatprep.subr.mxu0 0.0
      %v674 = vand.u32 %v237, 4294901760
      %675 = vmatpush1.msra.mxu0 %v674
      %676 = vmatprep.subr.mxu0 0.0
      %v677 = vand.u32 %v238, 4294901760
      %678 = vmatpush1.msra.mxu0 %v677
      %679 = vmatprep.subr.mxu0 0.0
      %v680 = vand.u32 %v239, 4294901760
      %681 = vmatpush1.msra.mxu0 %v680
      %682 = vmatprep.subr.mxu0 0.0
      %v683 = vand.u32 %v240, 4294901760
      %684 = vmatpush1.msra.mxu0 %v683
      %685 = vmatprep.subr.mxu0 0.0
      %v686 = vand.u32 %v241, 4294901760
      %687 = vmatpush1.msra.mxu0 %v686
      %688 = vmatprep.subr.mxu0 0.0
      %v689 = vand.u32 %v242, 4294901760
      %690 = vmatpush1.msra.mxu0 %v689
      %691 = vmatprep.subr.mxu0 0.0
      %v692 = vand.u32 %v243, 4294901760
      %693 = vmatpush1.msra.mxu0 %v692
      %694 = vmatprep.subr.mxu0 0.0
      %695 = vmatpush1.msra.mxu0 0.0
      %696 = vmatprep.subr.mxu0 0.0
      %697 = vmatpush1.msra.mxu0 0.0
      %698 = vmatprep.subr.mxu0 0.0
      %699 = vmatpush1.msra.mxu0 0.0
      %700 = vmatprep.subr.mxu0 0.0
      %701 = vmatpush1.msra.mxu0 0.0
      %702 = vmatprep.subr.mxu0 0.0
      %703 = vmatpush1.msra.mxu0 0.0
      %704 = vmatprep.subr.mxu0 0.0
      %705 = vmatpush1.msra.mxu0 0.0
      %706 = vmatprep.subr.mxu0 0.0
      %707 = vmatpush1.msra.mxu0 0.0
      %708 = vmatprep.subr.mxu0 0.0
      %709 = vmatpush1.msra.mxu0 0.0
      %710 = vmatprep.subr.mxu0 0.0
      %711 = vmatpush1.msra.mxu0 0.0
      %712 = vmatprep.subr.mxu0 0.0
      %713 = vmatpush1.msra.mxu0 0.0
      %714 = vmatprep.subr.mxu0 0.0
      %715 = vmatpush1.msra.mxu0 0.0
      %716 = vmatprep.subr.mxu0 0.0
      %717 = vmatpush1.msra.mxu0 0.0
      %718 = vmatprep.subr.mxu0 0.0
      %719 = vmatpush1.msra.mxu0 0.0
      %720 = vmatprep.subr.mxu0 0.0
      %721 = vmatpush1.msra.mxu0 0.0
      %722 = vmatprep.subr.mxu0 0.0
      %723 = vmatpush1.msra.mxu0 0.0
      %724 = vmatprep.subr.mxu0 0.0
      %725 = vmatpush1.msra.mxu0 0.0
      %726 = vmatprep.mubr.f32.mxu0 0.0
      %v727 = vand.u32 %v269, 4294901760
      %v728 = vsub.f32 %v269, %v727
      %v729 = vand.u32 %v728, 4294901760
      %730 = vmatmul.mubr.f32.gmra.mrb[0].mxu0 %v729
      %v731 = vpop.f32.mrb[0].mxu0
      %v732 = vadd.f32 %v636, %v731
      %v733 = vpop.f32.mrb[0].mxu0
      %734 = vmatprep.mubr.f32.mxu0 0.0
      %v735 = vand.u32 %v270, 4294901760
      %v736 = vsub.f32 %v270, %v735
      %v737 = vand.u32 %v736, 4294901760
      %738 = vmatmul.mubr.f32.gmra.mrb[0].mxu0 %v737
      %v739 = vpop.f32.mrb[0].mxu0
      %v740 = vadd.f32 %v643, %v739
      %v741 = vpop.f32.mrb[0].mxu0
      %742 = vdwg.mxu0
      %743 = vmatprep.subr.mxu0 0.0
      %v744 = vand.u32 %v228, 4294901760
      %v745 = vsub.f32 %v228, %v744
      %v746 = vand.u32 %v745, 4294901760
      %747 = vmatpush1.msra.mxu0 %v746
      %748 = vmatprep.subr.mxu0 0.0
      %v749 = vand.u32 %v229, 4294901760
      %v750 = vsub.f32 %v229, %v749
      %v751 = vand.u32 %v750, 4294901760
      %752 = vmatpush1.msra.mxu0 %v751
      %753 = vmatprep.subr.mxu0 0.0
      %v754 = vand.u32 %v230, 4294901760
      %v755 = vsub.f32 %v230, %v754
      %v756 = vand.u32 %v755, 4294901760
      %757 = vmatpush1.msra.mxu0 %v756
      %758 = vmatprep.subr.mxu0 0.0
      %v759 = vand.u32 %v231, 4294901760
      %v760 = vsub.f32 %v231, %v759
      %v761 = vand.u32 %v760, 4294901760
      %762 = vmatpush1.msra.mxu0 %v761
      %763 = vmatprep.subr.mxu0 0.0
      %v764 = vand.u32 %v232, 4294901760
      %v765 = vsub.f32 %v232, %v764
      %v766 = vand.u32 %v765, 4294901760
      %767 = vmatpush1.msra.mxu0 %v766
      %768 = vmatprep.subr.mxu0 0.0
      %v769 = vand.u32 %v233, 4294901760
      %v770 = vsub.f32 %v233, %v769
      %v771 = vand.u32 %v770, 4294901760
      %772 = vmatpush1.msra.mxu0 %v771
      %773 = vmatprep.subr.mxu0 0.0
      %v774 = vand.u32 %v234, 4294901760
      %v775 = vsub.f32 %v234, %v774
      %v776 = vand.u32 %v775, 4294901760
      %777 = vmatpush1.msra.mxu0 %v776
      %778 = vmatprep.subr.mxu0 0.0
      %v779 = vand.u32 %v235, 4294901760
      %v780 = vsub.f32 %v235, %v779
      %v781 = vand.u32 %v780, 4294901760
      %782 = vmatpush1.msra.mxu0 %v781
      %783 = vmatprep.subr.mxu0 0.0
      %v784 = vand.u32 %v236, 4294901760
      %v785 = vsub.f32 %v236, %v784
      %v786 = vand.u32 %v785, 4294901760
      %787 = vmatpush1.msra.mxu0 %v786
      %788 = vmatprep.subr.mxu0 0.0
      %v789 = vand.u32 %v237, 4294901760
      %v790 = vsub.f32 %v237, %v789
      %v791 = vand.u32 %v790, 4294901760
      %792 = vmatpush1.msra.mxu0 %v791
      %793 = vmatprep.subr.mxu0 0.0
      %v794 = vand.u32 %v238, 4294901760
      %v795 = vsub.f32 %v238, %v794
      %v796 = vand.u32 %v795, 4294901760
      %797 = vmatpush1.msra.mxu0 %v796
      %798 = vmatprep.subr.mxu0 0.0
      %v799 = vand.u32 %v239, 4294901760
      %v800 = vsub.f32 %v239, %v799
      %v801 = vand.u32 %v800, 4294901760
      %802 = vmatpush1.msra.mxu0 %v801
      %803 = vmatprep.subr.mxu0 0.0
      %v804 = vand.u32 %v240, 4294901760
      %v805 = vsub.f32 %v240, %v804
      %v806 = vand.u32 %v805, 4294901760
      %807 = vmatpush1.msra.mxu0 %v806
      %808 = vmatprep.subr.mxu0 0.0
      %v809 = vand.u32 %v241, 4294901760
      %v810 = vsub.f32 %v241, %v809
      %v811 = vand.u32 %v810, 4294901760
      %812 = vmatpush1.msra.mxu0 %v811
      %813 = vmatprep.subr.mxu0 0.0
      %v814 = vand.u32 %v242, 4294901760
      %v815 = vsub.f32 %v242, %v814
      %v816 = vand.u32 %v815, 4294901760
      %817 = vmatpush1.msra.mxu0 %v816
      %818 = vmatprep.subr.mxu0 0.0
      %v819 = vand.u32 %v243, 4294901760
      %v820 = vsub.f32 %v243, %v819
      %v821 = vand.u32 %v820, 4294901760
      %822 = vmatpush1.msra.mxu0 %v821
      %823 = vmatprep.subr.mxu0 0.0
      %824 = vmatpush1.msra.mxu0 0.0
      %825 = vmatprep.subr.mxu0 0.0
      %826 = vmatpush1.msra.mxu0 0.0
      %827 = vmatprep.subr.mxu0 0.0
      %828 = vmatpush1.msra.mxu0 0.0
      %829 = vmatprep.subr.mxu0 0.0
      %830 = vmatpush1.msra.mxu0 0.0
      %831 = vmatprep.subr.mxu0 0.0
      %832 = vmatpush1.msra.mxu0 0.0
      %833 = vmatprep.subr.mxu0 0.0
      %834 = vmatpush1.msra.mxu0 0.0
      %835 = vmatprep.subr.mxu0 0.0
      %836 = vmatpush1.msra.mxu0 0.0
      %837 = vmatprep.subr.mxu0 0.0
      %838 = vmatpush1.msra.mxu0 0.0
      %839 = vmatprep.subr.mxu0 0.0
      %840 = vmatpush1.msra.mxu0 0.0
      %841 = vmatprep.subr.mxu0 0.0
      %842 = vmatpush1.msra.mxu0 0.0
      %843 = vmatprep.subr.mxu0 0.0
      %844 = vmatpush1.msra.mxu0 0.0
      %845 = vmatprep.subr.mxu0 0.0
      %846 = vmatpush1.msra.mxu0 0.0
      %847 = vmatprep.subr.mxu0 0.0
      %848 = vmatpush1.msra.mxu0 0.0
      %849 = vmatprep.subr.mxu0 0.0
      %850 = vmatpush1.msra.mxu0 0.0
      %851 = vmatprep.subr.mxu0 0.0
      %852 = vmatpush1.msra.mxu0 0.0
      %853 = vmatprep.subr.mxu0 0.0
      %854 = vmatpush1.msra.mxu0 0.0
      %855 = vmatprep.mubr.f32.mxu0 0.0
      %v856 = vand.u32 %v269, 4294901760
      %857 = vmatmul.mubr.f32.gmra.mrb[0].mxu0 %v856
      %v858 = vpop.f32.mrb[0].mxu0
      %v859 = vadd.f32 %v732, %v858
      %v860 = vpop.f32.mrb[0].mxu0
      %861 = vmatprep.mubr.f32.mxu0 0.0
      %v862 = vand.u32 %v270, 4294901760
      %863 = vmatmul.mubr.f32.gmra.mrb[0].mxu0 %v862
      %v864 = vpop.f32.mrb[0].mxu0
      %v865 = vadd.f32 %v740, %v864
      %v866 = vpop.f32.mrb[0].mxu0
      %867 = vdwg.mxu0
      %868 = vmatprep.subr.mxu0 0.0
      %v869 = vand.u32 %v228, 4294901760
      %870 = vmatpush1.msra.mxu0 %v869
      %871 = vmatprep.subr.mxu0 0.0
      %v872 = vand.u32 %v229, 4294901760
      %873 = vmatpush1.msra.mxu0 %v872
      %874 = vmatprep.subr.mxu0 0.0
      %v875 = vand.u32 %v230, 4294901760
      %876 = vmatpush1.msra.mxu0 %v875
      %877 = vmatprep.subr.mxu0 0.0
      %v878 = vand.u32 %v231, 4294901760
      %879 = vmatpush1.msra.mxu0 %v878
      %880 = vmatprep.subr.mxu0 0.0
      %v881 = vand.u32 %v232, 4294901760
      %882 = vmatpush1.msra.mxu0 %v881
      %883 = vmatprep.subr.mxu0 0.0
      %v884 = vand.u32 %v233, 4294901760
      %885 = vmatpush1.msra.mxu0 %v884
      %886 = vmatprep.subr.mxu0 0.0
      %v887 = vand.u32 %v234, 4294901760
      %888 = vmatpush1.msra.mxu0 %v887
      %889 = vmatprep.subr.mxu0 0.0
      %v890 = vand.u32 %v235, 4294901760
      %891 = vmatpush1.msra.mxu0 %v890
      %892 = vmatprep.subr.mxu0 0.0
      %v893 = vand.u32 %v236, 4294901760
      %894 = vmatpush1.msra.mxu0 %v893
      %895 = vmatprep.subr.mxu0 0.0
      %v896 = vand.u32 %v237, 4294901760
      %897 = vmatpush1.msra.mxu0 %v896
      %898 = vmatprep.subr.mxu0 0.0
      %v899 = vand.u32 %v238, 4294901760
      %900 = vmatpush1.msra.mxu0 %v899
      %901 = vmatprep.subr.mxu0 0.0
      %v902 = vand.u32 %v239, 4294901760
      %903 = vmatpush1.msra.mxu0 %v902
      %904 = vmatprep.subr.mxu0 0.0
      %v905 = vand.u32 %v240, 4294901760
      %906 = vmatpush1.msra.mxu0 %v905
      %907 = vmatprep.subr.mxu0 0.0
      %v908 = vand.u32 %v241, 4294901760
      %909 = vmatpush1.msra.mxu0 %v908
      %910 = vmatprep.subr.mxu0 0.0
      %v911 = vand.u32 %v242, 4294901760
      %912 = vmatpush1.msra.mxu0 %v911
      %913 = vmatprep.subr.mxu0 0.0
      %v914 = vand.u32 %v243, 4294901760
      %915 = vmatpush1.msra.mxu0 %v914
      %916 = vmatprep.subr.mxu0 0.0
      %917 = vmatpush1.msra.mxu0 0.0
      %918 = vmatprep.subr.mxu0 0.0
      %919 = vmatpush1.msra.mxu0 0.0
      %920 = vmatprep.subr.mxu0 0.0
      %921 = vmatpush1.msra.mxu0 0.0
      %922 = vmatprep.subr.mxu0 0.0
      %923 = vmatpush1.msra.mxu0 0.0
      %924 = vmatprep.subr.mxu0 0.0
      %925 = vmatpush1.msra.mxu0 0.0
      %926 = vmatprep.subr.mxu0 0.0
      %927 = vmatpush1.msra.mxu0 0.0
      %928 = vmatprep.subr.mxu0 0.0
      %929 = vmatpush1.msra.mxu0 0.0
      %930 = vmatprep.subr.mxu0 0.0
      %931 = vmatpush1.msra.mxu0 0.0
      %932 = vmatprep.subr.mxu0 0.0
      %933 = vmatpush1.msra.mxu0 0.0
      %934 = vmatprep.subr.mxu0 0.0
      %935 = vmatpush1.msra.mxu0 0.0
      %936 = vmatprep.subr.mxu0 0.0
      %937 = vmatpush1.msra.mxu0 0.0
      %938 = vmatprep.subr.mxu0 0.0
      %939 = vmatpush1.msra.mxu0 0.0
      %940 = vmatprep.subr.mxu0 0.0
      %941 = vmatpush1.msra.mxu0 0.0
      %942 = vmatprep.subr.mxu0 0.0
      %943 = vmatpush1.msra.mxu0 0.0
      %944 = vmatprep.subr.mxu0 0.0
      %945 = vmatpush1.msra.mxu0 0.0
      %946 = vmatprep.subr.mxu0 0.0
      %947 = vmatpush1.msra.mxu0 0.0
      %948 = vmatprep.mubr.f32.mxu0 0.0
      %v949 = vand.u32 %v269, 4294901760
      %950 = vmatmul.mubr.f32.gmra.mrb[0].mxu0 %v949
      %v951 = vpop.f32.mrb[0].mxu0
      %v952 = vadd.f32 %v859, %v951
      %v953 = vpop.f32.mrb[0].mxu0
      %954 = vmatprep.mubr.f32.mxu0 0.0
      %v955 = vand.u32 %v270, 4294901760
      %956 = vmatmul.mubr.f32.gmra.mrb[0].mxu0 %v955
      %v957 = vpop.f32.mrb[0].mxu0
      %v958 = vadd.f32 %v865, %v957
      %v959 = vpop.f32.mrb[0].mxu0
      %960 = vdwg.mxu0
      %v961 = vmax.f32 %v952, 0.0
      %v962 = vmax.f32 %v958, 0.0
      %v964 = vlaneseq
      %v965 = vshrl.u32 %v964, 7
      %v966 = vsub.s32 0, %v965
      %v967 = vrot.slane %v263, %v966
      %969 = vmatprep.subr.mxu0 0.0
      %v970 = vand.u32 %v245, 4294901760
      %971 = vmatpush1.msra.mxu0 %v970
      %972 = vmatprep.subr.mxu0 0.0
      %v973 = vand.u32 %v246, 4294901760
      %974 = vmatpush1.msra.mxu0 %v973
      %975 = vmatprep.subr.mxu0 0.0
      %v976 = vand.u32 %v247, 4294901760
      %977 = vmatpush1.msra.mxu0 %v976
      %978 = vmatprep.subr.mxu0 0.0
      %v979 = vand.u32 %v248, 4294901760
      %980 = vmatpush1.msra.mxu0 %v979
      %981 = vmatprep.subr.mxu0 0.0
      %v982 = vand.u32 %v249, 4294901760
      %983 = vmatpush1.msra.mxu0 %v982
      %984 = vmatprep.subr.mxu0 0.0
      %v985 = vand.u32 %v250, 4294901760
      %986 = vmatpush1.msra.mxu0 %v985
      %987 = vmatprep.subr.mxu0 0.0
      %v988 = vand.u32 %v251, 4294901760
      %989 = vmatpush1.msra.mxu0 %v988
      %990 = vmatprep.subr.mxu0 0.0
      %v991 = vand.u32 %v252, 4294901760
      %992 = vmatpush1.msra.mxu0 %v991
      %993 = vmatprep.subr.mxu0 0.0
      %v994 = vand.u32 %v253, 4294901760
      %995 = vmatpush1.msra.mxu0 %v994
      %996 = vmatprep.subr.mxu0 0.0
      %v997 = vand.u32 %v254, 4294901760
      %998 = vmatpush1.msra.mxu0 %v997
      %999 = vmatprep.subr.mxu0 0.0
      %v1000 = vand.u32 %v255, 4294901760
      %1001 = vmatpush1.msra.mxu0 %v1000
      %1002 = vmatprep.subr.mxu0 0.0
      %v1003 = vand.u32 %v256, 4294901760
      %1004 = vmatpush1.msra.mxu0 %v1003
      %1005 = vmatprep.subr.mxu0 0.0
      %v1006 = vand.u32 %v257, 4294901760
      %1007 = vmatpush1.msra.mxu0 %v1006
      %1008 = vmatprep.subr.mxu0 0.0
      %v1009 = vand.u32 %v258, 4294901760
      %1010 = vmatpush1.msra.mxu0 %v1009
      %1011 = vmatprep.subr.mxu0 0.0
      %v1012 = vand.u32 %v259, 4294901760
      %1013 = vmatpush1.msra.mxu0 %v1012
      %1014 = vmatprep.subr.mxu0 0.0
      %v1015 = vand.u32 %v260, 4294901760
      %1016 = vmatpush1.msra.mxu0 %v1015
      %1017 = vmatprep.subr.mxu0 0.0
      %1018 = vmatpush1.msra.mxu0 0.0
      %1019 = vmatprep.subr.mxu0 0.0
      %1020 = vmatpush1.msra.mxu0 0.0
      %1021 = vmatprep.subr.mxu0 0.0
      %1022 = vmatpush1.msra.mxu0 0.0
      %1023 = vmatprep.subr.mxu0 0.0
      %1024 = vmatpush1.msra.mxu0 0.0
      %1025 = vmatprep.subr.mxu0 0.0
      %1026 = vmatpush1.msra.mxu0 0.0
      %1027 = vmatprep.subr.mxu0 0.0
      %1028 = vmatpush1.msra.mxu0 0.0
      %1029 = vmatprep.subr.mxu0 0.0
      %1030 = vmatpush1.msra.mxu0 0.0
      %1031 = vmatprep.subr.mxu0 0.0
      %1032 = vmatpush1.msra.mxu0 0.0
      %1033 = vmatprep.subr.mxu0 0.0
      %1034 = vmatpush1.msra.mxu0 0.0
      %1035 = vmatprep.subr.mxu0 0.0
      %1036 = vmatpush1.msra.mxu0 0.0
      %1037 = vmatprep.subr.mxu0 0.0
      %1038 = vmatpush1.msra.mxu0 0.0
      %1039 = vmatprep.subr.mxu0 0.0
      %1040 = vmatpush1.msra.mxu0 0.0
      %1041 = vmatprep.subr.mxu0 0.0
      %1042 = vmatpush1.msra.mxu0 0.0
      %1043 = vmatprep.subr.mxu0 0.0
      %1044 = vmatpush1.msra.mxu0 0.0
      %1045 = vmatprep.subr.mxu0 0.0
      %1046 = vmatpush1.msra.mxu0 0.0
      %1047 = vmatprep.subr.mxu0 0.0
      %1048 = vmatpush1.msra.mxu0 0.0
      %1049 = vmatprep.mubr.f32.mxu0 0.0
      %v1050 = vand.u32 %v961, 4294901760
      %v1051 = vsub.f32 %v961, %v1050
      %v1052 = vand.u32 %v1051, 4294901760
      %v1053 = vsub.f32 %v1051, %v1052
      %v1054 = vand.u32 %v1053, 4294901760
      %1055 = vmatmul.mubr.f32.gmra.mrb[0].mxu0 %v1054
      %v1056 = vpop.f32.mrb[0].mxu0
      %v1057 = vadd.f32 %v967, %v1056
      %v1058 = vpop.f32.mrb[0].mxu0
      %1059 = vmatprep.mubr.f32.mxu0 0.0
      %v1060 = vand.u32 %v962, 4294901760
      %v1061 = vsub.f32 %v962, %v1060
      %v1062 = vand.u32 %v1061, 4294901760
      %v1063 = vsub.f32 %v1061, %v1062
      %v1064 = vand.u32 %v1063, 4294901760
      %1065 = vmatmul.mubr.f32.gmra.mrb[0].mxu0 %v1064
      %v1066 = vpop.f32.mrb[0].mxu0
      %v1067 = vadd.f32 %v967, %v1066
      %v1068 = vpop.f32.mrb[0].mxu0
      %1069 = vdwg.mxu0
      %1070 = vmatprep.subr.mxu0 0.0
      %v1071 = vand.u32 %v245, 4294901760
      %v1072 = vsub.f32 %v245, %v1071
      %v1073 = vand.u32 %v1072, 4294901760
      %v1074 = vsub.f32 %v1072, %v1073
      %v1075 = vand.u32 %v1074, 4294901760
      %1076 = vmatpush1.msra.mxu0 %v1075
      %1077 = vmatprep.subr.mxu0 0.0
      %v1078 = vand.u32 %v246, 4294901760
      %v1079 = vsub.f32 %v246, %v1078
      %v1080 = vand.u32 %v1079, 4294901760
      %v1081 = vsub.f32 %v1079, %v1080
      %v1082 = vand.u32 %v1081, 4294901760
      %1083 = vmatpush1.msra.mxu0 %v1082
      %1084 = vmatprep.subr.mxu0 0.0
      %v1085 = vand.u32 %v247, 4294901760
      %v1086 = vsub.f32 %v247, %v1085
      %v1087 = vand.u32 %v1086, 4294901760
      %v1088 = vsub.f32 %v1086, %v1087
      %v1089 = vand.u32 %v1088, 4294901760
      %1090 = vmatpush1.msra.mxu0 %v1089
      %1091 = vmatprep.subr.mxu0 0.0
      %v1092 = vand.u32 %v248, 4294901760
      %v1093 = vsub.f32 %v248, %v1092
      %v1094 = vand.u32 %v1093, 4294901760
      %v1095 = vsub.f32 %v1093, %v1094
      %v1096 = vand.u32 %v1095, 4294901760
      %1097 = vmatpush1.msra.mxu0 %v1096
      %1098 = vmatprep.subr.mxu0 0.0
      %v1099 = vand.u32 %v249, 4294901760
      %v1100 = vsub.f32 %v249, %v1099
      %v1101 = vand.u32 %v1100, 4294901760
      %v1102 = vsub.f32 %v1100, %v1101
      %v1103 = vand.u32 %v1102, 4294901760
      %1104 = vmatpush1.msra.mxu0 %v1103
      %1105 = vmatprep.subr.mxu0 0.0
      %v1106 = vand.u32 %v250, 4294901760
      %v1107 = vsub.f32 %v250, %v1106
      %v1108 = vand.u32 %v1107, 4294901760
      %v1109 = vsub.f32 %v1107, %v1108
      %v1110 = vand.u32 %v1109, 4294901760
      %1111 = vmatpush1.msra.mxu0 %v1110
      %1112 = vmatprep.subr.mxu0 0.0
      %v1113 = vand.u32 %v251, 4294901760
      %v1114 = vsub.f32 %v251, %v1113
      %v1115 = vand.u32 %v1114, 4294901760
      %v1116 = vsub.f32 %v1114, %v1115
      %v1117 = vand.u32 %v1116, 4294901760
      %1118 = vmatpush1.msra.mxu0 %v1117
      %1119 = vmatprep.subr.mxu0 0.0
      %v1120 = vand.u32 %v252, 4294901760
      %v1121 = vsub.f32 %v252, %v1120
      %v1122 = vand.u32 %v1121, 4294901760
      %v1123 = vsub.f32 %v1121, %v1122
      %v1124 = vand.u32 %v1123, 4294901760
      %1125 = vmatpush1.msra.mxu0 %v1124
      %1126 = vmatprep.subr.mxu0 0.0
      %v1127 = vand.u32 %v253, 4294901760
      %v1128 = vsub.f32 %v253, %v1127
      %v1129 = vand.u32 %v1128, 4294901760
      %v1130 = vsub.f32 %v1128, %v1129
      %v1131 = vand.u32 %v1130, 4294901760
      %1132 = vmatpush1.msra.mxu0 %v1131
      %1133 = vmatprep.subr.mxu0 0.0
      %v1134 = vand.u32 %v254, 4294901760
      %v1135 = vsub.f32 %v254, %v1134
      %v1136 = vand.u32 %v1135, 4294901760
      %v1137 = vsub.f32 %v1135, %v1136
      %v1138 = vand.u32 %v1137, 4294901760
      %1139 = vmatpush1.msra.mxu0 %v1138
      %1140 = vmatprep.subr.mxu0 0.0
      %v1141 = vand.u32 %v255, 4294901760
      %v1142 = vsub.f32 %v255, %v1141
      %v1143 = vand.u32 %v1142, 4294901760
      %v1144 = vsub.f32 %v1142, %v1143
      %v1145 = vand.u32 %v1144, 4294901760
      %1146 = vmatpush1.msra.mxu0 %v1145
      %1147 = vmatprep.subr.mxu0 0.0
      %v1148 = vand.u32 %v256, 4294901760
      %v1149 = vsub.f32 %v256, %v1148
      %v1150 = vand.u32 %v1149, 4294901760
      %v1151 = vsub.f32 %v1149, %v1150
      %v1152 = vand.u32 %v1151, 4294901760
      %1153 = vmatpush1.msra.mxu0 %v1152
      %1154 = vmatprep.subr.mxu0 0.0
      %v1155 = vand.u32 %v257, 4294901760
      %v1156 = vsub.f32 %v257, %v1155
      %v1157 = vand.u32 %v1156, 4294901760
      %v1158 = vsub.f32 %v1156, %v1157
      %v1159 = vand.u32 %v1158, 4294901760
      %1160 = vmatpush1.msra.mxu0 %v1159
      %1161 = vmatprep.subr.mxu0 0.0
      %v1162 = vand.u32 %v258, 4294901760
      %v1163 = vsub.f32 %v258, %v1162
      %v1164 = vand.u32 %v1163, 4294901760
      %v1165 = vsub.f32 %v1163, %v1164
      %v1166 = vand.u32 %v1165, 4294901760
      %1167 = vmatpush1.msra.mxu0 %v1166
      %1168 = vmatprep.subr.mxu0 0.0
      %v1169 = vand.u32 %v259, 4294901760
      %v1170 = vsub.f32 %v259, %v1169
      %v1171 = vand.u32 %v1170, 4294901760
      %v1172 = vsub.f32 %v1170, %v1171
      %v1173 = vand.u32 %v1172, 4294901760
      %1174 = vmatpush1.msra.mxu0 %v1173
      %1175 = vmatprep.subr.mxu0 0.0
      %v1176 = vand.u32 %v260, 4294901760
      %v1177 = vsub.f32 %v260, %v1176
      %v1178 = vand.u32 %v1177, 4294901760
      %v1179 = vsub.f32 %v1177, %v1178
      %v1180 = vand.u32 %v1179, 4294901760
      %1181 = vmatpush1.msra.mxu0 %v1180
      %1182 = vmatprep.subr.mxu0 0.0
      %1183 = vmatpush1.msra.mxu0 0.0
      %1184 = vmatprep.subr.mxu0 0.0
      %1185 = vmatpush1.msra.mxu0 0.0
      %1186 = vmatprep.subr.mxu0 0.0
      %1187 = vmatpush1.msra.mxu0 0.0
      %1188 = vmatprep.subr.mxu0 0.0
      %1189 = vmatpush1.msra.mxu0 0.0
      %1190 = vmatprep.subr.mxu0 0.0
      %1191 = vmatpush1.msra.mxu0 0.0
      %1192 = vmatprep.subr.mxu0 0.0
      %1193 = vmatpush1.msra.mxu0 0.0
      %1194 = vmatprep.subr.mxu0 0.0
      %1195 = vmatpush1.msra.mxu0 0.0
      %1196 = vmatprep.subr.mxu0 0.0
      %1197 = vmatpush1.msra.mxu0 0.0
      %1198 = vmatprep.subr.mxu0 0.0
      %1199 = vmatpush1.msra.mxu0 0.0
      %1200 = vmatprep.subr.mxu0 0.0
      %1201 = vmatpush1.msra.mxu0 0.0
      %1202 = vmatprep.subr.mxu0 0.0
      %1203 = vmatpush1.msra.mxu0 0.0
      %1204 = vmatprep.subr.mxu0 0.0
      %1205 = vmatpush1.msra.mxu0 0.0
      %1206 = vmatprep.subr.mxu0 0.0
      %1207 = vmatpush1.msra.mxu0 0.0
      %1208 = vmatprep.subr.mxu0 0.0
      %1209 = vmatpush1.msra.mxu0 0.0
      %1210 = vmatprep.subr.mxu0 0.0
      %1211 = vmatpush1.msra.mxu0 0.0
      %1212 = vmatprep.subr.mxu0 0.0
      %1213 = vmatpush1.msra.mxu0 0.0
      %1214 = vmatprep.mubr.f32.mxu0 0.0
      %v1215 = vand.u32 %v961, 4294901760
      %1216 = vmatmul.mubr.f32.gmra.mrb[0].mxu0 %v1215
      %v1217 = vpop.f32.mrb[0].mxu0
      %v1218 = vadd.f32 %v1057, %v1217
      %v1219 = vpop.f32.mrb[0].mxu0
      %1220 = vmatprep.mubr.f32.mxu0 0.0
      %v1221 = vand.u32 %v962, 4294901760
      %1222 = vmatmul.mubr.f32.gmra.mrb[0].mxu0 %v1221
      %v1223 = vpop.f32.mrb[0].mxu0
      %v1224 = vadd.f32 %v1067, %v1223
      %v1225 = vpop.f32.mrb[0].mxu0
      %1226 = vdwg.mxu0
      %1227 = vmatprep.subr.mxu0 0.0
      %v1228 = vand.u32 %v245, 4294901760
      %v1229 = vsub.f32 %v245, %v1228
      %1230 = vmatpush1.msra.mxu0 %v1229
      %1231 = vmatprep.subr.mxu0 0.0
      %v1232 = vand.u32 %v246, 4294901760
      %v1233 = vsub.f32 %v246, %v1232
      %1234 = vmatpush1.msra.mxu0 %v1233
      %1235 = vmatprep.subr.mxu0 0.0
      %v1236 = vand.u32 %v247, 4294901760
      %v1237 = vsub.f32 %v247, %v1236
      %1238 = vmatpush1.msra.mxu0 %v1237
      %1239 = vmatprep.subr.mxu0 0.0
      %v1240 = vand.u32 %v248, 4294901760
      %v1241 = vsub.f32 %v248, %v1240
      %1242 = vmatpush1.msra.mxu0 %v1241
      %1243 = vmatprep.subr.mxu0 0.0
      %v1244 = vand.u32 %v249, 4294901760
      %v1245 = vsub.f32 %v249, %v1244
      %1246 = vmatpush1.msra.mxu0 %v1245
      %1247 = vmatprep.subr.mxu0 0.0
      %v1248 = vand.u32 %v250, 4294901760
      %v1249 = vsub.f32 %v250, %v1248
      %1250 = vmatpush1.msra.mxu0 %v1249
      %1251 = vmatprep.subr.mxu0 0.0
      %v1252 = vand.u32 %v251, 4294901760
      %v1253 = vsub.f32 %v251, %v1252
      %1254 = vmatpush1.msra.mxu0 %v1253
      %1255 = vmatprep.subr.mxu0 0.0
      %v1256 = vand.u32 %v252, 4294901760
      %v1257 = vsub.f32 %v252, %v1256
      %1258 = vmatpush1.msra.mxu0 %v1257
      %1259 = vmatprep.subr.mxu0 0.0
      %v1260 = vand.u32 %v253, 4294901760
      %v1261 = vsub.f32 %v253, %v1260
      %1262 = vmatpush1.msra.mxu0 %v1261
      %1263 = vmatprep.subr.mxu0 0.0
      %v1264 = vand.u32 %v254, 4294901760
      %v1265 = vsub.f32 %v254, %v1264
      %1266 = vmatpush1.msra.mxu0 %v1265
      %1267 = vmatprep.subr.mxu0 0.0
      %v1268 = vand.u32 %v255, 4294901760
      %v1269 = vsub.f32 %v255, %v1268
      %1270 = vmatpush1.msra.mxu0 %v1269
      %1271 = vmatprep.subr.mxu0 0.0
      %v1272 = vand.u32 %v256, 4294901760
      %v1273 = vsub.f32 %v256, %v1272
      %1274 = vmatpush1.msra.mxu0 %v1273
      %1275 = vmatprep.subr.mxu0 0.0
      %v1276 = vand.u32 %v257, 4294901760
      %v1277 = vsub.f32 %v257, %v1276
      %1278 = vmatpush1.msra.mxu0 %v1277
      %1279 = vmatprep.subr.mxu0 0.0
      %v1280 = vand.u32 %v258, 4294901760
      %v1281 = vsub.f32 %v258, %v1280
      %1282 = vmatpush1.msra.mxu0 %v1281
      %1283 = vmatprep.subr.mxu0 0.0
      %v1284 = vand.u32 %v259, 4294901760
      %v1285 = vsub.f32 %v259, %v1284
      %1286 = vmatpush1.msra.mxu0 %v1285
      %1287 = vmatprep.subr.mxu0 0.0
      %v1288 = vand.u32 %v260, 4294901760
      %v1289 = vsub.f32 %v260, %v1288
      %1290 = vmatpush1.msra.mxu0 %v1289
      %1291 = vmatprep.subr.mxu0 0.0
      %1292 = vmatpush1.msra.mxu0 0.0
      %1293 = vmatprep.subr.mxu0 0.0
      %1294 = vmatpush1.msra.mxu0 0.0
      %1295 = vmatprep.subr.mxu0 0.0
      %1296 = vmatpush1.msra.mxu0 0.0
      %1297 = vmatprep.subr.mxu0 0.0
      %1298 = vmatpush1.msra.mxu0 0.0
      %1299 = vmatprep.subr.mxu0 0.0
      %1300 = vmatpush1.msra.mxu0 0.0
      %1301 = vmatprep.subr.mxu0 0.0
      %1302 = vmatpush1.msra.mxu0 0.0
      %1303 = vmatprep.subr.mxu0 0.0
      %1304 = vmatpush1.msra.mxu0 0.0
      %1305 = vmatprep.subr.mxu0 0.0
      %1306 = vmatpush1.msra.mxu0 0.0
      %1307 = vmatprep.subr.mxu0 0.0
      %1308 = vmatpush1.msra.mxu0 0.0
      %1309 = vmatprep.subr.mxu0 0.0
      %1310 = vmatpush1.msra.mxu0 0.0
      %1311 = vmatprep.subr.mxu0 0.0
      %1312 = vmatpush1.msra.mxu0 0.0
      %1313 = vmatprep.subr.mxu0 0.0
      %1314 = vmatpush1.msra.mxu0 0.0
      %1315 = vmatprep.subr.mxu0 0.0
      %1316 = vmatpush1.msra.mxu0 0.0
      %1317 = vmatprep.subr.mxu0 0.0
      %1318 = vmatpush1.msra.mxu0 0.0
      %1319 = vmatprep.subr.mxu0 0.0
      %1320 = vmatpush1.msra.mxu0 0.0
      %1321 = vmatprep.subr.mxu0 0.0
      %1322 = vmatpush1.msra.mxu0 0.0
      %1323 = vmatprep.mubr.f32.mxu0 0.0
      %v1324 = vand.u32 %v961, 4294901760
      %v1325 = vsub.f32 %v961, %v1324
      %1326 = vmatmul.mubr.f32.gmra.mrb[0].mxu0 %v1325
      %v1327 = vpop.f32.mrb[0].mxu0
      %v1328 = vadd.f32 %v1218, %v1327
      %v1329 = vpop.f32.mrb[0].mxu0
      %1330 = vmatprep.mubr.f32.mxu0 0.0
      %v1331 = vand.u32 %v962, 4294901760
      %v1332 = vsub.f32 %v962, %v1331
      %1333 = vmatmul.mubr.f32.gmra.mrb[0].mxu0 %v1332
      %v1334 = vpop.f32.mrb[0].mxu0
      %v1335 = vadd.f32 %v1224, %v1334
      %v1336 = vpop.f32.mrb[0].mxu0
      %1337 = vdwg.mxu0
      %1338 = vmatprep.subr.mxu0 0.0
      %v1339 = vand.u32 %v245, 4294901760
      %1340 = vmatpush1.msra.mxu0 %v1339
      %1341 = vmatprep.subr.mxu0 0.0
      %v1342 = vand.u32 %v246, 4294901760
      %1343 = vmatpush1.msra.mxu0 %v1342
      %1344 = vmatprep.subr.mxu0 0.0
      %v1345 = vand.u32 %v247, 4294901760
      %1346 = vmatpush1.msra.mxu0 %v1345
      %1347 = vmatprep.subr.mxu0 0.0
      %v1348 = vand.u32 %v248, 4294901760
      %1349 = vmatpush1.msra.mxu0 %v1348
      %1350 = vmatprep.subr.mxu0 0.0
      %v1351 = vand.u32 %v249, 4294901760
      %1352 = vmatpush1.msra.mxu0 %v1351
      %1353 = vmatprep.subr.mxu0 0.0
      %v1354 = vand.u32 %v250, 4294901760
      %1355 = vmatpush1.msra.mxu0 %v1354
      %1356 = vmatprep.subr.mxu0 0.0
      %v1357 = vand.u32 %v251, 4294901760
      %1358 = vmatpush1.msra.mxu0 %v1357
      %1359 = vmatprep.subr.mxu0 0.0
      %v1360 = vand.u32 %v252, 4294901760
      %1361 = vmatpush1.msra.mxu0 %v1360
      %1362 = vmatprep.subr.mxu0 0.0
      %v1363 = vand.u32 %v253, 4294901760
      %1364 = vmatpush1.msra.mxu0 %v1363
      %1365 = vmatprep.subr.mxu0 0.0
      %v1366 = vand.u32 %v254, 4294901760
      %1367 = vmatpush1.msra.mxu0 %v1366
      %1368 = vmatprep.subr.mxu0 0.0
      %v1369 = vand.u32 %v255, 4294901760
      %1370 = vmatpush1.msra.mxu0 %v1369
      %1371 = vmatprep.subr.mxu0 0.0
      %v1372 = vand.u32 %v256, 4294901760
      %1373 = vmatpush1.msra.mxu0 %v1372
      %1374 = vmatprep.subr.mxu0 0.0
      %v1375 = vand.u32 %v257, 4294901760
      %1376 = vmatpush1.msra.mxu0 %v1375
      %1377 = vmatprep.subr.mxu0 0.0
      %v1378 = vand.u32 %v258, 4294901760
      %1379 = vmatpush1.msra.mxu0 %v1378
      %1380 = vmatprep.subr.mxu0 0.0
      %v1381 = vand.u32 %v259, 4294901760
      %1382 = vmatpush1.msra.mxu0 %v1381
      %1383 = vmatprep.subr.mxu0 0.0
      %v1384 = vand.u32 %v260, 4294901760
      %1385 = vmatpush1.msra.mxu0 %v1384
      %1386 = vmatprep.subr.mxu0 0.0
      %1387 = vmatpush1.msra.mxu0 0.0
      %1388 = vmatprep.subr.mxu0 0.0
      %1389 = vmatpush1.msra.mxu0 0.0
      %1390 = vmatprep.subr.mxu0 0.0
      %1391 = vmatpush1.msra.mxu0 0.0
      %1392 = vmatprep.subr.mxu0 0.0
      %1393 = vmatpush1.msra.mxu0 0.0
      %1394 = vmatprep.subr.mxu0 0.0
      %1395 = vmatpush1.msra.mxu0 0.0
      %1396 = vmatprep.subr.mxu0 0.0
      %1397 = vmatpush1.msra.mxu0 0.0
      %1398 = vmatprep.subr.mxu0 0.0
      %1399 = vmatpush1.msra.mxu0 0.0
      %1400 = vmatprep.subr.mxu0 0.0
      %1401 = vmatpush1.msra.mxu0 0.0
      %1402 = vmatprep.subr.mxu0 0.0
      %1403 = vmatpush1.msra.mxu0 0.0
      %1404 = vmatprep.subr.mxu0 0.0
      %1405 = vmatpush1.msra.mxu0 0.0
      %1406 = vmatprep.subr.mxu0 0.0
      %1407 = vmatpush1.msra.mxu0 0.0
      %1408 = vmatprep.subr.mxu0 0.0
      %1409 = vmatpush1.msra.mxu0 0.0
      %1410 = vmatprep.subr.mxu0 0.0
      %1411 = vmatpush1.msra.mxu0 0.0
      %1412 = vmatprep.subr.mxu0 0.0
      %1413 = vmatpush1.msra.mxu0 0.0
      %1414 = vmatprep.subr.mxu0 0.0
      %1415 = vmatpush1.msra.mxu0 0.0
      %1416 = vmatprep.subr.mxu0 0.0
      %1417 = vmatpush1.msra.mxu0 0.0
      %1418 = vmatprep.mubr.f32.mxu0 0.0
      %v1419 = vand.u32 %v961, 4294901760
      %v1420 = vsub.f32 %v961, %v1419
      %v1421 = vand.u32 %v1420, 4294901760
      %1422 = vmatmul.mubr.f32.gmra.mrb[0].mxu0 %v1421
      %v1423 = vpop.f32.mrb[0].mxu0
      %v1424 = vadd.f32 %v1328, %v1423
      %v1425 = vpop.f32.mrb[0].mxu0
      %1426 = vmatprep.mubr.f32.mxu0 0.0
      %v1427 = vand.u32 %v962, 4294901760
      %v1428 = vsub.f32 %v962, %v1427
      %v1429 = vand.u32 %v1428, 4294901760
      %1430 = vmatmul.mubr.f32.gmra.mrb[0].mxu0 %v1429
      %v1431 = vpop.f32.mrb[0].mxu0
      %v1432 = vadd.f32 %v1335, %v1431
      %v1433 = vpop.f32.mrb[0].mxu0
      %1434 = vdwg.mxu0
      %1435 = vmatprep.subr.mxu0 0.0
      %v1436 = vand.u32 %v245, 4294901760
      %v1437 = vsub.f32 %v245, %v1436
      %v1438 = vand.u32 %v1437, 4294901760
      %1439 = vmatpush1.msra.mxu0 %v1438
      %1440 = vmatprep.subr.mxu0 0.0
      %v1441 = vand.u32 %v246, 4294901760
      %v1442 = vsub.f32 %v246, %v1441
      %v1443 = vand.u32 %v1442, 4294901760
      %1444 = vmatpush1.msra.mxu0 %v1443
      %1445 = vmatprep.subr.mxu0 0.0
      %v1446 = vand.u32 %v247, 4294901760
      %v1447 = vsub.f32 %v247, %v1446
      %v1448 = vand.u32 %v1447, 4294901760
      %1449 = vmatpush1.msra.mxu0 %v1448
      %1450 = vmatprep.subr.mxu0 0.0
      %v1451 = vand.u32 %v248, 4294901760
      %v1452 = vsub.f32 %v248, %v1451
      %v1453 = vand.u32 %v1452, 4294901760
      %1454 = vmatpush1.msra.mxu0 %v1453
      %1455 = vmatprep.subr.mxu0 0.0
      %v1456 = vand.u32 %v249, 4294901760
      %v1457 = vsub.f32 %v249, %v1456
      %v1458 = vand.u32 %v1457, 4294901760
      %1459 = vmatpush1.msra.mxu0 %v1458
      %1460 = vmatprep.subr.mxu0 0.0
      %v1461 = vand.u32 %v250, 4294901760
      %v1462 = vsub.f32 %v250, %v1461
      %v1463 = vand.u32 %v1462, 4294901760
      %1464 = vmatpush1.msra.mxu0 %v1463
      %1465 = vmatprep.subr.mxu0 0.0
      %v1466 = vand.u32 %v251, 4294901760
      %v1467 = vsub.f32 %v251, %v1466
      %v1468 = vand.u32 %v1467, 4294901760
      %1469 = vmatpush1.msra.mxu0 %v1468
      %1470 = vmatprep.subr.mxu0 0.0
      %v1471 = vand.u32 %v252, 4294901760
      %v1472 = vsub.f32 %v252, %v1471
      %v1473 = vand.u32 %v1472, 4294901760
      %1474 = vmatpush1.msra.mxu0 %v1473
      %1475 = vmatprep.subr.mxu0 0.0
      %v1476 = vand.u32 %v253, 4294901760
      %v1477 = vsub.f32 %v253, %v1476
      %v1478 = vand.u32 %v1477, 4294901760
      %1479 = vmatpush1.msra.mxu0 %v1478
      %1480 = vmatprep.subr.mxu0 0.0
      %v1481 = vand.u32 %v254, 4294901760
      %v1482 = vsub.f32 %v254, %v1481
      %v1483 = vand.u32 %v1482, 4294901760
      %1484 = vmatpush1.msra.mxu0 %v1483
      %1485 = vmatprep.subr.mxu0 0.0
      %v1486 = vand.u32 %v255, 4294901760
      %v1487 = vsub.f32 %v255, %v1486
      %v1488 = vand.u32 %v1487, 4294901760
      %1489 = vmatpush1.msra.mxu0 %v1488
      %1490 = vmatprep.subr.mxu0 0.0
      %v1491 = vand.u32 %v256, 4294901760
      %v1492 = vsub.f32 %v256, %v1491
      %v1493 = vand.u32 %v1492, 4294901760
      %1494 = vmatpush1.msra.mxu0 %v1493
      %1495 = vmatprep.subr.mxu0 0.0
      %v1496 = vand.u32 %v257, 4294901760
      %v1497 = vsub.f32 %v257, %v1496
      %v1498 = vand.u32 %v1497, 4294901760
      %1499 = vmatpush1.msra.mxu0 %v1498
      %1500 = vmatprep.subr.mxu0 0.0
      %v1501 = vand.u32 %v258, 4294901760
      %v1502 = vsub.f32 %v258, %v1501
      %v1503 = vand.u32 %v1502, 4294901760
      %1504 = vmatpush1.msra.mxu0 %v1503
      %1505 = vmatprep.subr.mxu0 0.0
      %v1506 = vand.u32 %v259, 4294901760
      %v1507 = vsub.f32 %v259, %v1506
      %v1508 = vand.u32 %v1507, 4294901760
      %1509 = vmatpush1.msra.mxu0 %v1508
      %1510 = vmatprep.subr.mxu0 0.0
      %v1511 = vand.u32 %v260, 4294901760
      %v1512 = vsub.f32 %v260, %v1511
      %v1513 = vand.u32 %v1512, 4294901760
      %1514 = vmatpush1.msra.mxu0 %v1513
      %1515 = vmatprep.subr.mxu0 0.0
      %1516 = vmatpush1.msra.mxu0 0.0
      %1517 = vmatprep.subr.mxu0 0.0
      %1518 = vmatpush1.msra.mxu0 0.0
      %1519 = vmatprep.subr.mxu0 0.0
      %1520 = vmatpush1.msra.mxu0 0.0
      %1521 = vmatprep.subr.mxu0 0.0
      %1522 = vmatpush1.msra.mxu0 0.0
      %1523 = vmatprep.subr.mxu0 0.0
      %1524 = vmatpush1.msra.mxu0 0.0
      %1525 = vmatprep.subr.mxu0 0.0
      %1526 = vmatpush1.msra.mxu0 0.0
      %1527 = vmatprep.subr.mxu0 0.0
      %1528 = vmatpush1.msra.mxu0 0.0
      %1529 = vmatprep.subr.mxu0 0.0
      %1530 = vmatpush1.msra.mxu0 0.0
      %1531 = vmatprep.subr.mxu0 0.0
      %1532 = vmatpush1.msra.mxu0 0.0
      %1533 = vmatprep.subr.mxu0 0.0
      %1534 = vmatpush1.msra.mxu0 0.0
      %1535 = vmatprep.subr.mxu0 0.0
      %1536 = vmatpush1.msra.mxu0 0.0
      %1537 = vmatprep.subr.mxu0 0.0
      %1538 = vmatpush1.msra.mxu0 0.0
      %1539 = vmatprep.subr.mxu0 0.0
      %1540 = vmatpush1.msra.mxu0 0.0
      %1541 = vmatprep.subr.mxu0 0.0
      %1542 = vmatpush1.msra.mxu0 0.0
      %1543 = vmatprep.subr.mxu0 0.0
      %1544 = vmatpush1.msra.mxu0 0.0
      %1545 = vmatprep.subr.mxu0 0.0
      %1546 = vmatpush1.msra.mxu0 0.0
      %1547 = vmatprep.mubr.f32.mxu0 0.0
      %v1548 = vand.u32 %v961, 4294901760
      %1549 = vmatmul.mubr.f32.gmra.mrb[0].mxu0 %v1548
      %v1550 = vpop.f32.mrb[0].mxu0
      %v1551 = vadd.f32 %v1424, %v1550
      %v1552 = vpop.f32.mrb[0].mxu0
      %1553 = vmatprep.mubr.f32.mxu0 0.0
      %v1554 = vand.u32 %v962, 4294901760
      %1555 = vmatmul.mubr.f32.gmra.mrb[0].mxu0 %v1554
      %v1556 = vpop.f32.mrb[0].mxu0
      %v1557 = vadd.f32 %v1432, %v1556
      %v1558 = vpop.f32.mrb[0].mxu0
      %1559 = vdwg.mxu0
      %1560 = vmatprep.subr.mxu0 0.0
      %v1561 = vand.u32 %v245, 4294901760
      %1562 = vmatpush1.msra.mxu0 %v1561
      %1563 = vmatprep.subr.mxu0 0.0
      %v1564 = vand.u32 %v246, 4294901760
      %1565 = vmatpush1.msra.mxu0 %v1564
      %1566 = vmatprep.subr.mxu0 0.0
      %v1567 = vand.u32 %v247, 4294901760
      %1568 = vmatpush1.msra.mxu0 %v1567
      %1569 = vmatprep.subr.mxu0 0.0
      %v1570 = vand.u32 %v248, 4294901760
      %1571 = vmatpush1.msra.mxu0 %v1570
      %1572 = vmatprep.subr.mxu0 0.0
      %v1573 = vand.u32 %v249, 4294901760
      %1574 = vmatpush1.msra.mxu0 %v1573
      %1575 = vmatprep.subr.mxu0 0.0
      %v1576 = vand.u32 %v250, 4294901760
      %1577 = vmatpush1.msra.mxu0 %v1576
      %1578 = vmatprep.subr.mxu0 0.0
      %v1579 = vand.u32 %v251, 4294901760
      %1580 = vmatpush1.msra.mxu0 %v1579
      %1581 = vmatprep.subr.mxu0 0.0
      %v1582 = vand.u32 %v252, 4294901760
      %1583 = vmatpush1.msra.mxu0 %v1582
      %1584 = vmatprep.subr.mxu0 0.0
      %v1585 = vand.u32 %v253, 4294901760
      %1586 = vmatpush1.msra.mxu0 %v1585
      %1587 = vmatprep.subr.mxu0 0.0
      %v1588 = vand.u32 %v254, 4294901760
      %1589 = vmatpush1.msra.mxu0 %v1588
      %1590 = vmatprep.subr.mxu0 0.0
      %v1591 = vand.u32 %v255, 4294901760
      %1592 = vmatpush1.msra.mxu0 %v1591
      %1593 = vmatprep.subr.mxu0 0.0
      %v1594 = vand.u32 %v256, 4294901760
      %1595 = vmatpush1.msra.mxu0 %v1594
      %1596 = vmatprep.subr.mxu0 0.0
      %v1597 = vand.u32 %v257, 4294901760
      %1598 = vmatpush1.msra.mxu0 %v1597
      %1599 = vmatprep.subr.mxu0 0.0
      %v1600 = vand.u32 %v258, 4294901760
      %1601 = vmatpush1.msra.mxu0 %v1600
      %1602 = vmatprep.subr.mxu0 0.0
      %v1603 = vand.u32 %v259, 4294901760
      %1604 = vmatpush1.msra.mxu0 %v1603
      %1605 = vmatprep.subr.mxu0 0.0
      %v1606 = vand.u32 %v260, 4294901760
      %1607 = vmatpush1.msra.mxu0 %v1606
      %1608 = vmatprep.subr.mxu0 0.0
      %1609 = vmatpush1.msra.mxu0 0.0
      %1610 = vmatprep.subr.mxu0 0.0
      %1611 = vmatpush1.msra.mxu0 0.0
      %1612 = vmatprep.subr.mxu0 0.0
      %1613 = vmatpush1.msra.mxu0 0.0
      %1614 = vmatprep.subr.mxu0 0.0
      %1615 = vmatpush1.msra.mxu0 0.0
      %1616 = vmatprep.subr.mxu0 0.0
      %1617 = vmatpush1.msra.mxu0 0.0
      %1618 = vmatprep.subr.mxu0 0.0
      %1619 = vmatpush1.msra.mxu0 0.0
      %1620 = vmatprep.subr.mxu0 0.0
      %1621 = vmatpush1.msra.mxu0 0.0
      %1622 = vmatprep.subr.mxu0 0.0
      %1623 = vmatpush1.msra.mxu0 0.0
      %1624 = vmatprep.subr.mxu0 0.0
      %1625 = vmatpush1.msra.mxu0 0.0
      %1626 = vmatprep.subr.mxu0 0.0
      %1627 = vmatpush1.msra.mxu0 0.0
      %1628 = vmatprep.subr.mxu0 0.0
      %1629 = vmatpush1.msra.mxu0 0.0
      %1630 = vmatprep.subr.mxu0 0.0
      %1631 = vmatpush1.msra.mxu0 0.0
      %1632 = vmatprep.subr.mxu0 0.0
      %1633 = vmatpush1.msra.mxu0 0.0
      %1634 = vmatprep.subr.mxu0 0.0
      %1635 = vmatpush1.msra.mxu0 0.0
      %1636 = vmatprep.subr.mxu0 0.0
      %1637 = vmatpush1.msra.mxu0 0.0
      %1638 = vmatprep.subr.mxu0 0.0
      %1639 = vmatpush1.msra.mxu0 0.0
      %1640 = vmatprep.mubr.f32.mxu0 0.0
      %v1641 = vand.u32 %v961, 4294901760
      %1642 = vmatmul.mubr.f32.gmra.mrb[0].mxu0 %v1641
      %v1643 = vpop.f32.mrb[0].mxu0
      %v1644 = vadd.f32 %v1551, %v1643
      %v1645 = vpop.f32.mrb[0].mxu0
      %1646 = vmatprep.mubr.f32.mxu0 0.0
      %v1647 = vand.u32 %v962, 4294901760
      %1648 = vmatmul.mubr.f32.gmra.mrb[0].mxu0 %v1647
      %v1649 = vpop.f32.mrb[0].mxu0
      %v1650 = vadd.f32 %v1557, %v1649
      %v1651 = vpop.f32.mrb[0].mxu0
      %1652 = vdwg.mxu0
      %v1653 = vmax.f32 %v1644, 0.0
      %v1654 = vmax.f32 %v1650, 0.0
      %v1655 = vld [vmem:[%s3] sm:$0xff]
      %v1656 = vld [vmem:[%s3 + $0x8] sm:$0xff]
      %v1657 = vld [vmem:[%s3 + $0x10] sm:$0xff]
      %v1658 = vld [vmem:[%s3 + $0x18] sm:$0xff]
      %v1659 = vld [vmem:[%s3 + $0x20] sm:$0xff]
      %v1660 = vld [vmem:[%s3 + $0x28] sm:$0xff]
      %v1661 = vld [vmem:[%s3 + $0x30] sm:$0xff]
      %v1662 = vld [vmem:[%s3 + $0x38] sm:$0xff]
      %v1663 = vld [vmem:[%s3 + $0x40] sm:$0xff]
      %v1664 = vld [vmem:[%s3 + $0x48] sm:$0xff]
      %v1665 = vld [vmem:[%s3 + $0x50] sm:$0xff]
      %v1666 = vld [vmem:[%s3 + $0x58] sm:$0xff]
      %v1667 = vld [vmem:[%s3 + $0x60] sm:$0xff]
      %v1668 = vld [vmem:[%s3 + $0x68] sm:$0xff]
      %v1669 = vld [vmem:[%s3 + $0x70] sm:$0xff]
      %v1670 = vld [vmem:[%s3 + $0x78] sm:$0xff]
      %1671 = vmatprep.subr.mxu0 0.0
      %v1672 = vand.u32 %v1655, 4294901760
      %1673 = vmatpush1.msra.mxu0 %v1672
      %1674 = vmatprep.subr.mxu0 0.0
      %v1675 = vand.u32 %v1656, 4294901760
      %1676 = vmatpush1.msra.mxu0 %v1675
      %1677 = vmatprep.subr.mxu0 0.0
      %v1678 = vand.u32 %v1657, 4294901760
      %1679 = vmatpush1.msra.mxu0 %v1678
      %1680 = vmatprep.subr.mxu0 0.0
      %v1681 = vand.u32 %v1658, 4294901760
      %1682 = vmatpush1.msra.mxu0 %v1681
      %1683 = vmatprep.subr.mxu0 0.0
      %v1684 = vand.u32 %v1659, 4294901760
      %1685 = vmatpush1.msra.mxu0 %v1684
      %1686 = vmatprep.subr.mxu0 0.0
      %v1687 = vand.u32 %v1660, 4294901760
      %1688 = vmatpush1.msra.mxu0 %v1687
      %1689 = vmatprep.subr.mxu0 0.0
      %v1690 = vand.u32 %v1661, 4294901760
      %1691 = vmatpush1.msra.mxu0 %v1690
      %1692 = vmatprep.subr.mxu0 0.0
      %v1693 = vand.u32 %v1662, 4294901760
      %1694 = vmatpush1.msra.mxu0 %v1693
      %1695 = vmatprep.subr.mxu0 0.0
      %v1696 = vand.u32 %v1663, 4294901760
      %1697 = vmatpush1.msra.mxu0 %v1696
      %1698 = vmatprep.subr.mxu0 0.0
      %v1699 = vand.u32 %v1664, 4294901760
      %1700 = vmatpush1.msra.mxu0 %v1699
      %1701 = vmatprep.subr.mxu0 0.0
      %v1702 = vand.u32 %v1665, 4294901760
      %1703 = vmatpush1.msra.mxu0 %v1702
      %1704 = vmatprep.subr.mxu0 0.0
      %v1705 = vand.u32 %v1666, 4294901760
      %1706 = vmatpush1.msra.mxu0 %v1705
      %1707 = vmatprep.subr.mxu0 0.0
      %v1708 = vand.u32 %v1667, 4294901760
      %1709 = vmatpush1.msra.mxu0 %v1708
      %1710 = vmatprep.subr.mxu0 0.0
      %v1711 = vand.u32 %v1668, 4294901760
      %1712 = vmatpush1.msra.mxu0 %v1711
      %1713 = vmatprep.subr.mxu0 0.0
      %v1714 = vand.u32 %v1669, 4294901760
      %1715 = vmatpush1.msra.mxu0 %v1714
      %1716 = vmatprep.subr.mxu0 0.0
      %v1717 = vand.u32 %v1670, 4294901760
      %1718 = vmatpush1.msra.mxu0 %v1717
      %1719 = vmatprep.subr.mxu0 0.0
      %1720 = vmatpush1.msra.mxu0 0.0
      %1721 = vmatprep.subr.mxu0 0.0
      %1722 = vmatpush1.msra.mxu0 0.0
      %1723 = vmatprep.subr.mxu0 0.0
      %1724 = vmatpush1.msra.mxu0 0.0
      %1725 = vmatprep.subr.mxu0 0.0
      %1726 = vmatpush1.msra.mxu0 0.0
      %1727 = vmatprep.subr.mxu0 0.0
      %1728 = vmatpush1.msra.mxu0 0.0
      %1729 = vmatprep.subr.mxu0 0.0
      %1730 = vmatpush1.msra.mxu0 0.0
      %1731 = vmatprep.subr.mxu0 0.0
      %1732 = vmatpush1.msra.mxu0 0.0
      %1733 = vmatprep.subr.mxu0 0.0
      %1734 = vmatpush1.msra.mxu0 0.0
      %1735 = vmatprep.subr.mxu0 0.0
      %1736 = vmatpush1.msra.mxu0 0.0
      %1737 = vmatprep.subr.mxu0 0.0
      %1738 = vmatpush1.msra.mxu0 0.0
      %1739 = vmatprep.subr.mxu0 0.0
      %1740 = vmatpush1.msra.mxu0 0.0
      %1741 = vmatprep.subr.mxu0 0.0
      %1742 = vmatpush1.msra.mxu0 0.0
      %1743 = vmatprep.subr.mxu0 0.0
      %1744 = vmatpush1.msra.mxu0 0.0
      %1745 = vmatprep.subr.mxu0 0.0
      %1746 = vmatpush1.msra.mxu0 0.0
      %1747 = vmatprep.subr.mxu0 0.0
      %1748 = vmatpush1.msra.mxu0 0.0
      %1749 = vmatprep.subr.mxu0 0.0
      %1750 = vmatpush1.msra.mxu0 0.0
      %1751 = vmatprep.mubr.f32.mxu0 0.0
      %v1752 = vand.u32 %v1653, 4294901760
      %v1753 = vsub.f32 %v1653, %v1752
      %v1754 = vand.u32 %v1753, 4294901760
      %v1755 = vsub.f32 %v1753, %v1754
      %v1756 = vand.u32 %v1755, 4294901760
      %1757 = vmatmul.mubr.f32.gmra.mrb[0].mxu0 %v1756
      %v1758 = vpop.f32.mrb[0].mxu0
      %v1759 = vadd.f32 0.0, %v1758
      %v1760 = vpop.f32.mrb[0].mxu0
      %1761 = vmatprep.mubr.f32.mxu0 0.0
      %v1762 = vand.u32 %v1654, 4294901760
      %v1763 = vsub.f32 %v1654, %v1762
      %v1764 = vand.u32 %v1763, 4294901760
      %v1765 = vsub.f32 %v1763, %v1764
      %v1766 = vand.u32 %v1765, 4294901760
      %1767 = vmatmul.mubr.f32.gmra.mrb[0].mxu0 %v1766
      %v1768 = vpop.f32.mrb[0].mxu0
      %v1769 = vadd.f32 0.0, %v1768
      %v1770 = vpop.f32.mrb[0].mxu0
      %1771 = vdwg.mxu0
      %1772 = vmatprep.subr.mxu0 0.0
      %v1773 = vand.u32 %v1655, 4294901760
      %v1774 = vsub.f32 %v1655, %v1773
      %v1775 = vand.u32 %v1774, 4294901760
      %v1776 = vsub.f32 %v1774, %v1775
      %v1777 = vand.u32 %v1776, 4294901760
      %1778 = vmatpush1.msra.mxu0 %v1777
      %1779 = vmatprep.subr.mxu0 0.0
      %v1780 = vand.u32 %v1656, 4294901760
      %v1781 = vsub.f32 %v1656, %v1780
      %v1782 = vand.u32 %v1781, 4294901760
      %v1783 = vsub.f32 %v1781, %v1782
      %v1784 = vand.u32 %v1783, 4294901760
      %1785 = vmatpush1.msra.mxu0 %v1784
      %1786 = vmatprep.subr.mxu0 0.0
      %v1787 = vand.u32 %v1657, 4294901760
      %v1788 = vsub.f32 %v1657, %v1787
      %v1789 = vand.u32 %v1788, 4294901760
      %v1790 = vsub.f32 %v1788, %v1789
      %v1791 = vand.u32 %v1790, 4294901760
      %1792 = vmatpush1.msra.mxu0 %v1791
      %1793 = vmatprep.subr.mxu0 0.0
      %v1794 = vand.u32 %v1658, 4294901760
      %v1795 = vsub.f32 %v1658, %v1794
      %v1796 = vand.u32 %v1795, 4294901760
      %v1797 = vsub.f32 %v1795, %v1796
      %v1798 = vand.u32 %v1797, 4294901760
      %1799 = vmatpush1.msra.mxu0 %v1798
      %1800 = vmatprep.subr.mxu0 0.0
      %v1801 = vand.u32 %v1659, 4294901760
      %v1802 = vsub.f32 %v1659, %v1801
      %v1803 = vand.u32 %v1802, 4294901760
      %v1804 = vsub.f32 %v1802, %v1803
      %v1805 = vand.u32 %v1804, 4294901760
      %1806 = vmatpush1.msra.mxu0 %v1805
      %1807 = vmatprep.subr.mxu0 0.0
      %v1808 = vand.u32 %v1660, 4294901760
      %v1809 = vsub.f32 %v1660, %v1808
      %v1810 = vand.u32 %v1809, 4294901760
      %v1811 = vsub.f32 %v1809, %v1810
      %v1812 = vand.u32 %v1811, 4294901760
      %1813 = vmatpush1.msra.mxu0 %v1812
      %1814 = vmatprep.subr.mxu0 0.0
      %v1815 = vand.u32 %v1661, 4294901760
      %v1816 = vsub.f32 %v1661, %v1815
      %v1817 = vand.u32 %v1816, 4294901760
      %v1818 = vsub.f32 %v1816, %v1817
      %v1819 = vand.u32 %v1818, 4294901760
      %1820 = vmatpush1.msra.mxu0 %v1819
      %1821 = vmatprep.subr.mxu0 0.0
      %v1822 = vand.u32 %v1662, 4294901760
      %v1823 = vsub.f32 %v1662, %v1822
      %v1824 = vand.u32 %v1823, 4294901760
      %v1825 = vsub.f32 %v1823, %v1824
      %v1826 = vand.u32 %v1825, 4294901760
      %1827 = vmatpush1.msra.mxu0 %v1826
      %1828 = vmatprep.subr.mxu0 0.0
      %v1829 = vand.u32 %v1663, 4294901760
      %v1830 = vsub.f32 %v1663, %v1829
      %v1831 = vand.u32 %v1830, 4294901760
      %v1832 = vsub.f32 %v1830, %v1831
      %v1833 = vand.u32 %v1832, 4294901760
      %1834 = vmatpush1.msra.mxu0 %v1833
      %1835 = vmatprep.subr.mxu0 0.0
      %v1836 = vand.u32 %v1664, 4294901760
      %v1837 = vsub.f32 %v1664, %v1836
      %v1838 = vand.u32 %v1837, 4294901760
      %v1839 = vsub.f32 %v1837, %v1838
      %v1840 = vand.u32 %v1839, 4294901760
      %1841 = vmatpush1.msra.mxu0 %v1840
      %1842 = vmatprep.subr.mxu0 0.0
      %v1843 = vand.u32 %v1665, 4294901760
      %v1844 = vsub.f32 %v1665, %v1843
      %v1845 = vand.u32 %v1844, 4294901760
      %v1846 = vsub.f32 %v1844, %v1845
      %v1847 = vand.u32 %v1846, 4294901760
      %1848 = vmatpush1.msra.mxu0 %v1847
      %1849 = vmatprep.subr.mxu0 0.0
      %v1850 = vand.u32 %v1666, 4294901760
      %v1851 = vsub.f32 %v1666, %v1850
      %v1852 = vand.u32 %v1851, 4294901760
      %v1853 = vsub.f32 %v1851, %v1852
      %v1854 = vand.u32 %v1853, 4294901760
      %1855 = vmatpush1.msra.mxu0 %v1854
      %1856 = vmatprep.subr.mxu0 0.0
      %v1857 = vand.u32 %v1667, 4294901760
      %v1858 = vsub.f32 %v1667, %v1857
      %v1859 = vand.u32 %v1858, 4294901760
      %v1860 = vsub.f32 %v1858, %v1859
      %v1861 = vand.u32 %v1860, 4294901760
      %1862 = vmatpush1.msra.mxu0 %v1861
      %1863 = vmatprep.subr.mxu0 0.0
      %v1864 = vand.u32 %v1668, 4294901760
      %v1865 = vsub.f32 %v1668, %v1864
      %v1866 = vand.u32 %v1865, 4294901760
      %v1867 = vsub.f32 %v1865, %v1866
      %v1868 = vand.u32 %v1867, 4294901760
      %1869 = vmatpush1.msra.mxu0 %v1868
      %1870 = vmatprep.subr.mxu0 0.0
      %v1871 = vand.u32 %v1669, 4294901760
      %v1872 = vsub.f32 %v1669, %v1871
      %v1873 = vand.u32 %v1872, 4294901760
      %v1874 = vsub.f32 %v1872, %v1873
      %v1875 = vand.u32 %v1874, 4294901760
      %1876 = vmatpush1.msra.mxu0 %v1875
      %1877 = vmatprep.subr.mxu0 0.0
      %v1878 = vand.u32 %v1670, 4294901760
      %v1879 = vsub.f32 %v1670, %v1878
      %v1880 = vand.u32 %v1879, 4294901760
      %v1881 = vsub.f32 %v1879, %v1880
      %v1882 = vand.u32 %v1881, 4294901760
      %1883 = vmatpush1.msra.mxu0 %v1882
      %1884 = vmatprep.subr.mxu0 0.0
      %1885 = vmatpush1.msra.mxu0 0.0
      %1886 = vmatprep.subr.mxu0 0.0
      %1887 = vmatpush1.msra.mxu0 0.0
      %1888 = vmatprep.subr.mxu0 0.0
      %1889 = vmatpush1.msra.mxu0 0.0
      %1890 = vmatprep.subr.mxu0 0.0
      %1891 = vmatpush1.msra.mxu0 0.0
      %1892 = vmatprep.subr.mxu0 0.0
      %1893 = vmatpush1.msra.mxu0 0.0
      %1894 = vmatprep.subr.mxu0 0.0
      %1895 = vmatpush1.msra.mxu0 0.0
      %1896 = vmatprep.subr.mxu0 0.0
      %1897 = vmatpush1.msra.mxu0 0.0
      %1898 = vmatprep.subr.mxu0 0.0
      %1899 = vmatpush1.msra.mxu0 0.0
      %1900 = vmatprep.subr.mxu0 0.0
      %1901 = vmatpush1.msra.mxu0 0.0
      %1902 = vmatprep.subr.mxu0 0.0
      %1903 = vmatpush1.msra.mxu0 0.0
      %1904 = vmatprep.subr.mxu0 0.0
      %1905 = vmatpush1.msra.mxu0 0.0
      %1906 = vmatprep.subr.mxu0 0.0
      %1907 = vmatpush1.msra.mxu0 0.0
      %1908 = vmatprep.subr.mxu0 0.0
      %1909 = vmatpush1.msra.mxu0 0.0
      %1910 = vmatprep.subr.mxu0 0.0
      %1911 = vmatpush1.msra.mxu0 0.0
      %1912 = vmatprep.subr.mxu0 0.0
      %1913 = vmatpush1.msra.mxu0 0.0
      %1914 = vmatprep.subr.mxu0 0.0
      %1915 = vmatpush1.msra.mxu0 0.0
      %1916 = vmatprep.mubr.f32.mxu0 0.0
      %v1917 = vand.u32 %v1653, 4294901760
      %1918 = vmatmul.mubr.f32.gmra.mrb[0].mxu0 %v1917
      %v1919 = vpop.f32.mrb[0].mxu0
      %v1920 = vadd.f32 %v1759, %v1919
      %v1921 = vpop.f32.mrb[0].mxu0
      %1922 = vmatprep.mubr.f32.mxu0 0.0
      %v1923 = vand.u32 %v1654, 4294901760
      %1924 = vmatmul.mubr.f32.gmra.mrb[0].mxu0 %v1923
      %v1925 = vpop.f32.mrb[0].mxu0
      %v1926 = vadd.f32 %v1769, %v1925
      %v1927 = vpop.f32.mrb[0].mxu0
      %1928 = vdwg.mxu0
      %1929 = vmatprep.subr.mxu0 0.0
      %v1930 = vand.u32 %v1655, 4294901760
      %v1931 = vsub.f32 %v1655, %v1930
      %1932 = vmatpush1.msra.mxu0 %v1931
      %1933 = vmatprep.subr.mxu0 0.0
      %v1934 = vand.u32 %v1656, 4294901760
      %v1935 = vsub.f32 %v1656, %v1934
      %1936 = vmatpush1.msra.mxu0 %v1935
      %1937 = vmatprep.subr.mxu0 0.0
      %v1938 = vand.u32 %v1657, 4294901760
      %v1939 = vsub.f32 %v1657, %v1938
      %1940 = vmatpush1.msra.mxu0 %v1939
      %1941 = vmatprep.subr.mxu0 0.0
      %v1942 = vand.u32 %v1658, 4294901760
      %v1943 = vsub.f32 %v1658, %v1942
      %1944 = vmatpush1.msra.mxu0 %v1943
      %1945 = vmatprep.subr.mxu0 0.0
      %v1946 = vand.u32 %v1659, 4294901760
      %v1947 = vsub.f32 %v1659, %v1946
      %1948 = vmatpush1.msra.mxu0 %v1947
      %1949 = vmatprep.subr.mxu0 0.0
      %v1950 = vand.u32 %v1660, 4294901760
      %v1951 = vsub.f32 %v1660, %v1950
      %1952 = vmatpush1.msra.mxu0 %v1951
      %1953 = vmatprep.subr.mxu0 0.0
      %v1954 = vand.u32 %v1661, 4294901760
      %v1955 = vsub.f32 %v1661, %v1954
      %1956 = vmatpush1.msra.mxu0 %v1955
      %1957 = vmatprep.subr.mxu0 0.0
      %v1958 = vand.u32 %v1662, 4294901760
      %v1959 = vsub.f32 %v1662, %v1958
      %1960 = vmatpush1.msra.mxu0 %v1959
      %1961 = vmatprep.subr.mxu0 0.0
      %v1962 = vand.u32 %v1663, 4294901760
      %v1963 = vsub.f32 %v1663, %v1962
      %1964 = vmatpush1.msra.mxu0 %v1963
      %1965 = vmatprep.subr.mxu0 0.0
      %v1966 = vand.u32 %v1664, 4294901760
      %v1967 = vsub.f32 %v1664, %v1966
      %1968 = vmatpush1.msra.mxu0 %v1967
      %1969 = vmatprep.subr.mxu0 0.0
      %v1970 = vand.u32 %v1665, 4294901760
      %v1971 = vsub.f32 %v1665, %v1970
      %1972 = vmatpush1.msra.mxu0 %v1971
      %1973 = vmatprep.subr.mxu0 0.0
      %v1974 = vand.u32 %v1666, 4294901760
      %v1975 = vsub.f32 %v1666, %v1974
      %1976 = vmatpush1.msra.mxu0 %v1975
      %1977 = vmatprep.subr.mxu0 0.0
      %v1978 = vand.u32 %v1667, 4294901760
      %v1979 = vsub.f32 %v1667, %v1978
      %1980 = vmatpush1.msra.mxu0 %v1979
      %1981 = vmatprep.subr.mxu0 0.0
      %v1982 = vand.u32 %v1668, 4294901760
      %v1983 = vsub.f32 %v1668, %v1982
      %1984 = vmatpush1.msra.mxu0 %v1983
      %1985 = vmatprep.subr.mxu0 0.0
      %v1986 = vand.u32 %v1669, 4294901760
      %v1987 = vsub.f32 %v1669, %v1986
      %1988 = vmatpush1.msra.mxu0 %v1987
      %1989 = vmatprep.subr.mxu0 0.0
      %v1990 = vand.u32 %v1670, 4294901760
      %v1991 = vsub.f32 %v1670, %v1990
      %1992 = vmatpush1.msra.mxu0 %v1991
      %1993 = vmatprep.subr.mxu0 0.0
      %1994 = vmatpush1.msra.mxu0 0.0
      %1995 = vmatprep.subr.mxu0 0.0
      %1996 = vmatpush1.msra.mxu0 0.0
      %1997 = vmatprep.subr.mxu0 0.0
      %1998 = vmatpush1.msra.mxu0 0.0
      %1999 = vmatprep.subr.mxu0 0.0
      %2000 = vmatpush1.msra.mxu0 0.0
      %2001 = vmatprep.subr.mxu0 0.0
      %2002 = vmatpush1.msra.mxu0 0.0
      %2003 = vmatprep.subr.mxu0 0.0
      %2004 = vmatpush1.msra.mxu0 0.0
      %2005 = vmatprep.subr.mxu0 0.0
      %2006 = vmatpush1.msra.mxu0 0.0
      %2007 = vmatprep.subr.mxu0 0.0
      %2008 = vmatpush1.msra.mxu0 0.0
      %2009 = vmatprep.subr.mxu0 0.0
      %2010 = vmatpush1.msra.mxu0 0.0
      %2011 = vmatprep.subr.mxu0 0.0
      %2012 = vmatpush1.msra.mxu0 0.0
      %2013 = vmatprep.subr.mxu0 0.0
      %2014 = vmatpush1.msra.mxu0 0.0
      %2015 = vmatprep.subr.mxu0 0.0
      %2016 = vmatpush1.msra.mxu0 0.0
      %2017 = vmatprep.subr.mxu0 0.0
      %2018 = vmatpush1.msra.mxu0 0.0
      %2019 = vmatprep.subr.mxu0 0.0
      %2020 = vmatpush1.msra.mxu0 0.0
      %2021 = vmatprep.subr.mxu0 0.0
      %2022 = vmatpush1.msra.mxu0 0.0
      %2023 = vmatprep.subr.mxu0 0.0
      %2024 = vmatpush1.msra.mxu0 0.0
      %2025 = vmatprep.mubr.f32.mxu0 0.0
      %v2026 = vand.u32 %v1653, 4294901760
      %v2027 = vsub.f32 %v1653, %v2026
      %2028 = vmatmul.mubr.f32.gmra.mrb[0].mxu0 %v2027
      %v2029 = vpop.f32.mrb[0].mxu0
      %v2030 = vadd.f32 %v1920, %v2029
      %v2031 = vpop.f32.mrb[0].mxu0
      %2032 = vmatprep.mubr.f32.mxu0 0.0
      %v2033 = vand.u32 %v1654, 4294901760
      %v2034 = vsub.f32 %v1654, %v2033
      %2035 = vmatmul.mubr.f32.gmra.mrb[0].mxu0 %v2034
      %v2036 = vpop.f32.mrb[0].mxu0
      %v2037 = vadd.f32 %v1926, %v2036
      %v2038 = vpop.f32.mrb[0].mxu0
      %2039 = vdwg.mxu0
      %2040 = vmatprep.subr.mxu0 0.0
      %v2041 = vand.u32 %v1655, 4294901760
      %2042 = vmatpush1.msra.mxu0 %v2041
      %2043 = vmatprep.subr.mxu0 0.0
      %v2044 = vand.u32 %v1656, 4294901760
      %2045 = vmatpush1.msra.mxu0 %v2044
      %2046 = vmatprep.subr.mxu0 0.0
      %v2047 = vand.u32 %v1657, 4294901760
      %2048 = vmatpush1.msra.mxu0 %v2047
      %2049 = vmatprep.subr.mxu0 0.0
      %v2050 = vand.u32 %v1658, 4294901760
      %2051 = vmatpush1.msra.mxu0 %v2050
      %2052 = vmatprep.subr.mxu0 0.0
      %v2053 = vand.u32 %v1659, 4294901760
      %2054 = vmatpush1.msra.mxu0 %v2053
      %2055 = vmatprep.subr.mxu0 0.0
      %v2056 = vand.u32 %v1660, 4294901760
      %2057 = vmatpush1.msra.mxu0 %v2056
      %2058 = vmatprep.subr.mxu0 0.0
      %v2059 = vand.u32 %v1661, 4294901760
      %2060 = vmatpush1.msra.mxu0 %v2059
      %2061 = vmatprep.subr.mxu0 0.0
      %v2062 = vand.u32 %v1662, 4294901760
      %2063 = vmatpush1.msra.mxu0 %v2062
      %2064 = vmatprep.subr.mxu0 0.0
      %v2065 = vand.u32 %v1663, 4294901760
      %2066 = vmatpush1.msra.mxu0 %v2065
      %2067 = vmatprep.subr.mxu0 0.0
      %v2068 = vand.u32 %v1664, 4294901760
      %2069 = vmatpush1.msra.mxu0 %v2068
      %2070 = vmatprep.subr.mxu0 0.0
      %v2071 = vand.u32 %v1665, 4294901760
      %2072 = vmatpush1.msra.mxu0 %v2071
      %2073 = vmatprep.subr.mxu0 0.0
      %v2074 = vand.u32 %v1666, 4294901760
      %2075 = vmatpush1.msra.mxu0 %v2074
      %2076 = vmatprep.subr.mxu0 0.0
      %v2077 = vand.u32 %v1667, 4294901760
      %2078 = vmatpush1.msra.mxu0 %v2077
      %2079 = vmatprep.subr.mxu0 0.0
      %v2080 = vand.u32 %v1668, 4294901760
      %2081 = vmatpush1.msra.mxu0 %v2080
      %2082 = vmatprep.subr.mxu0 0.0
      %v2083 = vand.u32 %v1669, 4294901760
      %2084 = vmatpush1.msra.mxu0 %v2083
      %2085 = vmatprep.subr.mxu0 0.0
      %v2086 = vand.u32 %v1670, 4294901760
      %2087 = vmatpush1.msra.mxu0 %v2086
      %2088 = vmatprep.subr.mxu0 0.0
      %2089 = vmatpush1.msra.mxu0 0.0
      %2090 = vmatprep.subr.mxu0 0.0
      %2091 = vmatpush1.msra.mxu0 0.0
      %2092 = vmatprep.subr.mxu0 0.0
      %2093 = vmatpush1.msra.mxu0 0.0
      %2094 = vmatprep.subr.mxu0 0.0
      %2095 = vmatpush1.msra.mxu0 0.0
      %2096 = vmatprep.subr.mxu0 0.0
      %2097 = vmatpush1.msra.mxu0 0.0
      %2098 = vmatprep.subr.mxu0 0.0
      %2099 = vmatpush1.msra.mxu0 0.0
      %2100 = vmatprep.subr.mxu0 0.0
      %2101 = vmatpush1.msra.mxu0 0.0
      %2102 = vmatprep.subr.mxu0 0.0
      %2103 = vmatpush1.msra.mxu0 0.0
      %2104 = vmatprep.subr.mxu0 0.0
      %2105 = vmatpush1.msra.mxu0 0.0
      %2106 = vmatprep.subr.mxu0 0.0
      %2107 = vmatpush1.msra.mxu0 0.0
      %2108 = vmatprep.subr.mxu0 0.0
      %2109 = vmatpush1.msra.mxu0 0.0
      %2110 = vmatprep.subr.mxu0 0.0
      %2111 = vmatpush1.msra.mxu0 0.0
      %2112 = vmatprep.subr.mxu0 0.0
      %2113 = vmatpush1.msra.mxu0 0.0
      %2114 = vmatprep.subr.mxu0 0.0
      %2115 = vmatpush1.msra.mxu0 0.0
      %2116 = vmatprep.subr.mxu0 0.0
      %2117 = vmatpush1.msra.mxu0 0.0
      %2118 = vmatprep.subr.mxu0 0.0
      %2119 = vmatpush1.msra.mxu0 0.0
      %2120 = vmatprep.mubr.f32.mxu0 0.0
      %v2121 = vand.u32 %v1653, 4294901760
      %v2122 = vsub.f32 %v1653, %v2121
      %v2123 = vand.u32 %v2122, 4294901760
      %2124 = vmatmul.mubr.f32.gmra.mrb[0].mxu0 %v2123
      %v2125 = vpop.f32.mrb[0].mxu0
      %v2126 = vadd.f32 %v2030, %v2125
      %v2127 = vpop.f32.mrb[0].mxu0
      %2128 = vmatprep.mubr.f32.mxu0 0.0
      %v2129 = vand.u32 %v1654, 4294901760
      %v2130 = vsub.f32 %v1654, %v2129
      %v2131 = vand.u32 %v2130, 4294901760
      %2132 = vmatmul.mubr.f32.gmra.mrb[0].mxu0 %v2131
      %v2133 = vpop.f32.mrb[0].mxu0
      %v2134 = vadd.f32 %v2037, %v2133
      %v2135 = vpop.f32.mrb[0].mxu0
      %2136 = vdwg.mxu0
      %2137 = vmatprep.subr.mxu0 0.0
      %v2138 = vand.u32 %v1655, 4294901760
      %v2139 = vsub.f32 %v1655, %v2138
      %v2140 = vand.u32 %v2139, 4294901760
      %2141 = vmatpush1.msra.mxu0 %v2140
      %2142 = vmatprep.subr.mxu0 0.0
      %v2143 = vand.u32 %v1656, 4294901760
      %v2144 = vsub.f32 %v1656, %v2143
      %v2145 = vand.u32 %v2144, 4294901760
      %2146 = vmatpush1.msra.mxu0 %v2145
      %2147 = vmatprep.subr.mxu0 0.0
      %v2148 = vand.u32 %v1657, 4294901760
      %v2149 = vsub.f32 %v1657, %v2148
      %v2150 = vand.u32 %v2149, 4294901760
      %2151 = vmatpush1.msra.mxu0 %v2150
      %2152 = vmatprep.subr.mxu0 0.0
      %v2153 = vand.u32 %v1658, 4294901760
      %v2154 = vsub.f32 %v1658, %v2153
      %v2155 = vand.u32 %v2154, 4294901760
      %2156 = vmatpush1.msra.mxu0 %v2155
      %2157 = vmatprep.subr.mxu0 0.0
      %v2158 = vand.u32 %v1659, 4294901760
      %v2159 = vsub.f32 %v1659, %v2158
      %v2160 = vand.u32 %v2159, 4294901760
      %2161 = vmatpush1.msra.mxu0 %v2160
      %2162 = vmatprep.subr.mxu0 0.0
      %v2163 = vand.u32 %v1660, 4294901760
      %v2164 = vsub.f32 %v1660, %v2163
      %v2165 = vand.u32 %v2164, 4294901760
      %2166 = vmatpush1.msra.mxu0 %v2165
      %2167 = vmatprep.subr.mxu0 0.0
      %v2168 = vand.u32 %v1661, 4294901760
      %v2169 = vsub.f32 %v1661, %v2168
      %v2170 = vand.u32 %v2169, 4294901760
      %2171 = vmatpush1.msra.mxu0 %v2170
      %2172 = vmatprep.subr.mxu0 0.0
      %v2173 = vand.u32 %v1662, 4294901760
      %v2174 = vsub.f32 %v1662, %v2173
      %v2175 = vand.u32 %v2174, 4294901760
      %2176 = vmatpush1.msra.mxu0 %v2175
      %2177 = vmatprep.subr.mxu0 0.0
      %v2178 = vand.u32 %v1663, 4294901760
      %v2179 = vsub.f32 %v1663, %v2178
      %v2180 = vand.u32 %v2179, 4294901760
      %2181 = vmatpush1.msra.mxu0 %v2180
      %2182 = vmatprep.subr.mxu0 0.0
      %v2183 = vand.u32 %v1664, 4294901760
      %v2184 = vsub.f32 %v1664, %v2183
      %v2185 = vand.u32 %v2184, 4294901760
      %2186 = vmatpush1.msra.mxu0 %v2185
      %2187 = vmatprep.subr.mxu0 0.0
      %v2188 = vand.u32 %v1665, 4294901760
      %v2189 = vsub.f32 %v1665, %v2188
      %v2190 = vand.u32 %v2189, 4294901760
      %2191 = vmatpush1.msra.mxu0 %v2190
      %2192 = vmatprep.subr.mxu0 0.0
      %v2193 = vand.u32 %v1666, 4294901760
      %v2194 = vsub.f32 %v1666, %v2193
      %v2195 = vand.u32 %v2194, 4294901760
      %2196 = vmatpush1.msra.mxu0 %v2195
      %2197 = vmatprep.subr.mxu0 0.0
      %v2198 = vand.u32 %v1667, 4294901760
      %v2199 = vsub.f32 %v1667, %v2198
      %v2200 = vand.u32 %v2199, 4294901760
      %2201 = vmatpush1.msra.mxu0 %v2200
      %2202 = vmatprep.subr.mxu0 0.0
      %v2203 = vand.u32 %v1668, 4294901760
      %v2204 = vsub.f32 %v1668, %v2203
      %v2205 = vand.u32 %v2204, 4294901760
      %2206 = vmatpush1.msra.mxu0 %v2205
      %2207 = vmatprep.subr.mxu0 0.0
      %v2208 = vand.u32 %v1669, 4294901760
      %v2209 = vsub.f32 %v1669, %v2208
      %v2210 = vand.u32 %v2209, 4294901760
      %2211 = vmatpush1.msra.mxu0 %v2210
      %2212 = vmatprep.subr.mxu0 0.0
      %v2213 = vand.u32 %v1670, 4294901760
      %v2214 = vsub.f32 %v1670, %v2213
      %v2215 = vand.u32 %v2214, 4294901760
      %2216 = vmatpush1.msra.mxu0 %v2215
      %2217 = vmatprep.subr.mxu0 0.0
      %2218 = vmatpush1.msra.mxu0 0.0
      %2219 = vmatprep.subr.mxu0 0.0
      %2220 = vmatpush1.msra.mxu0 0.0
      %2221 = vmatprep.subr.mxu0 0.0
      %2222 = vmatpush1.msra.mxu0 0.0
      %2223 = vmatprep.subr.mxu0 0.0
      %2224 = vmatpush1.msra.mxu0 0.0
      %2225 = vmatprep.subr.mxu0 0.0
      %2226 = vmatpush1.msra.mxu0 0.0
      %2227 = vmatprep.subr.mxu0 0.0
      %2228 = vmatpush1.msra.mxu0 0.0
      %2229 = vmatprep.subr.mxu0 0.0
      %2230 = vmatpush1.msra.mxu0 0.0
      %2231 = vmatprep.subr.mxu0 0.0
      %2232 = vmatpush1.msra.mxu0 0.0
      %2233 = vmatprep.subr.mxu0 0.0
      %2234 = vmatpush1.msra.mxu0 0.0
      %2235 = vmatprep.subr.mxu0 0.0
      %2236 = vmatpush1.msra.mxu0 0.0
      %2237 = vmatprep.subr.mxu0 0.0
      %2238 = vmatpush1.msra.mxu0 0.0
      %2239 = vmatprep.subr.mxu0 0.0
      %2240 = vmatpush1.msra.mxu0 0.0
      %2241 = vmatprep.subr.mxu0 0.0
      %2242 = vmatpush1.msra.mxu0 0.0
      %2243 = vmatprep.subr.mxu0 0.0
      %2244 = vmatpush1.msra.mxu0 0.0
      %2245 = vmatprep.subr.mxu0 0.0
      %2246 = vmatpush1.msra.mxu0 0.0
      %2247 = vmatprep.subr.mxu0 0.0
      %2248 = vmatpush1.msra.mxu0 0.0
      %2249 = vmatprep.mubr.f32.mxu0 0.0
      %v2250 = vand.u32 %v1653, 4294901760
      %2251 = vmatmul.mubr.f32.gmra.mrb[0].mxu0 %v2250
      %v2252 = vpop.f32.mrb[0].mxu0
      %v2253 = vadd.f32 %v2126, %v2252
      %v2254 = vpop.f32.mrb[0].mxu0
      %2255 = vmatprep.mubr.f32.mxu0 0.0
      %v2256 = vand.u32 %v1654, 4294901760
      %2257 = vmatmul.mubr.f32.gmra.mrb[0].mxu0 %v2256
      %v2258 = vpop.f32.mrb[0].mxu0
      %v2259 = vadd.f32 %v2134, %v2258
      %v2260 = vpop.f32.mrb[0].mxu0
      %2261 = vdwg.mxu0
      %2262 = vmatprep.subr.mxu0 0.0
      %v2263 = vand.u32 %v1655, 4294901760
      %2264 = vmatpush1.msra.mxu0 %v2263
      %2265 = vmatprep.subr.mxu0 0.0
      %v2266 = vand.u32 %v1656, 4294901760
      %2267 = vmatpush1.msra.mxu0 %v2266
      %2268 = vmatprep.subr.mxu0 0.0
      %v2269 = vand.u32 %v1657, 4294901760
      %2270 = vmatpush1.msra.mxu0 %v2269
      %2271 = vmatprep.subr.mxu0 0.0
      %v2272 = vand.u32 %v1658, 4294901760
      %2273 = vmatpush1.msra.mxu0 %v2272
      %2274 = vmatprep.subr.mxu0 0.0
      %v2275 = vand.u32 %v1659, 4294901760
      %2276 = vmatpush1.msra.mxu0 %v2275
      %2277 = vmatprep.subr.mxu0 0.0
      %v2278 = vand.u32 %v1660, 4294901760
      %2279 = vmatpush1.msra.mxu0 %v2278
      %2280 = vmatprep.subr.mxu0 0.0
      %v2281 = vand.u32 %v1661, 4294901760
      %2282 = vmatpush1.msra.mxu0 %v2281
      %2283 = vmatprep.subr.mxu0 0.0
      %v2284 = vand.u32 %v1662, 4294901760
      %2285 = vmatpush1.msra.mxu0 %v2284
      %2286 = vmatprep.subr.mxu0 0.0
      %v2287 = vand.u32 %v1663, 4294901760
      %2288 = vmatpush1.msra.mxu0 %v2287
      %2289 = vmatprep.subr.mxu0 0.0
      %v2290 = vand.u32 %v1664, 4294901760
      %2291 = vmatpush1.msra.mxu0 %v2290
      %2292 = vmatprep.subr.mxu0 0.0
      %v2293 = vand.u32 %v1665, 4294901760
      %2294 = vmatpush1.msra.mxu0 %v2293
      %2295 = vmatprep.subr.mxu0 0.0
      %v2296 = vand.u32 %v1666, 4294901760
      %2297 = vmatpush1.msra.mxu0 %v2296
      %2298 = vmatprep.subr.mxu0 0.0
      %v2299 = vand.u32 %v1667, 4294901760
      %2300 = vmatpush1.msra.mxu0 %v2299
      %2301 = vmatprep.subr.mxu0 0.0
      %v2302 = vand.u32 %v1668, 4294901760
      %2303 = vmatpush1.msra.mxu0 %v2302
      %2304 = vmatprep.subr.mxu0 0.0
      %v2305 = vand.u32 %v1669, 4294901760
      %2306 = vmatpush1.msra.mxu0 %v2305
      %2307 = vmatprep.subr.mxu0 0.0
      %v2308 = vand.u32 %v1670, 4294901760
      %2309 = vmatpush1.msra.mxu0 %v2308
      %2310 = vmatprep.subr.mxu0 0.0
      %2311 = vmatpush1.msra.mxu0 0.0
      %2312 = vmatprep.subr.mxu0 0.0
      %2313 = vmatpush1.msra.mxu0 0.0
      %2314 = vmatprep.subr.mxu0 0.0
      %2315 = vmatpush1.msra.mxu0 0.0
      %2316 = vmatprep.subr.mxu0 0.0
      %2317 = vmatpush1.msra.mxu0 0.0
      %2318 = vmatprep.subr.mxu0 0.0
      %2319 = vmatpush1.msra.mxu0 0.0
      %2320 = vmatprep.subr.mxu0 0.0
      %2321 = vmatpush1.msra.mxu0 0.0
      %2322 = vmatprep.subr.mxu0 0.0
      %2323 = vmatpush1.msra.mxu0 0.0
      %2324 = vmatprep.subr.mxu0 0.0
      %2325 = vmatpush1.msra.mxu0 0.0
      %2326 = vmatprep.subr.mxu0 0.0
      %2327 = vmatpush1.msra.mxu0 0.0
      %2328 = vmatprep.subr.mxu0 0.0
      %2329 = vmatpush1.msra.mxu0 0.0
      %2330 = vmatprep.subr.mxu0 0.0
      %2331 = vmatpush1.msra.mxu0 0.0
      %2332 = vmatprep.subr.mxu0 0.0
      %2333 = vmatpush1.msra.mxu0 0.0
      %2334 = vmatprep.subr.mxu0 0.0
      %2335 = vmatpush1.msra.mxu0 0.0
      %2336 = vmatprep.subr.mxu0 0.0
      %2337 = vmatpush1.msra.mxu0 0.0
      %2338 = vmatprep.subr.mxu0 0.0
      %2339 = vmatpush1.msra.mxu0 0.0
      %2340 = vmatprep.subr.mxu0 0.0
      %2341 = vmatpush1.msra.mxu0 0.0
      %2342 = vmatprep.mubr.f32.mxu0 0.0
      %v2343 = vand.u32 %v1653, 4294901760
      %2344 = vmatmul.mubr.f32.gmra.mrb[0].mxu0 %v2343
      %v2345 = vpop.f32.mrb[0].mxu0
      %v2346 = vadd.f32 %v2253, %v2345
      %v2347 = vpop.f32.mrb[0].mxu0
      %2348 = vmatprep.mubr.f32.mxu0 0.0
      %v2349 = vand.u32 %v1654, 4294901760
      %2350 = vmatmul.mubr.f32.gmra.mrb[0].mxu0 %v2349
      %v2351 = vpop.f32.mrb[0].mxu0
      %v2352 = vadd.f32 %v2259, %v2351
      %v2353 = vpop.f32.mrb[0].mxu0
      %2354 = vdwg.mxu0
      %vm2355 = vcmask 130048
      %v2357 = vsel %vm2355, %v2346, 0
      %v2360 = vsel %vm2355, %v2352, 0
      %2362 = vmatprep.subr.mxu0 0.0
      %v2363 = vand.u32 %v264, 4294901760
      %2364 = vmatpush1.msra.mxu0 %v2363
      %2365 = vmatprep.subr.mxu0 0.0
      %v2366 = vand.u32 %v265, 4294901760
      %2367 = vmatpush1.msra.mxu0 %v2366
      %2368 = vmatprep.subr.mxu0 0.0
      %2369 = vmatpush1.msra.mxu0 0.0
      %2370 = vmatprep.subr.mxu0 0.0
      %2371 = vmatpush1.msra.mxu0 0.0
      %2372 = vmatprep.subr.mxu0 0.0
      %2373 = vmatpush1.msra.mxu0 0.0
      %2374 = vmatprep.subr.mxu0 0.0
      %2375 = vmatpush1.msra.mxu0 0.0
      %2376 = vmatprep.subr.mxu0 0.0
      %2377 = vmatpush1.msra.mxu0 0.0
      %2378 = vmatprep.subr.mxu0 0.0
      %2379 = vmatpush1.msra.mxu0 0.0
      %2380 = vmatprep.subr.mxu0 0.0
      %2381 = vmatpush1.msra.mxu0 0.0
      %2382 = vmatprep.subr.mxu0 0.0
      %2383 = vmatpush1.msra.mxu0 0.0
      %2384 = vmatprep.subr.mxu0 0.0
      %2385 = vmatpush1.msra.mxu0 0.0
      %2386 = vmatprep.subr.mxu0 0.0
      %2387 = vmatpush1.msra.mxu0 0.0
      %2388 = vmatprep.subr.mxu0 0.0
      %2389 = vmatpush1.msra.mxu0 0.0
      %2390 = vmatprep.subr.mxu0 0.0
      %2391 = vmatpush1.msra.mxu0 0.0
      %2392 = vmatprep.subr.mxu0 0.0
      %2393 = vmatpush1.msra.mxu0 0.0
      %2394 = vmatprep.subr.mxu0 0.0
      %2395 = vmatpush1.msra.mxu0 0.0
      %2396 = vmatprep.subr.mxu0 0.0
      %2397 = vmatpush1.msra.mxu0 0.0
      %2398 = vmatprep.subr.mxu0 0.0
      %2399 = vmatpush1.msra.mxu0 0.0
      %2400 = vmatprep.subr.mxu0 0.0
      %2401 = vmatpush1.msra.mxu0 0.0
      %2402 = vmatprep.subr.mxu0 0.0
      %2403 = vmatpush1.msra.mxu0 0.0
      %2404 = vmatprep.subr.mxu0 0.0
      %2405 = vmatpush1.msra.mxu0 0.0
      %2406 = vmatprep.subr.mxu0 0.0
      %2407 = vmatpush1.msra.mxu0 0.0
      %2408 = vmatprep.subr.mxu0 0.0
      %2409 = vmatpush1.msra.mxu0 0.0
      %2410 = vmatprep.subr.mxu0 0.0
      %2411 = vmatpush1.msra.mxu0 0.0
      %2412 = vmatprep.subr.mxu0 0.0
      %2413 = vmatpush1.msra.mxu0 0.0
      %2414 = vmatprep.subr.mxu0 0.0
      %2415 = vmatpush1.msra.mxu0 0.0
      %2416 = vmatprep.subr.mxu0 0.0
      %2417 = vmatpush1.msra.mxu0 0.0
      %2418 = vmatprep.subr.mxu0 0.0
      %2419 = vmatpush1.msra.mxu0 0.0
      %2420 = vmatprep.subr.mxu0 0.0
      %2421 = vmatpush1.msra.mxu0 0.0
      %2422 = vmatprep.subr.mxu0 0.0
      %2423 = vmatpush1.msra.mxu0 0.0
      %2424 = vmatprep.subr.mxu0 0.0
      %2425 = vmatpush1.msra.mxu0 0.0
      %2426 = vmatprep.subr.mxu0 0.0
      %2427 = vmatpush1.msra.mxu0 0.0
      %2428 = vmatprep.mubr.f32.mxu0 0.0
      %v2429 = vand.u32 %v2357, 4294901760
      %v2430 = vsub.f32 %v2357, %v2429
      %v2431 = vand.u32 %v2430, 4294901760
      %v2432 = vsub.f32 %v2430, %v2431
      %v2433 = vand.u32 %v2432, 4294901760
      %2434 = vmatmul.mubr.f32.gmra.mrb[0].mxu0 %v2433
      %v2435 = vpop.f32.mrb[0].mxu0
      %v2436 = vadd.f32 0.0, %v2435
      %v2437 = vpop.f32.mrb[0].mxu0
      %2438 = vmatprep.mubr.f32.mxu0 0.0
      %v2439 = vand.u32 %v2360, 4294901760
      %v2440 = vsub.f32 %v2360, %v2439
      %v2441 = vand.u32 %v2440, 4294901760
      %v2442 = vsub.f32 %v2440, %v2441
      %v2443 = vand.u32 %v2442, 4294901760
      %2444 = vmatmul.mubr.f32.gmra.mrb[0].mxu0 %v2443
      %v2445 = vpop.f32.mrb[0].mxu0
      %v2446 = vadd.f32 0.0, %v2445
      %v2447 = vpop.f32.mrb[0].mxu0
      %2448 = vdwg.mxu0
      %2449 = vmatprep.subr.mxu0 0.0
      %v2450 = vand.u32 %v264, 4294901760
      %v2451 = vsub.f32 %v264, %v2450
      %v2452 = vand.u32 %v2451, 4294901760
      %v2453 = vsub.f32 %v2451, %v2452
      %v2454 = vand.u32 %v2453, 4294901760
      %2455 = vmatpush1.msra.mxu0 %v2454
      %2456 = vmatprep.subr.mxu0 0.0
      %v2457 = vand.u32 %v265, 4294901760
      %v2458 = vsub.f32 %v265, %v2457
      %v2459 = vand.u32 %v2458, 4294901760
      %v2460 = vsub.f32 %v2458, %v2459
      %v2461 = vand.u32 %v2460, 4294901760
      %2462 = vmatpush1.msra.mxu0 %v2461
      %2463 = vmatprep.subr.mxu0 0.0
      %2464 = vmatpush1.msra.mxu0 0.0
      %2465 = vmatprep.subr.mxu0 0.0
      %2466 = vmatpush1.msra.mxu0 0.0
      %2467 = vmatprep.subr.mxu0 0.0
      %2468 = vmatpush1.msra.mxu0 0.0
      %2469 = vmatprep.subr.mxu0 0.0
      %2470 = vmatpush1.msra.mxu0 0.0
      %2471 = vmatprep.subr.mxu0 0.0
      %2472 = vmatpush1.msra.mxu0 0.0
      %2473 = vmatprep.subr.mxu0 0.0
      %2474 = vmatpush1.msra.mxu0 0.0
      %2475 = vmatprep.subr.mxu0 0.0
      %2476 = vmatpush1.msra.mxu0 0.0
      %2477 = vmatprep.subr.mxu0 0.0
      %2478 = vmatpush1.msra.mxu0 0.0
      %2479 = vmatprep.subr.mxu0 0.0
      %2480 = vmatpush1.msra.mxu0 0.0
      %2481 = vmatprep.subr.mxu0 0.0
      %2482 = vmatpush1.msra.mxu0 0.0
      %2483 = vmatprep.subr.mxu0 0.0
      %2484 = vmatpush1.msra.mxu0 0.0
      %2485 = vmatprep.subr.mxu0 0.0
      %2486 = vmatpush1.msra.mxu0 0.0
      %2487 = vmatprep.subr.mxu0 0.0
      %2488 = vmatpush1.msra.mxu0 0.0
      %2489 = vmatprep.subr.mxu0 0.0
      %2490 = vmatpush1.msra.mxu0 0.0
      %2491 = vmatprep.subr.mxu0 0.0
      %2492 = vmatpush1.msra.mxu0 0.0
      %2493 = vmatprep.subr.mxu0 0.0
      %2494 = vmatpush1.msra.mxu0 0.0
      %2495 = vmatprep.subr.mxu0 0.0
      %2496 = vmatpush1.msra.mxu0 0.0
      %2497 = vmatprep.subr.mxu0 0.0
      %2498 = vmatpush1.msra.mxu0 0.0
      %2499 = vmatprep.subr.mxu0 0.0
      %2500 = vmatpush1.msra.mxu0 0.0
      %2501 = vmatprep.subr.mxu0 0.0
      %2502 = vmatpush1.msra.mxu0 0.0
      %2503 = vmatprep.subr.mxu0 0.0
      %2504 = vmatpush1.msra.mxu0 0.0
      %2505 = vmatprep.subr.mxu0 0.0
      %2506 = vmatpush1.msra.mxu0 0.0
      %2507 = vmatprep.subr.mxu0 0.0
      %2508 = vmatpush1.msra.mxu0 0.0
      %2509 = vmatprep.subr.mxu0 0.0
      %2510 = vmatpush1.msra.mxu0 0.0
      %2511 = vmatprep.subr.mxu0 0.0
      %2512 = vmatpush1.msra.mxu0 0.0
      %2513 = vmatprep.subr.mxu0 0.0
      %2514 = vmatpush1.msra.mxu0 0.0
      %2515 = vmatprep.subr.mxu0 0.0
      %2516 = vmatpush1.msra.mxu0 0.0
      %2517 = vmatprep.subr.mxu0 0.0
      %2518 = vmatpush1.msra.mxu0 0.0
      %2519 = vmatprep.subr.mxu0 0.0
      %2520 = vmatpush1.msra.mxu0 0.0
      %2521 = vmatprep.subr.mxu0 0.0
      %2522 = vmatpush1.msra.mxu0 0.0
      %2523 = vmatprep.mubr.f32.mxu0 0.0
      %v2524 = vand.u32 %v2357, 4294901760
      %2525 = vmatmul.mubr.f32.gmra.mrb[0].mxu0 %v2524
      %v2526 = vpop.f32.mrb[0].mxu0
      %v2527 = vadd.f32 %v2436, %v2526
      %v2528 = vpop.f32.mrb[0].mxu0
      %2529 = vmatprep.mubr.f32.mxu0 0.0
      %v2530 = vand.u32 %v2360, 4294901760
      %2531 = vmatmul.mubr.f32.gmra.mrb[0].mxu0 %v2530
      %v2532 = vpop.f32.mrb[0].mxu0
      %v2533 = vadd.f32 %v2446, %v2532
      %v2534 = vpop.f32.mrb[0].mxu0
      %2535 = vdwg.mxu0
      %2536 = vmatprep.subr.mxu0 0.0
      %v2537 = vand.u32 %v264, 4294901760
      %v2538 = vsub.f32 %v264, %v2537
      %2539 = vmatpush1.msra.mxu0 %v2538
      %2540 = vmatprep.subr.mxu0 0.0
      %v2541 = vand.u32 %v265, 4294901760
      %v2542 = vsub.f32 %v265, %v2541
      %2543 = vmatpush1.msra.mxu0 %v2542
      %2544 = vmatprep.subr.mxu0 0.0
      %2545 = vmatpush1.msra.mxu0 0.0
      %2546 = vmatprep.subr.mxu0 0.0
      %2547 = vmatpush1.msra.mxu0 0.0
      %2548 = vmatprep.subr.mxu0 0.0
      %2549 = vmatpush1.msra.mxu0 0.0
      %2550 = vmatprep.subr.mxu0 0.0
      %2551 = vmatpush1.msra.mxu0 0.0
      %2552 = vmatprep.subr.mxu0 0.0
      %2553 = vmatpush1.msra.mxu0 0.0
      %2554 = vmatprep.subr.mxu0 0.0
      %2555 = vmatpush1.msra.mxu0 0.0
      %2556 = vmatprep.subr.mxu0 0.0
      %2557 = vmatpush1.msra.mxu0 0.0
      %2558 = vmatprep.subr.mxu0 0.0
      %2559 = vmatpush1.msra.mxu0 0.0
      %2560 = vmatprep.subr.mxu0 0.0
      %2561 = vmatpush1.msra.mxu0 0.0
      %2562 = vmatprep.subr.mxu0 0.0
      %2563 = vmatpush1.msra.mxu0 0.0
      %2564 = vmatprep.subr.mxu0 0.0
      %2565 = vmatpush1.msra.mxu0 0.0
      %2566 = vmatprep.subr.mxu0 0.0
      %2567 = vmatpush1.msra.mxu0 0.0
      %2568 = vmatprep.subr.mxu0 0.0
      %2569 = vmatpush1.msra.mxu0 0.0
      %2570 = vmatprep.subr.mxu0 0.0
      %2571 = vmatpush1.msra.mxu0 0.0
      %2572 = vmatprep.subr.mxu0 0.0
      %2573 = vmatpush1.msra.mxu0 0.0
      %2574 = vmatprep.subr.mxu0 0.0
      %2575 = vmatpush1.msra.mxu0 0.0
      %2576 = vmatprep.subr.mxu0 0.0
      %2577 = vmatpush1.msra.mxu0 0.0
      %2578 = vmatprep.subr.mxu0 0.0
      %2579 = vmatpush1.msra.mxu0 0.0
      %2580 = vmatprep.subr.mxu0 0.0
      %2581 = vmatpush1.msra.mxu0 0.0
      %2582 = vmatprep.subr.mxu0 0.0
      %2583 = vmatpush1.msra.mxu0 0.0
      %2584 = vmatprep.subr.mxu0 0.0
      %2585 = vmatpush1.msra.mxu0 0.0
      %2586 = vmatprep.subr.mxu0 0.0
      %2587 = vmatpush1.msra.mxu0 0.0
      %2588 = vmatprep.subr.mxu0 0.0
      %2589 = vmatpush1.msra.mxu0 0.0
      %2590 = vmatprep.subr.mxu0 0.0
      %2591 = vmatpush1.msra.mxu0 0.0
      %2592 = vmatprep.subr.mxu0 0.0
      %2593 = vmatpush1.msra.mxu0 0.0
      %2594 = vmatprep.subr.mxu0 0.0
      %2595 = vmatpush1.msra.mxu0 0.0
      %2596 = vmatprep.subr.mxu0 0.0
      %2597 = vmatpush1.msra.mxu0 0.0
      %2598 = vmatprep.subr.mxu0 0.0
      %2599 = vmatpush1.msra.mxu0 0.0
      %2600 = vmatprep.subr.mxu0 0.0
      %2601 = vmatpush1.msra.mxu0 0.0
      %2602 = vmatprep.subr.mxu0 0.0
      %2603 = vmatpush1.msra.mxu0 0.0
      %2604 = vmatprep.mubr.f32.mxu0 0.0
      %v2605 = vand.u32 %v2357, 4294901760
      %v2606 = vsub.f32 %v2357, %v2605
      %2607 = vmatmul.mubr.f32.gmra.mrb[0].mxu0 %v2606
      %v2608 = vpop.f32.mrb[0].mxu0
      %v2609 = vadd.f32 %v2527, %v2608
      %v2610 = vpop.f32.mrb[0].mxu0
      %2611 = vmatprep.mubr.f32.mxu0 0.0
      %v2612 = vand.u32 %v2360, 4294901760
      %v2613 = vsub.f32 %v2360, %v2612
      %2614 = vmatmul.mubr.f32.gmra.mrb[0].mxu0 %v2613
      %v2615 = vpop.f32.mrb[0].mxu0
      %v2616 = vadd.f32 %v2533, %v2615
      %v2617 = vpop.f32.mrb[0].mxu0
      %2618 = vdwg.mxu0
      %2619 = vmatprep.subr.mxu0 0.0
      %v2620 = vand.u32 %v264, 4294901760
      %2621 = vmatpush1.msra.mxu0 %v2620
      %2622 = vmatprep.subr.mxu0 0.0
      %v2623 = vand.u32 %v265, 4294901760
      %2624 = vmatpush1.msra.mxu0 %v2623
      %2625 = vmatprep.subr.mxu0 0.0
      %2626 = vmatpush1.msra.mxu0 0.0
      %2627 = vmatprep.subr.mxu0 0.0
      %2628 = vmatpush1.msra.mxu0 0.0
      %2629 = vmatprep.subr.mxu0 0.0
      %2630 = vmatpush1.msra.mxu0 0.0
      %2631 = vmatprep.subr.mxu0 0.0
      %2632 = vmatpush1.msra.mxu0 0.0
      %2633 = vmatprep.subr.mxu0 0.0
      %2634 = vmatpush1.msra.mxu0 0.0
      %2635 = vmatprep.subr.mxu0 0.0
      %2636 = vmatpush1.msra.mxu0 0.0
      %2637 = vmatprep.subr.mxu0 0.0
      %2638 = vmatpush1.msra.mxu0 0.0
      %2639 = vmatprep.subr.mxu0 0.0
      %2640 = vmatpush1.msra.mxu0 0.0
      %2641 = vmatprep.subr.mxu0 0.0
      %2642 = vmatpush1.msra.mxu0 0.0
      %2643 = vmatprep.subr.mxu0 0.0
      %2644 = vmatpush1.msra.mxu0 0.0
      %2645 = vmatprep.subr.mxu0 0.0
      %2646 = vmatpush1.msra.mxu0 0.0
      %2647 = vmatprep.subr.mxu0 0.0
      %2648 = vmatpush1.msra.mxu0 0.0
      %2649 = vmatprep.subr.mxu0 0.0
      %2650 = vmatpush1.msra.mxu0 0.0
      %2651 = vmatprep.subr.mxu0 0.0
      %2652 = vmatpush1.msra.mxu0 0.0
      %2653 = vmatprep.subr.mxu0 0.0
      %2654 = vmatpush1.msra.mxu0 0.0
      %2655 = vmatprep.subr.mxu0 0.0
      %2656 = vmatpush1.msra.mxu0 0.0
      %2657 = vmatprep.subr.mxu0 0.0
      %2658 = vmatpush1.msra.mxu0 0.0
      %2659 = vmatprep.subr.mxu0 0.0
      %2660 = vmatpush1.msra.mxu0 0.0
      %2661 = vmatprep.subr.mxu0 0.0
      %2662 = vmatpush1.msra.mxu0 0.0
      %2663 = vmatprep.subr.mxu0 0.0
      %2664 = vmatpush1.msra.mxu0 0.0
      %2665 = vmatprep.subr.mxu0 0.0
      %2666 = vmatpush1.msra.mxu0 0.0
      %2667 = vmatprep.subr.mxu0 0.0
      %2668 = vmatpush1.msra.mxu0 0.0
      %2669 = vmatprep.subr.mxu0 0.0
      %2670 = vmatpush1.msra.mxu0 0.0
      %2671 = vmatprep.subr.mxu0 0.0
      %2672 = vmatpush1.msra.mxu0 0.0
      %2673 = vmatprep.subr.mxu0 0.0
      %2674 = vmatpush1.msra.mxu0 0.0
      %2675 = vmatprep.subr.mxu0 0.0
      %2676 = vmatpush1.msra.mxu0 0.0
      %2677 = vmatprep.subr.mxu0 0.0
      %2678 = vmatpush1.msra.mxu0 0.0
      %2679 = vmatprep.subr.mxu0 0.0
      %2680 = vmatpush1.msra.mxu0 0.0
      %2681 = vmatprep.subr.mxu0 0.0
      %2682 = vmatpush1.msra.mxu0 0.0
      %2683 = vmatprep.subr.mxu0 0.0
      %2684 = vmatpush1.msra.mxu0 0.0
      %2685 = vmatprep.mubr.f32.mxu0 0.0
      %v2686 = vand.u32 %v2357, 4294901760
      %v2687 = vsub.f32 %v2357, %v2686
      %v2688 = vand.u32 %v2687, 4294901760
      %2689 = vmatmul.mubr.f32.gmra.mrb[0].mxu0 %v2688
      %v2690 = vpop.f32.mrb[0].mxu0
      %v2691 = vadd.f32 %v2609, %v2690
      %v2692 = vpop.f32.mrb[0].mxu0
      %2693 = vmatprep.mubr.f32.mxu0 0.0
      %v2694 = vand.u32 %v2360, 4294901760
      %v2695 = vsub.f32 %v2360, %v2694
      %v2696 = vand.u32 %v2695, 4294901760
      %2697 = vmatmul.mubr.f32.gmra.mrb[0].mxu0 %v2696
      %v2698 = vpop.f32.mrb[0].mxu0
      %v2699 = vadd.f32 %v2616, %v2698
      %v2700 = vpop.f32.mrb[0].mxu0
      %2701 = vdwg.mxu0
      %2702 = vmatprep.subr.mxu0 0.0
      %v2703 = vand.u32 %v264, 4294901760
      %v2704 = vsub.f32 %v264, %v2703
      %v2705 = vand.u32 %v2704, 4294901760
      %2706 = vmatpush1.msra.mxu0 %v2705
      %2707 = vmatprep.subr.mxu0 0.0
      %v2708 = vand.u32 %v265, 4294901760
      %v2709 = vsub.f32 %v265, %v2708
      %v2710 = vand.u32 %v2709, 4294901760
      %2711 = vmatpush1.msra.mxu0 %v2710
      %2712 = vmatprep.subr.mxu0 0.0
      %2713 = vmatpush1.msra.mxu0 0.0
      %2714 = vmatprep.subr.mxu0 0.0
      %2715 = vmatpush1.msra.mxu0 0.0
      %2716 = vmatprep.subr.mxu0 0.0
      %2717 = vmatpush1.msra.mxu0 0.0
      %2718 = vmatprep.subr.mxu0 0.0
      %2719 = vmatpush1.msra.mxu0 0.0
      %2720 = vmatprep.subr.mxu0 0.0
      %2721 = vmatpush1.msra.mxu0 0.0
      %2722 = vmatprep.subr.mxu0 0.0
      %2723 = vmatpush1.msra.mxu0 0.0
      %2724 = vmatprep.subr.mxu0 0.0
      %2725 = vmatpush1.msra.mxu0 0.0
      %2726 = vmatprep.subr.mxu0 0.0
      %2727 = vmatpush1.msra.mxu0 0.0
      %2728 = vmatprep.subr.mxu0 0.0
      %2729 = vmatpush1.msra.mxu0 0.0
      %2730 = vmatprep.subr.mxu0 0.0
      %2731 = vmatpush1.msra.mxu0 0.0
      %2732 = vmatprep.subr.mxu0 0.0
      %2733 = vmatpush1.msra.mxu0 0.0
      %2734 = vmatprep.subr.mxu0 0.0
      %2735 = vmatpush1.msra.mxu0 0.0
      %2736 = vmatprep.subr.mxu0 0.0
      %2737 = vmatpush1.msra.mxu0 0.0
      %2738 = vmatprep.subr.mxu0 0.0
      %2739 = vmatpush1.msra.mxu0 0.0
      %2740 = vmatprep.subr.mxu0 0.0
      %2741 = vmatpush1.msra.mxu0 0.0
      %2742 = vmatprep.subr.mxu0 0.0
      %2743 = vmatpush1.msra.mxu0 0.0
      %2744 = vmatprep.subr.mxu0 0.0
      %2745 = vmatpush1.msra.mxu0 0.0
      %2746 = vmatprep.subr.mxu0 0.0
      %2747 = vmatpush1.msra.mxu0 0.0
      %2748 = vmatprep.subr.mxu0 0.0
      %2749 = vmatpush1.msra.mxu0 0.0
      %2750 = vmatprep.subr.mxu0 0.0
      %2751 = vmatpush1.msra.mxu0 0.0
      %2752 = vmatprep.subr.mxu0 0.0
      %2753 = vmatpush1.msra.mxu0 0.0
      %2754 = vmatprep.subr.mxu0 0.0
      %2755 = vmatpush1.msra.mxu0 0.0
      %2756 = vmatprep.subr.mxu0 0.0
      %2757 = vmatpush1.msra.mxu0 0.0
      %2758 = vmatprep.subr.mxu0 0.0
      %2759 = vmatpush1.msra.mxu0 0.0
      %2760 = vmatprep.subr.mxu0 0.0
      %2761 = vmatpush1.msra.mxu0 0.0
      %2762 = vmatprep.subr.mxu0 0.0
      %2763 = vmatpush1.msra.mxu0 0.0
      %2764 = vmatprep.subr.mxu0 0.0
      %2765 = vmatpush1.msra.mxu0 0.0
      %2766 = vmatprep.subr.mxu0 0.0
      %2767 = vmatpush1.msra.mxu0 0.0
      %2768 = vmatprep.subr.mxu0 0.0
      %2769 = vmatpush1.msra.mxu0 0.0
      %2770 = vmatprep.subr.mxu0 0.0
      %2771 = vmatpush1.msra.mxu0 0.0
      %2772 = vmatprep.mubr.f32.mxu0 0.0
      %v2773 = vand.u32 %v2357, 4294901760
      %2774 = vmatmul.mubr.f32.gmra.mrb[0].mxu0 %v2773
      %v2775 = vpop.f32.mrb[0].mxu0
      %v2776 = vadd.f32 %v2691, %v2775
      %v2777 = vpop.f32.mrb[0].mxu0
      %2778 = vmatprep.mubr.f32.mxu0 0.0
      %v2779 = vand.u32 %v2360, 4294901760
      %2780 = vmatmul.mubr.f32.gmra.mrb[0].mxu0 %v2779
      %v2781 = vpop.f32.mrb[0].mxu0
      %v2782 = vadd.f32 %v2699, %v2781
      %v2783 = vpop.f32.mrb[0].mxu0
      %2784 = vdwg.mxu0
      %2785 = vmatprep.subr.mxu0 0.0
      %v2786 = vand.u32 %v264, 4294901760
      %2787 = vmatpush1.msra.mxu0 %v2786
      %2788 = vmatprep.subr.mxu0 0.0
      %v2789 = vand.u32 %v265, 4294901760
      %2790 = vmatpush1.msra.mxu0 %v2789
      %2791 = vmatprep.subr.mxu0 0.0
      %2792 = vmatpush1.msra.mxu0 0.0
      %2793 = vmatprep.subr.mxu0 0.0
      %2794 = vmatpush1.msra.mxu0 0.0
      %2795 = vmatprep.subr.mxu0 0.0
      %2796 = vmatpush1.msra.mxu0 0.0
      %2797 = vmatprep.subr.mxu0 0.0
      %2798 = vmatpush1.msra.mxu0 0.0
      %2799 = vmatprep.subr.mxu0 0.0
      %2800 = vmatpush1.msra.mxu0 0.0
      %2801 = vmatprep.subr.mxu0 0.0
      %2802 = vmatpush1.msra.mxu0 0.0
      %2803 = vmatprep.subr.mxu0 0.0
      %2804 = vmatpush1.msra.mxu0 0.0
      %2805 = vmatprep.subr.mxu0 0.0
      %2806 = vmatpush1.msra.mxu0 0.0
      %2807 = vmatprep.subr.mxu0 0.0
      %2808 = vmatpush1.msra.mxu0 0.0
      %2809 = vmatprep.subr.mxu0 0.0
      %2810 = vmatpush1.msra.mxu0 0.0
      %2811 = vmatprep.subr.mxu0 0.0
      %2812 = vmatpush1.msra.mxu0 0.0
      %2813 = vmatprep.subr.mxu0 0.0
      %2814 = vmatpush1.msra.mxu0 0.0
      %2815 = vmatprep.subr.mxu0 0.0
      %2816 = vmatpush1.msra.mxu0 0.0
      %2817 = vmatprep.subr.mxu0 0.0
      %2818 = vmatpush1.msra.mxu0 0.0
      %2819 = vmatprep.subr.mxu0 0.0
      %2820 = vmatpush1.msra.mxu0 0.0
      %2821 = vmatprep.subr.mxu0 0.0
      %2822 = vmatpush1.msra.mxu0 0.0
      %2823 = vmatprep.subr.mxu0 0.0
      %2824 = vmatpush1.msra.mxu0 0.0
      %2825 = vmatprep.subr.mxu0 0.0
      %2826 = vmatpush1.msra.mxu0 0.0
      %2827 = vmatprep.subr.mxu0 0.0
      %2828 = vmatpush1.msra.mxu0 0.0
      %2829 = vmatprep.subr.mxu0 0.0
      %2830 = vmatpush1.msra.mxu0 0.0
      %2831 = vmatprep.subr.mxu0 0.0
      %2832 = vmatpush1.msra.mxu0 0.0
      %2833 = vmatprep.subr.mxu0 0.0
      %2834 = vmatpush1.msra.mxu0 0.0
      %2835 = vmatprep.subr.mxu0 0.0
      %2836 = vmatpush1.msra.mxu0 0.0
      %2837 = vmatprep.subr.mxu0 0.0
      %2838 = vmatpush1.msra.mxu0 0.0
      %2839 = vmatprep.subr.mxu0 0.0
      %2840 = vmatpush1.msra.mxu0 0.0
      %2841 = vmatprep.subr.mxu0 0.0
      %2842 = vmatpush1.msra.mxu0 0.0
      %2843 = vmatprep.subr.mxu0 0.0
      %2844 = vmatpush1.msra.mxu0 0.0
      %2845 = vmatprep.subr.mxu0 0.0
      %2846 = vmatpush1.msra.mxu0 0.0
      %2847 = vmatprep.subr.mxu0 0.0
      %2848 = vmatpush1.msra.mxu0 0.0
      %2849 = vmatprep.subr.mxu0 0.0
      %2850 = vmatpush1.msra.mxu0 0.0
      %2851 = vmatprep.mubr.f32.mxu0 0.0
      %v2852 = vand.u32 %v2357, 4294901760
      %2853 = vmatmul.mubr.f32.gmra.mrb[0].mxu0 %v2852
      %v2854 = vpop.f32.mrb[0].mxu0
      %v2855 = vadd.f32 %v2776, %v2854
      %v2856 = vpop.f32.mrb[0].mxu0
      %2857 = vmatprep.mubr.f32.mxu0 0.0
      %v2858 = vand.u32 %v2360, 4294901760
      %2859 = vmatmul.mubr.f32.gmra.mrb[0].mxu0 %v2858
      %v2860 = vpop.f32.mrb[0].mxu0
      %v2861 = vadd.f32 %v2782, %v2860
      %v2862 = vpop.f32.mrb[0].mxu0
      %2863 = vdwg.mxu0
      %v2864 = vmax.f32 %v2346, %v2855
      %v2865 = vmax.f32 %v2352, %v2861
      %v2867 = vsel %vm2355, %v2855, 0
      %v2870 = vsel %vm2355, %v2861, 0
      %2872 = vmatprep.subr.mxu0 0.0
      %v2873 = vand.u32 %v264, 4294901760
      %2874 = vmatpush1.msra.mxu0 %v2873
      %2875 = vmatprep.subr.mxu0 0.0
      %v2876 = vand.u32 %v265, 4294901760
      %2877 = vmatpush1.msra.mxu0 %v2876
      %2878 = vmatprep.subr.mxu0 0.0
      %2879 = vmatpush1.msra.mxu0 0.0
      %2880 = vmatprep.subr.mxu0 0.0
      %2881 = vmatpush1.msra.mxu0 0.0
      %2882 = vmatprep.subr.mxu0 0.0
      %2883 = vmatpush1.msra.mxu0 0.0
      %2884 = vmatprep.subr.mxu0 0.0
      %2885 = vmatpush1.msra.mxu0 0.0
      %2886 = vmatprep.subr.mxu0 0.0
      %2887 = vmatpush1.msra.mxu0 0.0
      %2888 = vmatprep.subr.mxu0 0.0
      %2889 = vmatpush1.msra.mxu0 0.0
      %2890 = vmatprep.subr.mxu0 0.0
      %2891 = vmatpush1.msra.mxu0 0.0
      %2892 = vmatprep.subr.mxu0 0.0
      %2893 = vmatpush1.msra.mxu0 0.0
      %2894 = vmatprep.subr.mxu0 0.0
      %2895 = vmatpush1.msra.mxu0 0.0
      %2896 = vmatprep.subr.mxu0 0.0
      %2897 = vmatpush1.msra.mxu0 0.0
      %2898 = vmatprep.subr.mxu0 0.0
      %2899 = vmatpush1.msra.mxu0 0.0
      %2900 = vmatprep.subr.mxu0 0.0
      %2901 = vmatpush1.msra.mxu0 0.0
      %2902 = vmatprep.subr.mxu0 0.0
      %2903 = vmatpush1.msra.mxu0 0.0
      %2904 = vmatprep.subr.mxu0 0.0
      %2905 = vmatpush1.msra.mxu0 0.0
      %2906 = vmatprep.subr.mxu0 0.0
      %2907 = vmatpush1.msra.mxu0 0.0
      %2908 = vmatprep.subr.mxu0 0.0
      %2909 = vmatpush1.msra.mxu0 0.0
      %2910 = vmatprep.subr.mxu0 0.0
      %2911 = vmatpush1.msra.mxu0 0.0
      %2912 = vmatprep.subr.mxu0 0.0
      %2913 = vmatpush1.msra.mxu0 0.0
      %2914 = vmatprep.subr.mxu0 0.0
      %2915 = vmatpush1.msra.mxu0 0.0
      %2916 = vmatprep.subr.mxu0 0.0
      %2917 = vmatpush1.msra.mxu0 0.0
      %2918 = vmatprep.subr.mxu0 0.0
      %2919 = vmatpush1.msra.mxu0 0.0
      %2920 = vmatprep.subr.mxu0 0.0
      %2921 = vmatpush1.msra.mxu0 0.0
      %2922 = vmatprep.subr.mxu0 0.0
      %2923 = vmatpush1.msra.mxu0 0.0
      %2924 = vmatprep.subr.mxu0 0.0
      %2925 = vmatpush1.msra.mxu0 0.0
      %2926 = vmatprep.subr.mxu0 0.0
      %2927 = vmatpush1.msra.mxu0 0.0
      %2928 = vmatprep.subr.mxu0 0.0
      %2929 = vmatpush1.msra.mxu0 0.0
      %2930 = vmatprep.subr.mxu0 0.0
      %2931 = vmatpush1.msra.mxu0 0.0
      %2932 = vmatprep.subr.mxu0 0.0
      %2933 = vmatpush1.msra.mxu0 0.0
      %2934 = vmatprep.subr.mxu0 0.0
      %2935 = vmatpush1.msra.mxu0 0.0
      %2936 = vmatprep.subr.mxu0 0.0
      %2937 = vmatpush1.msra.mxu0 0.0
      %2938 = vmatprep.mubr.f32.mxu0 0.0
      %v2939 = vand.u32 %v2867, 4294901760
      %v2940 = vsub.f32 %v2867, %v2939
      %v2941 = vand.u32 %v2940, 4294901760
      %v2942 = vsub.f32 %v2940, %v2941
      %v2943 = vand.u32 %v2942, 4294901760
      %2944 = vmatmul.mubr.f32.gmra.mrb[0].mxu0 %v2943
      %v2945 = vpop.f32.mrb[0].mxu0
      %v2946 = vadd.f32 0.0, %v2945
      %v2947 = vpop.f32.mrb[0].mxu0
      %2948 = vmatprep.mubr.f32.mxu0 0.0
      %v2949 = vand.u32 %v2870, 4294901760
      %v2950 = vsub.f32 %v2870, %v2949
      %v2951 = vand.u32 %v2950, 4294901760
      %v2952 = vsub.f32 %v2950, %v2951
      %v2953 = vand.u32 %v2952, 4294901760
      %2954 = vmatmul.mubr.f32.gmra.mrb[0].mxu0 %v2953
      %v2955 = vpop.f32.mrb[0].mxu0
      %v2956 = vadd.f32 0.0, %v2955
      %v2957 = vpop.f32.mrb[0].mxu0
      %2958 = vdwg.mxu0
      %2959 = vmatprep.subr.mxu0 0.0
      %v2960 = vand.u32 %v264, 4294901760
      %v2961 = vsub.f32 %v264, %v2960
      %v2962 = vand.u32 %v2961, 4294901760
      %v2963 = vsub.f32 %v2961, %v2962
      %v2964 = vand.u32 %v2963, 4294901760
      %2965 = vmatpush1.msra.mxu0 %v2964
      %2966 = vmatprep.subr.mxu0 0.0
      %v2967 = vand.u32 %v265, 4294901760
      %v2968 = vsub.f32 %v265, %v2967
      %v2969 = vand.u32 %v2968, 4294901760
      %v2970 = vsub.f32 %v2968, %v2969
      %v2971 = vand.u32 %v2970, 4294901760
      %2972 = vmatpush1.msra.mxu0 %v2971
      %2973 = vmatprep.subr.mxu0 0.0
      %2974 = vmatpush1.msra.mxu0 0.0
      %2975 = vmatprep.subr.mxu0 0.0
      %2976 = vmatpush1.msra.mxu0 0.0
      %2977 = vmatprep.subr.mxu0 0.0
      %2978 = vmatpush1.msra.mxu0 0.0
      %2979 = vmatprep.subr.mxu0 0.0
      %2980 = vmatpush1.msra.mxu0 0.0
      %2981 = vmatprep.subr.mxu0 0.0
      %2982 = vmatpush1.msra.mxu0 0.0
      %2983 = vmatprep.subr.mxu0 0.0
      %2984 = vmatpush1.msra.mxu0 0.0
      %2985 = vmatprep.subr.mxu0 0.0
      %2986 = vmatpush1.msra.mxu0 0.0
      %2987 = vmatprep.subr.mxu0 0.0
      %2988 = vmatpush1.msra.mxu0 0.0
      %2989 = vmatprep.subr.mxu0 0.0
      %2990 = vmatpush1.msra.mxu0 0.0
      %2991 = vmatprep.subr.mxu0 0.0
      %2992 = vmatpush1.msra.mxu0 0.0
      %2993 = vmatprep.subr.mxu0 0.0
      %2994 = vmatpush1.msra.mxu0 0.0
      %2995 = vmatprep.subr.mxu0 0.0
      %2996 = vmatpush1.msra.mxu0 0.0
      %2997 = vmatprep.subr.mxu0 0.0
      %2998 = vmatpush1.msra.mxu0 0.0
      %2999 = vmatprep.subr.mxu0 0.0
      %3000 = vmatpush1.msra.mxu0 0.0
      %3001 = vmatprep.subr.mxu0 0.0
      %3002 = vmatpush1.msra.mxu0 0.0
      %3003 = vmatprep.subr.mxu0 0.0
      %3004 = vmatpush1.msra.mxu0 0.0
      %3005 = vmatprep.subr.mxu0 0.0
      %3006 = vmatpush1.msra.mxu0 0.0
      %3007 = vmatprep.subr.mxu0 0.0
      %3008 = vmatpush1.msra.mxu0 0.0
      %3009 = vmatprep.subr.mxu0 0.0
      %3010 = vmatpush1.msra.mxu0 0.0
      %3011 = vmatprep.subr.mxu0 0.0
      %3012 = vmatpush1.msra.mxu0 0.0
      %3013 = vmatprep.subr.mxu0 0.0
      %3014 = vmatpush1.msra.mxu0 0.0
      %3015 = vmatprep.subr.mxu0 0.0
      %3016 = vmatpush1.msra.mxu0 0.0
      %3017 = vmatprep.subr.mxu0 0.0
      %3018 = vmatpush1.msra.mxu0 0.0
      %3019 = vmatprep.subr.mxu0 0.0
      %3020 = vmatpush1.msra.mxu0 0.0
      %3021 = vmatprep.subr.mxu0 0.0
      %3022 = vmatpush1.msra.mxu0 0.0
      %3023 = vmatprep.subr.mxu0 0.0
      %3024 = vmatpush1.msra.mxu0 0.0
      %3025 = vmatprep.subr.mxu0 0.0
      %3026 = vmatpush1.msra.mxu0 0.0
      %3027 = vmatprep.subr.mxu0 0.0
      %3028 = vmatpush1.msra.mxu0 0.0
      %3029 = vmatprep.subr.mxu0 0.0
      %3030 = vmatpush1.msra.mxu0 0.0
      %3031 = vmatprep.subr.mxu0 0.0
      %3032 = vmatpush1.msra.mxu0 0.0
      %3033 = vmatprep.mubr.f32.mxu0 0.0
      %v3034 = vand.u32 %v2867, 4294901760
      %3035 = vmatmul.mubr.f32.gmra.mrb[0].mxu0 %v3034
      %v3036 = vpop.f32.mrb[0].mxu0
      %v3037 = vadd.f32 %v2946, %v3036
      %v3038 = vpop.f32.mrb[0].mxu0
      %3039 = vmatprep.mubr.f32.mxu0 0.0
      %v3040 = vand.u32 %v2870, 4294901760
      %3041 = vmatmul.mubr.f32.gmra.mrb[0].mxu0 %v3040
      %v3042 = vpop.f32.mrb[0].mxu0
      %v3043 = vadd.f32 %v2956, %v3042
      %v3044 = vpop.f32.mrb[0].mxu0
      %3045 = vdwg.mxu0
      %3046 = vmatprep.subr.mxu0 0.0
      %v3047 = vand.u32 %v264, 4294901760
      %v3048 = vsub.f32 %v264, %v3047
      %3049 = vmatpush1.msra.mxu0 %v3048
      %3050 = vmatprep.subr.mxu0 0.0
      %v3051 = vand.u32 %v265, 4294901760
      %v3052 = vsub.f32 %v265, %v3051
      %3053 = vmatpush1.msra.mxu0 %v3052
      %3054 = vmatprep.subr.mxu0 0.0
      %3055 = vmatpush1.msra.mxu0 0.0
      %3056 = vmatprep.subr.mxu0 0.0
      %3057 = vmatpush1.msra.mxu0 0.0
      %3058 = vmatprep.subr.mxu0 0.0
      %3059 = vmatpush1.msra.mxu0 0.0
      %3060 = vmatprep.subr.mxu0 0.0
      %3061 = vmatpush1.msra.mxu0 0.0
      %3062 = vmatprep.subr.mxu0 0.0
      %3063 = vmatpush1.msra.mxu0 0.0
      %3064 = vmatprep.subr.mxu0 0.0
      %3065 = vmatpush1.msra.mxu0 0.0
      %3066 = vmatprep.subr.mxu0 0.0
      %3067 = vmatpush1.msra.mxu0 0.0
      %3068 = vmatprep.subr.mxu0 0.0
      %3069 = vmatpush1.msra.mxu0 0.0
      %3070 = vmatprep.subr.mxu0 0.0
      %3071 = vmatpush1.msra.mxu0 0.0
      %3072 = vmatprep.subr.mxu0 0.0
      %3073 = vmatpush1.msra.mxu0 0.0
      %3074 = vmatprep.subr.mxu0 0.0
      %3075 = vmatpush1.msra.mxu0 0.0
      %3076 = vmatprep.subr.mxu0 0.0
      %3077 = vmatpush1.msra.mxu0 0.0
      %3078 = vmatprep.subr.mxu0 0.0
      %3079 = vmatpush1.msra.mxu0 0.0
      %3080 = vmatprep.subr.mxu0 0.0
      %3081 = vmatpush1.msra.mxu0 0.0
      %3082 = vmatprep.subr.mxu0 0.0
      %3083 = vmatpush1.msra.mxu0 0.0
      %3084 = vmatprep.subr.mxu0 0.0
      %3085 = vmatpush1.msra.mxu0 0.0
      %3086 = vmatprep.subr.mxu0 0.0
      %3087 = vmatpush1.msra.mxu0 0.0
      %3088 = vmatprep.subr.mxu0 0.0
      %3089 = vmatpush1.msra.mxu0 0.0
      %3090 = vmatprep.subr.mxu0 0.0
      %3091 = vmatpush1.msra.mxu0 0.0
      %3092 = vmatprep.subr.mxu0 0.0
      %3093 = vmatpush1.msra.mxu0 0.0
      %3094 = vmatprep.subr.mxu0 0.0
      %3095 = vmatpush1.msra.mxu0 0.0
      %3096 = vmatprep.subr.mxu0 0.0
      %3097 = vmatpush1.msra.mxu0 0.0
      %3098 = vmatprep.subr.mxu0 0.0
      %3099 = vmatpush1.msra.mxu0 0.0
      %3100 = vmatprep.subr.mxu0 0.0
      %3101 = vmatpush1.msra.mxu0 0.0
      %3102 = vmatprep.subr.mxu0 0.0
      %3103 = vmatpush1.msra.mxu0 0.0
      %3104 = vmatprep.subr.mxu0 0.0
      %3105 = vmatpush1.msra.mxu0 0.0
      %3106 = vmatprep.subr.mxu0 0.0
      %3107 = vmatpush1.msra.mxu0 0.0
      %3108 = vmatprep.subr.mxu0 0.0
      %3109 = vmatpush1.msra.mxu0 0.0
      %3110 = vmatprep.subr.mxu0 0.0
      %3111 = vmatpush1.msra.mxu0 0.0
      %3112 = vmatprep.subr.mxu0 0.0
      %3113 = vmatpush1.msra.mxu0 0.0
      %3114 = vmatprep.mubr.f32.mxu0 0.0
      %v3115 = vand.u32 %v2867, 4294901760
      %v3116 = vsub.f32 %v2867, %v3115
      %3117 = vmatmul.mubr.f32.gmra.mrb[0].mxu0 %v3116
      %v3118 = vpop.f32.mrb[0].mxu0
      %v3119 = vadd.f32 %v3037, %v3118
      %v3120 = vpop.f32.mrb[0].mxu0
      %3121 = vmatprep.mubr.f32.mxu0 0.0
      %v3122 = vand.u32 %v2870, 4294901760
      %v3123 = vsub.f32 %v2870, %v3122
      %3124 = vmatmul.mubr.f32.gmra.mrb[0].mxu0 %v3123
      %v3125 = vpop.f32.mrb[0].mxu0
      %v3126 = vadd.f32 %v3043, %v3125
      %v3127 = vpop.f32.mrb[0].mxu0
      %3128 = vdwg.mxu0
      %3129 = vmatprep.subr.mxu0 0.0
      %v3130 = vand.u32 %v264, 4294901760
      %3131 = vmatpush1.msra.mxu0 %v3130
      %3132 = vmatprep.subr.mxu0 0.0
      %v3133 = vand.u32 %v265, 4294901760
      %3134 = vmatpush1.msra.mxu0 %v3133
      %3135 = vmatprep.subr.mxu0 0.0
      %3136 = vmatpush1.msra.mxu0 0.0
      %3137 = vmatprep.subr.mxu0 0.0
      %3138 = vmatpush1.msra.mxu0 0.0
      %3139 = vmatprep.subr.mxu0 0.0
      %3140 = vmatpush1.msra.mxu0 0.0
      %3141 = vmatprep.subr.mxu0 0.0
      %3142 = vmatpush1.msra.mxu0 0.0
      %3143 = vmatprep.subr.mxu0 0.0
      %3144 = vmatpush1.msra.mxu0 0.0
      %3145 = vmatprep.subr.mxu0 0.0
      %3146 = vmatpush1.msra.mxu0 0.0
      %3147 = vmatprep.subr.mxu0 0.0
      %3148 = vmatpush1.msra.mxu0 0.0
      %3149 = vmatprep.subr.mxu0 0.0
      %3150 = vmatpush1.msra.mxu0 0.0
      %3151 = vmatprep.subr.mxu0 0.0
      %3152 = vmatpush1.msra.mxu0 0.0
      %3153 = vmatprep.subr.mxu0 0.0
      %3154 = vmatpush1.msra.mxu0 0.0
      %3155 = vmatprep.subr.mxu0 0.0
      %3156 = vmatpush1.msra.mxu0 0.0
      %3157 = vmatprep.subr.mxu0 0.0
      %3158 = vmatpush1.msra.mxu0 0.0
      %3159 = vmatprep.subr.mxu0 0.0
      %3160 = vmatpush1.msra.mxu0 0.0
      %3161 = vmatprep.subr.mxu0 0.0
      %3162 = vmatpush1.msra.mxu0 0.0
      %3163 = vmatprep.subr.mxu0 0.0
      %3164 = vmatpush1.msra.mxu0 0.0
      %3165 = vmatprep.subr.mxu0 0.0
      %3166 = vmatpush1.msra.mxu0 0.0
      %3167 = vmatprep.subr.mxu0 0.0
      %3168 = vmatpush1.msra.mxu0 0.0
      %3169 = vmatprep.subr.mxu0 0.0
      %3170 = vmatpush1.msra.mxu0 0.0
      %3171 = vmatprep.subr.mxu0 0.0
      %3172 = vmatpush1.msra.mxu0 0.0
      %3173 = vmatprep.subr.mxu0 0.0
      %3174 = vmatpush1.msra.mxu0 0.0
      %3175 = vmatprep.subr.mxu0 0.0
      %3176 = vmatpush1.msra.mxu0 0.0
      %3177 = vmatprep.subr.mxu0 0.0
      %3178 = vmatpush1.msra.mxu0 0.0
      %3179 = vmatprep.subr.mxu0 0.0
      %3180 = vmatpush1.msra.mxu0 0.0
      %3181 = vmatprep.subr.mxu0 0.0
      %3182 = vmatpush1.msra.mxu0 0.0
      %3183 = vmatprep.subr.mxu0 0.0
      %3184 = vmatpush1.msra.mxu0 0.0
      %3185 = vmatprep.subr.mxu0 0.0
      %3186 = vmatpush1.msra.mxu0 0.0
      %3187 = vmatprep.subr.mxu0 0.0
      %3188 = vmatpush1.msra.mxu0 0.0
      %3189 = vmatprep.subr.mxu0 0.0
      %3190 = vmatpush1.msra.mxu0 0.0
      %3191 = vmatprep.subr.mxu0 0.0
      %3192 = vmatpush1.msra.mxu0 0.0
      %3193 = vmatprep.subr.mxu0 0.0
      %3194 = vmatpush1.msra.mxu0 0.0
      %3195 = vmatprep.mubr.f32.mxu0 0.0
      %v3196 = vand.u32 %v2867, 4294901760
      %v3197 = vsub.f32 %v2867, %v3196
      %v3198 = vand.u32 %v3197, 4294901760
      %3199 = vmatmul.mubr.f32.gmra.mrb[0].mxu0 %v3198
      %v3200 = vpop.f32.mrb[0].mxu0
      %v3201 = vadd.f32 %v3119, %v3200
      %v3202 = vpop.f32.mrb[0].mxu0
      %3203 = vmatprep.mubr.f32.mxu0 0.0
      %v3204 = vand.u32 %v2870, 4294901760
      %v3205 = vsub.f32 %v2870, %v3204
      %v3206 = vand.u32 %v3205, 4294901760
      %3207 = vmatmul.mubr.f32.gmra.mrb[0].mxu0 %v3206
      %v3208 = vpop.f32.mrb[0].mxu0
      %v3209 = vadd.f32 %v3126, %v3208
      %v3210 = vpop.f32.mrb[0].mxu0
      %3211 = vdwg.mxu0
      %3212 = vmatprep.subr.mxu0 0.0
      %v3213 = vand.u32 %v264, 4294901760
      %v3214 = vsub.f32 %v264, %v3213
      %v3215 = vand.u32 %v3214, 4294901760
      %3216 = vmatpush1.msra.mxu0 %v3215
      %3217 = vmatprep.subr.mxu0 0.0
      %v3218 = vand.u32 %v265, 4294901760
      %v3219 = vsub.f32 %v265, %v3218
      %v3220 = vand.u32 %v3219, 4294901760
      %3221 = vmatpush1.msra.mxu0 %v3220
      %3222 = vmatprep.subr.mxu0 0.0
      %3223 = vmatpush1.msra.mxu0 0.0
      %3224 = vmatprep.subr.mxu0 0.0
      %3225 = vmatpush1.msra.mxu0 0.0
      %3226 = vmatprep.subr.mxu0 0.0
      %3227 = vmatpush1.msra.mxu0 0.0
      %3228 = vmatprep.subr.mxu0 0.0
      %3229 = vmatpush1.msra.mxu0 0.0
      %3230 = vmatprep.subr.mxu0 0.0
      %3231 = vmatpush1.msra.mxu0 0.0
      %3232 = vmatprep.subr.mxu0 0.0
      %3233 = vmatpush1.msra.mxu0 0.0
      %3234 = vmatprep.subr.mxu0 0.0
      %3235 = vmatpush1.msra.mxu0 0.0
      %3236 = vmatprep.subr.mxu0 0.0
      %3237 = vmatpush1.msra.mxu0 0.0
      %3238 = vmatprep.subr.mxu0 0.0
      %3239 = vmatpush1.msra.mxu0 0.0
      %3240 = vmatprep.subr.mxu0 0.0
      %3241 = vmatpush1.msra.mxu0 0.0
      %3242 = vmatprep.subr.mxu0 0.0
      %3243 = vmatpush1.msra.mxu0 0.0
      %3244 = vmatprep.subr.mxu0 0.0
      %3245 = vmatpush1.msra.mxu0 0.0
      %3246 = vmatprep.subr.mxu0 0.0
      %3247 = vmatpush1.msra.mxu0 0.0
      %3248 = vmatprep.subr.mxu0 0.0
      %3249 = vmatpush1.msra.mxu0 0.0
      %3250 = vmatprep.subr.mxu0 0.0
      %3251 = vmatpush1.msra.mxu0 0.0
      %3252 = vmatprep.subr.mxu0 0.0
      %3253 = vmatpush1.msra.mxu0 0.0
      %3254 = vmatprep.subr.mxu0 0.0
      %3255 = vmatpush1.msra.mxu0 0.0
      %3256 = vmatprep.subr.mxu0 0.0
      %3257 = vmatpush1.msra.mxu0 0.0
      %3258 = vmatprep.subr.mxu0 0.0
      %3259 = vmatpush1.msra.mxu0 0.0
      %3260 = vmatprep.subr.mxu0 0.0
      %3261 = vmatpush1.msra.mxu0 0.0
      %3262 = vmatprep.subr.mxu0 0.0
      %3263 = vmatpush1.msra.mxu0 0.0
      %3264 = vmatprep.subr.mxu0 0.0
      %3265 = vmatpush1.msra.mxu0 0.0
      %3266 = vmatprep.subr.mxu0 0.0
      %3267 = vmatpush1.msra.mxu0 0.0
      %3268 = vmatprep.subr.mxu0 0.0
      %3269 = vmatpush1.msra.mxu0 0.0
      %3270 = vmatprep.subr.mxu0 0.0
      %3271 = vmatpush1.msra.mxu0 0.0
      %3272 = vmatprep.subr.mxu0 0.0
      %3273 = vmatpush1.msra.mxu0 0.0
      %3274 = vmatprep.subr.mxu0 0.0
      %3275 = vmatpush1.msra.mxu0 0.0
      %3276 = vmatprep.subr.mxu0 0.0
      %3277 = vmatpush1.msra.mxu0 0.0
      %3278 = vmatprep.subr.mxu0 0.0
      %3279 = vmatpush1.msra.mxu0 0.0
      %3280 = vmatprep.subr.mxu0 0.0
      %3281 = vmatpush1.msra.mxu0 0.0
      %3282 = vmatprep.mubr.f32.mxu0 0.0
      %v3283 = vand.u32 %v2867, 4294901760
      %3284 = vmatmul.mubr.f32.gmra.mrb[0].mxu0 %v3283
      %v3285 = vpop.f32.mrb[0].mxu0
      %v3286 = vadd.f32 %v3201, %v3285
      %v3287 = vpop.f32.mrb[0].mxu0
      %3288 = vmatprep.mubr.f32.mxu0 0.0
      %v3289 = vand.u32 %v2870, 4294901760
      %3290 = vmatmul.mubr.f32.gmra.mrb[0].mxu0 %v3289
      %v3291 = vpop.f32.mrb[0].mxu0
      %v3292 = vadd.f32 %v3209, %v3291
      %v3293 = vpop.f32.mrb[0].mxu0
      %3294 = vdwg.mxu0
      %3295 = vmatprep.subr.mxu0 0.0
      %v3296 = vand.u32 %v264, 4294901760
      %3297 = vmatpush1.msra.mxu0 %v3296
      %3298 = vmatprep.subr.mxu0 0.0
      %v3299 = vand.u32 %v265, 4294901760
      %3300 = vmatpush1.msra.mxu0 %v3299
      %3301 = vmatprep.subr.mxu0 0.0
      %3302 = vmatpush1.msra.mxu0 0.0
      %3303 = vmatprep.subr.mxu0 0.0
      %3304 = vmatpush1.msra.mxu0 0.0
      %3305 = vmatprep.subr.mxu0 0.0
      %3306 = vmatpush1.msra.mxu0 0.0
      %3307 = vmatprep.subr.mxu0 0.0
      %3308 = vmatpush1.msra.mxu0 0.0
      %3309 = vmatprep.subr.mxu0 0.0
      %3310 = vmatpush1.msra.mxu0 0.0
      %3311 = vmatprep.subr.mxu0 0.0
      %3312 = vmatpush1.msra.mxu0 0.0
      %3313 = vmatprep.subr.mxu0 0.0
      %3314 = vmatpush1.msra.mxu0 0.0
      %3315 = vmatprep.subr.mxu0 0.0
      %3316 = vmatpush1.msra.mxu0 0.0
      %3317 = vmatprep.subr.mxu0 0.0
      %3318 = vmatpush1.msra.mxu0 0.0
      %3319 = vmatprep.subr.mxu0 0.0
      %3320 = vmatpush1.msra.mxu0 0.0
      %3321 = vmatprep.subr.mxu0 0.0
      %3322 = vmatpush1.msra.mxu0 0.0
      %3323 = vmatprep.subr.mxu0 0.0
      %3324 = vmatpush1.msra.mxu0 0.0
      %3325 = vmatprep.subr.mxu0 0.0
      %3326 = vmatpush1.msra.mxu0 0.0
      %3327 = vmatprep.subr.mxu0 0.0
      %3328 = vmatpush1.msra.mxu0 0.0
      %3329 = vmatprep.subr.mxu0 0.0
      %3330 = vmatpush1.msra.mxu0 0.0
      %3331 = vmatprep.subr.mxu0 0.0
      %3332 = vmatpush1.msra.mxu0 0.0
      %3333 = vmatprep.subr.mxu0 0.0
      %3334 = vmatpush1.msra.mxu0 0.0
      %3335 = vmatprep.subr.mxu0 0.0
      %3336 = vmatpush1.msra.mxu0 0.0
      %3337 = vmatprep.subr.mxu0 0.0
      %3338 = vmatpush1.msra.mxu0 0.0
      %3339 = vmatprep.subr.mxu0 0.0
      %3340 = vmatpush1.msra.mxu0 0.0
      %3341 = vmatprep.subr.mxu0 0.0
      %3342 = vmatpush1.msra.mxu0 0.0
      %3343 = vmatprep.subr.mxu0 0.0
      %3344 = vmatpush1.msra.mxu0 0.0
      %3345 = vmatprep.subr.mxu0 0.0
      %3346 = vmatpush1.msra.mxu0 0.0
      %3347 = vmatprep.subr.mxu0 0.0
      %3348 = vmatpush1.msra.mxu0 0.0
      %3349 = vmatprep.subr.mxu0 0.0
      %3350 = vmatpush1.msra.mxu0 0.0
      %3351 = vmatprep.subr.mxu0 0.0
      %3352 = vmatpush1.msra.mxu0 0.0
      %3353 = vmatprep.subr.mxu0 0.0
      %3354 = vmatpush1.msra.mxu0 0.0
      %3355 = vmatprep.subr.mxu0 0.0
      %3356 = vmatpush1.msra.mxu0 0.0
      %3357 = vmatprep.subr.mxu0 0.0
      %3358 = vmatpush1.msra.mxu0 0.0
      %3359 = vmatprep.subr.mxu0 0.0
      %3360 = vmatpush1.msra.mxu0 0.0
      %3361 = vmatprep.mubr.f32.mxu0 0.0
      %v3362 = vand.u32 %v2867, 4294901760
      %3363 = vmatmul.mubr.f32.gmra.mrb[0].mxu0 %v3362
      %v3364 = vpop.f32.mrb[0].mxu0
      %v3365 = vadd.f32 %v3286, %v3364
      %v3366 = vpop.f32.mrb[0].mxu0
      %3367 = vmatprep.mubr.f32.mxu0 0.0
      %v3368 = vand.u32 %v2870, 4294901760
      %3369 = vmatmul.mubr.f32.gmra.mrb[0].mxu0 %v3368
      %v3370 = vpop.f32.mrb[0].mxu0
      %v3371 = vadd.f32 %v3292, %v3370
      %v3372 = vpop.f32.mrb[0].mxu0
      %3373 = vdwg.mxu0
      %v3374 = vmax.f32 %v2864, %v3365
      %v3375 = vmax.f32 %v2865, %v3371
      %v3377 = vsel %vm2355, %v3365, 0
      %v3380 = vsel %vm2355, %v3371, 0
      %3382 = vmatprep.subr.mxu0 0.0
      %v3383 = vand.u32 %v264, 4294901760
      %3384 = vmatpush1.msra.mxu0 %v3383
      %3385 = vmatprep.subr.mxu0 0.0
      %v3386 = vand.u32 %v265, 4294901760
      %3387 = vmatpush1.msra.mxu0 %v3386
      %3388 = vmatprep.subr.mxu0 0.0
      %3389 = vmatpush1.msra.mxu0 0.0
      %3390 = vmatprep.subr.mxu0 0.0
      %3391 = vmatpush1.msra.mxu0 0.0
      %3392 = vmatprep.subr.mxu0 0.0
      %3393 = vmatpush1.msra.mxu0 0.0
      %3394 = vmatprep.subr.mxu0 0.0
      %3395 = vmatpush1.msra.mxu0 0.0
      %3396 = vmatprep.subr.mxu0 0.0
      %3397 = vmatpush1.msra.mxu0 0.0
      %3398 = vmatprep.subr.mxu0 0.0
      %3399 = vmatpush1.msra.mxu0 0.0
      %3400 = vmatprep.subr.mxu0 0.0
      %3401 = vmatpush1.msra.mxu0 0.0
      %3402 = vmatprep.subr.mxu0 0.0
      %3403 = vmatpush1.msra.mxu0 0.0
      %3404 = vmatprep.subr.mxu0 0.0
      %3405 = vmatpush1.msra.mxu0 0.0
      %3406 = vmatprep.subr.mxu0 0.0
      %3407 = vmatpush1.msra.mxu0 0.0
      %3408 = vmatprep.subr.mxu0 0.0
      %3409 = vmatpush1.msra.mxu0 0.0
      %3410 = vmatprep.subr.mxu0 0.0
      %3411 = vmatpush1.msra.mxu0 0.0
      %3412 = vmatprep.subr.mxu0 0.0
      %3413 = vmatpush1.msra.mxu0 0.0
      %3414 = vmatprep.subr.mxu0 0.0
      %3415 = vmatpush1.msra.mxu0 0.0
      %3416 = vmatprep.subr.mxu0 0.0
      %3417 = vmatpush1.msra.mxu0 0.0
      %3418 = vmatprep.subr.mxu0 0.0
      %3419 = vmatpush1.msra.mxu0 0.0
      %3420 = vmatprep.subr.mxu0 0.0
      %3421 = vmatpush1.msra.mxu0 0.0
      %3422 = vmatprep.subr.mxu0 0.0
      %3423 = vmatpush1.msra.mxu0 0.0
      %3424 = vmatprep.subr.mxu0 0.0
      %3425 = vmatpush1.msra.mxu0 0.0
      %3426 = vmatprep.subr.mxu0 0.0
      %3427 = vmatpush1.msra.mxu0 0.0
      %3428 = vmatprep.subr.mxu0 0.0
      %3429 = vmatpush1.msra.mxu0 0.0
      %3430 = vmatprep.subr.mxu0 0.0
      %3431 = vmatpush1.msra.mxu0 0.0
      %3432 = vmatprep.subr.mxu0 0.0
      %3433 = vmatpush1.msra.mxu0 0.0
      %3434 = vmatprep.subr.mxu0 0.0
      %3435 = vmatpush1.msra.mxu0 0.0
      %3436 = vmatprep.subr.mxu0 0.0
      %3437 = vmatpush1.msra.mxu0 0.0
      %3438 = vmatprep.subr.mxu0 0.0
      %3439 = vmatpush1.msra.mxu0 0.0
      %3440 = vmatprep.subr.mxu0 0.0
      %3441 = vmatpush1.msra.mxu0 0.0
      %3442 = vmatprep.subr.mxu0 0.0
      %3443 = vmatpush1.msra.mxu0 0.0
      %3444 = vmatprep.subr.mxu0 0.0
      %3445 = vmatpush1.msra.mxu0 0.0
      %3446 = vmatprep.subr.mxu0 0.0
      %3447 = vmatpush1.msra.mxu0 0.0
      %3448 = vmatprep.mubr.f32.mxu0 0.0
      %v3449 = vand.u32 %v3377, 4294901760
      %v3450 = vsub.f32 %v3377, %v3449
      %v3451 = vand.u32 %v3450, 4294901760
      %v3452 = vsub.f32 %v3450, %v3451
      %v3453 = vand.u32 %v3452, 4294901760
      %3454 = vmatmul.mubr.f32.gmra.mrb[0].mxu0 %v3453
      %v3455 = vpop.f32.mrb[0].mxu0
      %v3456 = vadd.f32 0.0, %v3455
      %v3457 = vpop.f32.mrb[0].mxu0
      %3458 = vmatprep.mubr.f32.mxu0 0.0
      %v3459 = vand.u32 %v3380, 4294901760
      %v3460 = vsub.f32 %v3380, %v3459
      %v3461 = vand.u32 %v3460, 4294901760
      %v3462 = vsub.f32 %v3460, %v3461
      %v3463 = vand.u32 %v3462, 4294901760
      %3464 = vmatmul.mubr.f32.gmra.mrb[0].mxu0 %v3463
      %v3465 = vpop.f32.mrb[0].mxu0
      %v3466 = vadd.f32 0.0, %v3465
      %v3467 = vpop.f32.mrb[0].mxu0
      %3468 = vdwg.mxu0
      %3469 = vmatprep.subr.mxu0 0.0
      %v3470 = vand.u32 %v264, 4294901760
      %v3471 = vsub.f32 %v264, %v3470
      %v3472 = vand.u32 %v3471, 4294901760
      %v3473 = vsub.f32 %v3471, %v3472
      %v3474 = vand.u32 %v3473, 4294901760
      %3475 = vmatpush1.msra.mxu0 %v3474
      %3476 = vmatprep.subr.mxu0 0.0
      %v3477 = vand.u32 %v265, 4294901760
      %v3478 = vsub.f32 %v265, %v3477
      %v3479 = vand.u32 %v3478, 4294901760
      %v3480 = vsub.f32 %v3478, %v3479
      %v3481 = vand.u32 %v3480, 4294901760
      %3482 = vmatpush1.msra.mxu0 %v3481
      %3483 = vmatprep.subr.mxu0 0.0
      %3484 = vmatpush1.msra.mxu0 0.0
      %3485 = vmatprep.subr.mxu0 0.0
      %3486 = vmatpush1.msra.mxu0 0.0
      %3487 = vmatprep.subr.mxu0 0.0
      %3488 = vmatpush1.msra.mxu0 0.0
      %3489 = vmatprep.subr.mxu0 0.0
      %3490 = vmatpush1.msra.mxu0 0.0
      %3491 = vmatprep.subr.mxu0 0.0
      %3492 = vmatpush1.msra.mxu0 0.0
      %3493 = vmatprep.subr.mxu0 0.0
      %3494 = vmatpush1.msra.mxu0 0.0
      %3495 = vmatprep.subr.mxu0 0.0
      %3496 = vmatpush1.msra.mxu0 0.0
      %3497 = vmatprep.subr.mxu0 0.0
      %3498 = vmatpush1.msra.mxu0 0.0
      %3499 = vmatprep.subr.mxu0 0.0
      %3500 = vmatpush1.msra.mxu0 0.0
      %3501 = vmatprep.subr.mxu0 0.0
      %3502 = vmatpush1.msra.mxu0 0.0
      %3503 = vmatprep.subr.mxu0 0.0
      %3504 = vmatpush1.msra.mxu0 0.0
      %3505 = vmatprep.subr.mxu0 0.0
      %3506 = vmatpush1.msra.mxu0 0.0
      %3507 = vmatprep.subr.mxu0 0.0
      %3508 = vmatpush1.msra.mxu0 0.0
      %3509 = vmatprep.subr.mxu0 0.0
      %3510 = vmatpush1.msra.mxu0 0.0
      %3511 = vmatprep.subr.mxu0 0.0
      %3512 = vmatpush1.msra.mxu0 0.0
      %3513 = vmatprep.subr.mxu0 0.0
      %3514 = vmatpush1.msra.mxu0 0.0
      %3515 = vmatprep.subr.mxu0 0.0
      %3516 = vmatpush1.msra.mxu0 0.0
      %3517 = vmatprep.subr.mxu0 0.0
      %3518 = vmatpush1.msra.mxu0 0.0
      %3519 = vmatprep.subr.mxu0 0.0
      %3520 = vmatpush1.msra.mxu0 0.0
      %3521 = vmatprep.subr.mxu0 0.0
      %3522 = vmatpush1.msra.mxu0 0.0
      %3523 = vmatprep.subr.mxu0 0.0
      %3524 = vmatpush1.msra.mxu0 0.0
      %3525 = vmatprep.subr.mxu0 0.0
      %3526 = vmatpush1.msra.mxu0 0.0
      %3527 = vmatprep.subr.mxu0 0.0
      %3528 = vmatpush1.msra.mxu0 0.0
      %3529 = vmatprep.subr.mxu0 0.0
      %3530 = vmatpush1.msra.mxu0 0.0
      %3531 = vmatprep.subr.mxu0 0.0
      %3532 = vmatpush1.msra.mxu0 0.0
      %3533 = vmatprep.subr.mxu0 0.0
      %3534 = vmatpush1.msra.mxu0 0.0
      %3535 = vmatprep.subr.mxu0 0.0
      %3536 = vmatpush1.msra.mxu0 0.0
      %3537 = vmatprep.subr.mxu0 0.0
      %3538 = vmatpush1.msra.mxu0 0.0
      %3539 = vmatprep.subr.mxu0 0.0
      %3540 = vmatpush1.msra.mxu0 0.0
      %3541 = vmatprep.subr.mxu0 0.0
      %3542 = vmatpush1.msra.mxu0 0.0
      %3543 = vmatprep.mubr.f32.mxu0 0.0
      %v3544 = vand.u32 %v3377, 4294901760
      %3545 = vmatmul.mubr.f32.gmra.mrb[0].mxu0 %v3544
      %v3546 = vpop.f32.mrb[0].mxu0
      %v3547 = vadd.f32 %v3456, %v3546
      %v3548 = vpop.f32.mrb[0].mxu0
      %3549 = vmatprep.mubr.f32.mxu0 0.0
      %v3550 = vand.u32 %v3380, 4294901760
      %3551 = vmatmul.mubr.f32.gmra.mrb[0].mxu0 %v3550
      %v3552 = vpop.f32.mrb[0].mxu0
      %v3553 = vadd.f32 %v3466, %v3552
      %v3554 = vpop.f32.mrb[0].mxu0
      %3555 = vdwg.mxu0
      %3556 = vmatprep.subr.mxu0 0.0
      %v3557 = vand.u32 %v264, 4294901760
      %v3558 = vsub.f32 %v264, %v3557
      %3559 = vmatpush1.msra.mxu0 %v3558
      %3560 = vmatprep.subr.mxu0 0.0
      %v3561 = vand.u32 %v265, 4294901760
      %v3562 = vsub.f32 %v265, %v3561
      %3563 = vmatpush1.msra.mxu0 %v3562
      %3564 = vmatprep.subr.mxu0 0.0
      %3565 = vmatpush1.msra.mxu0 0.0
      %3566 = vmatprep.subr.mxu0 0.0
      %3567 = vmatpush1.msra.mxu0 0.0
      %3568 = vmatprep.subr.mxu0 0.0
      %3569 = vmatpush1.msra.mxu0 0.0
      %3570 = vmatprep.subr.mxu0 0.0
      %3571 = vmatpush1.msra.mxu0 0.0
      %3572 = vmatprep.subr.mxu0 0.0
      %3573 = vmatpush1.msra.mxu0 0.0
      %3574 = vmatprep.subr.mxu0 0.0
      %3575 = vmatpush1.msra.mxu0 0.0
      %3576 = vmatprep.subr.mxu0 0.0
      %3577 = vmatpush1.msra.mxu0 0.0
      %3578 = vmatprep.subr.mxu0 0.0
      %3579 = vmatpush1.msra.mxu0 0.0
      %3580 = vmatprep.subr.mxu0 0.0
      %3581 = vmatpush1.msra.mxu0 0.0
      %3582 = vmatprep.subr.mxu0 0.0
      %3583 = vmatpush1.msra.mxu0 0.0
      %3584 = vmatprep.subr.mxu0 0.0
      %3585 = vmatpush1.msra.mxu0 0.0
      %3586 = vmatprep.subr.mxu0 0.0
      %3587 = vmatpush1.msra.mxu0 0.0
      %3588 = vmatprep.subr.mxu0 0.0
      %3589 = vmatpush1.msra.mxu0 0.0
      %3590 = vmatprep.subr.mxu0 0.0
      %3591 = vmatpush1.msra.mxu0 0.0
      %3592 = vmatprep.subr.mxu0 0.0
      %3593 = vmatpush1.msra.mxu0 0.0
      %3594 = vmatprep.subr.mxu0 0.0
      %3595 = vmatpush1.msra.mxu0 0.0
      %3596 = vmatprep.subr.mxu0 0.0
      %3597 = vmatpush1.msra.mxu0 0.0
      %3598 = vmatprep.subr.mxu0 0.0
      %3599 = vmatpush1.msra.mxu0 0.0
      %3600 = vmatprep.subr.mxu0 0.0
      %3601 = vmatpush1.msra.mxu0 0.0
      %3602 = vmatprep.subr.mxu0 0.0
      %3603 = vmatpush1.msra.mxu0 0.0
      %3604 = vmatprep.subr.mxu0 0.0
      %3605 = vmatpush1.msra.mxu0 0.0
      %3606 = vmatprep.subr.mxu0 0.0
      %3607 = vmatpush1.msra.mxu0 0.0
      %3608 = vmatprep.subr.mxu0 0.0
      %3609 = vmatpush1.msra.mxu0 0.0
      %3610 = vmatprep.subr.mxu0 0.0
      %3611 = vmatpush1.msra.mxu0 0.0
      %3612 = vmatprep.subr.mxu0 0.0
      %3613 = vmatpush1.msra.mxu0 0.0
      %3614 = vmatprep.subr.mxu0 0.0
      %3615 = vmatpush1.msra.mxu0 0.0
      %3616 = vmatprep.subr.mxu0 0.0
      %3617 = vmatpush1.msra.mxu0 0.0
      %3618 = vmatprep.subr.mxu0 0.0
      %3619 = vmatpush1.msra.mxu0 0.0
      %3620 = vmatprep.subr.mxu0 0.0
      %3621 = vmatpush1.msra.mxu0 0.0
      %3622 = vmatprep.subr.mxu0 0.0
      %3623 = vmatpush1.msra.mxu0 0.0
      %3624 = vmatprep.mubr.f32.mxu0 0.0
      %v3625 = vand.u32 %v3377, 4294901760
      %v3626 = vsub.f32 %v3377, %v3625
      %3627 = vmatmul.mubr.f32.gmra.mrb[0].mxu0 %v3626
      %v3628 = vpop.f32.mrb[0].mxu0
      %v3629 = vadd.f32 %v3547, %v3628
      %v3630 = vpop.f32.mrb[0].mxu0
      %3631 = vmatprep.mubr.f32.mxu0 0.0
      %v3632 = vand.u32 %v3380, 4294901760
      %v3633 = vsub.f32 %v3380, %v3632
      %3634 = vmatmul.mubr.f32.gmra.mrb[0].mxu0 %v3633
      %v3635 = vpop.f32.mrb[0].mxu0
      %v3636 = vadd.f32 %v3553, %v3635
      %v3637 = vpop.f32.mrb[0].mxu0
      %3638 = vdwg.mxu0
      %3639 = vmatprep.subr.mxu0 0.0
      %v3640 = vand.u32 %v264, 4294901760
      %3641 = vmatpush1.msra.mxu0 %v3640
      %3642 = vmatprep.subr.mxu0 0.0
      %v3643 = vand.u32 %v265, 4294901760
      %3644 = vmatpush1.msra.mxu0 %v3643
      %3645 = vmatprep.subr.mxu0 0.0
      %3646 = vmatpush1.msra.mxu0 0.0
      %3647 = vmatprep.subr.mxu0 0.0
      %3648 = vmatpush1.msra.mxu0 0.0
      %3649 = vmatprep.subr.mxu0 0.0
      %3650 = vmatpush1.msra.mxu0 0.0
      %3651 = vmatprep.subr.mxu0 0.0
      %3652 = vmatpush1.msra.mxu0 0.0
      %3653 = vmatprep.subr.mxu0 0.0
      %3654 = vmatpush1.msra.mxu0 0.0
      %3655 = vmatprep.subr.mxu0 0.0
      %3656 = vmatpush1.msra.mxu0 0.0
      %3657 = vmatprep.subr.mxu0 0.0
      %3658 = vmatpush1.msra.mxu0 0.0
      %3659 = vmatprep.subr.mxu0 0.0
      %3660 = vmatpush1.msra.mxu0 0.0
      %3661 = vmatprep.subr.mxu0 0.0
      %3662 = vmatpush1.msra.mxu0 0.0
      %3663 = vmatprep.subr.mxu0 0.0
      %3664 = vmatpush1.msra.mxu0 0.0
      %3665 = vmatprep.subr.mxu0 0.0
      %3666 = vmatpush1.msra.mxu0 0.0
      %3667 = vmatprep.subr.mxu0 0.0
      %3668 = vmatpush1.msra.mxu0 0.0
      %3669 = vmatprep.subr.mxu0 0.0
      %3670 = vmatpush1.msra.mxu0 0.0
      %3671 = vmatprep.subr.mxu0 0.0
      %3672 = vmatpush1.msra.mxu0 0.0
      %3673 = vmatprep.subr.mxu0 0.0
      %3674 = vmatpush1.msra.mxu0 0.0
      %3675 = vmatprep.subr.mxu0 0.0
      %3676 = vmatpush1.msra.mxu0 0.0
      %3677 = vmatprep.subr.mxu0 0.0
      %3678 = vmatpush1.msra.mxu0 0.0
      %3679 = vmatprep.subr.mxu0 0.0
      %3680 = vmatpush1.msra.mxu0 0.0
      %3681 = vmatprep.subr.mxu0 0.0
      %3682 = vmatpush1.msra.mxu0 0.0
      %3683 = vmatprep.subr.mxu0 0.0
      %3684 = vmatpush1.msra.mxu0 0.0
      %3685 = vmatprep.subr.mxu0 0.0
      %3686 = vmatpush1.msra.mxu0 0.0
      %3687 = vmatprep.subr.mxu0 0.0
      %3688 = vmatpush1.msra.mxu0 0.0
      %3689 = vmatprep.subr.mxu0 0.0
      %3690 = vmatpush1.msra.mxu0 0.0
      %3691 = vmatprep.subr.mxu0 0.0
      %3692 = vmatpush1.msra.mxu0 0.0
      %3693 = vmatprep.subr.mxu0 0.0
      %3694 = vmatpush1.msra.mxu0 0.0
      %3695 = vmatprep.subr.mxu0 0.0
      %3696 = vmatpush1.msra.mxu0 0.0
      %3697 = vmatprep.subr.mxu0 0.0
      %3698 = vmatpush1.msra.mxu0 0.0
      %3699 = vmatprep.subr.mxu0 0.0
      %3700 = vmatpush1.msra.mxu0 0.0
      %3701 = vmatprep.subr.mxu0 0.0
      %3702 = vmatpush1.msra.mxu0 0.0
      %3703 = vmatprep.subr.mxu0 0.0
      %3704 = vmatpush1.msra.mxu0 0.0
      %3705 = vmatprep.mubr.f32.mxu0 0.0
      %v3706 = vand.u32 %v3377, 4294901760
      %v3707 = vsub.f32 %v3377, %v3706
      %v3708 = vand.u32 %v3707, 4294901760
      %3709 = vmatmul.mubr.f32.gmra.mrb[0].mxu0 %v3708
      %v3710 = vpop.f32.mrb[0].mxu0
      %v3711 = vadd.f32 %v3629, %v3710
      %v3712 = vpop.f32.mrb[0].mxu0
      %3713 = vmatprep.mubr.f32.mxu0 0.0
      %v3714 = vand.u32 %v3380, 4294901760
      %v3715 = vsub.f32 %v3380, %v3714
      %v3716 = vand.u32 %v3715, 4294901760
      %3717 = vmatmul.mubr.f32.gmra.mrb[0].mxu0 %v3716
      %v3718 = vpop.f32.mrb[0].mxu0
      %v3719 = vadd.f32 %v3636, %v3718
      %v3720 = vpop.f32.mrb[0].mxu0
      %3721 = vdwg.mxu0
      %3722 = vmatprep.subr.mxu0 0.0
      %v3723 = vand.u32 %v264, 4294901760
      %v3724 = vsub.f32 %v264, %v3723
      %v3725 = vand.u32 %v3724, 4294901760
      %3726 = vmatpush1.msra.mxu0 %v3725
      %3727 = vmatprep.subr.mxu0 0.0
      %v3728 = vand.u32 %v265, 4294901760
      %v3729 = vsub.f32 %v265, %v3728
      %v3730 = vand.u32 %v3729, 4294901760
      %3731 = vmatpush1.msra.mxu0 %v3730
      %3732 = vmatprep.subr.mxu0 0.0
      %3733 = vmatpush1.msra.mxu0 0.0
      %3734 = vmatprep.subr.mxu0 0.0
      %3735 = vmatpush1.msra.mxu0 0.0
      %3736 = vmatprep.subr.mxu0 0.0
      %3737 = vmatpush1.msra.mxu0 0.0
      %3738 = vmatprep.subr.mxu0 0.0
      %3739 = vmatpush1.msra.mxu0 0.0
      %3740 = vmatprep.subr.mxu0 0.0
      %3741 = vmatpush1.msra.mxu0 0.0
      %3742 = vmatprep.subr.mxu0 0.0
      %3743 = vmatpush1.msra.mxu0 0.0
      %3744 = vmatprep.subr.mxu0 0.0
      %3745 = vmatpush1.msra.mxu0 0.0
      %3746 = vmatprep.subr.mxu0 0.0
      %3747 = vmatpush1.msra.mxu0 0.0
      %3748 = vmatprep.subr.mxu0 0.0
      %3749 = vmatpush1.msra.mxu0 0.0
      %3750 = vmatprep.subr.mxu0 0.0
      %3751 = vmatpush1.msra.mxu0 0.0
      %3752 = vmatprep.subr.mxu0 0.0
      %3753 = vmatpush1.msra.mxu0 0.0
      %3754 = vmatprep.subr.mxu0 0.0
      %3755 = vmatpush1.msra.mxu0 0.0
      %3756 = vmatprep.subr.mxu0 0.0
      %3757 = vmatpush1.msra.mxu0 0.0
      %3758 = vmatprep.subr.mxu0 0.0
      %3759 = vmatpush1.msra.mxu0 0.0
      %3760 = vmatprep.subr.mxu0 0.0
      %3761 = vmatpush1.msra.mxu0 0.0
      %3762 = vmatprep.subr.mxu0 0.0
      %3763 = vmatpush1.msra.mxu0 0.0
      %3764 = vmatprep.subr.mxu0 0.0
      %3765 = vmatpush1.msra.mxu0 0.0
      %3766 = vmatprep.subr.mxu0 0.0
      %3767 = vmatpush1.msra.mxu0 0.0
      %3768 = vmatprep.subr.mxu0 0.0
      %3769 = vmatpush1.msra.mxu0 0.0
      %3770 = vmatprep.subr.mxu0 0.0
      %3771 = vmatpush1.msra.mxu0 0.0
      %3772 = vmatprep.subr.mxu0 0.0
      %3773 = vmatpush1.msra.mxu0 0.0
      %3774 = vmatprep.subr.mxu0 0.0
      %3775 = vmatpush1.msra.mxu0 0.0
      %3776 = vmatprep.subr.mxu0 0.0
      %3777 = vmatpush1.msra.mxu0 0.0
      %3778 = vmatprep.subr.mxu0 0.0
      %3779 = vmatpush1.msra.mxu0 0.0
      %3780 = vmatprep.subr.mxu0 0.0
      %3781 = vmatpush1.msra.mxu0 0.0
      %3782 = vmatprep.subr.mxu0 0.0
      %3783 = vmatpush1.msra.mxu0 0.0
      %3784 = vmatprep.subr.mxu0 0.0
      %3785 = vmatpush1.msra.mxu0 0.0
      %3786 = vmatprep.subr.mxu0 0.0
      %3787 = vmatpush1.msra.mxu0 0.0
      %3788 = vmatprep.subr.mxu0 0.0
      %3789 = vmatpush1.msra.mxu0 0.0
      %3790 = vmatprep.subr.mxu0 0.0
      %3791 = vmatpush1.msra.mxu0 0.0
      %3792 = vmatprep.mubr.f32.mxu0 0.0
      %v3793 = vand.u32 %v3377, 4294901760
      %3794 = vmatmul.mubr.f32.gmra.mrb[0].mxu0 %v3793
      %v3795 = vpop.f32.mrb[0].mxu0
      %v3796 = vadd.f32 %v3711, %v3795
      %v3797 = vpop.f32.mrb[0].mxu0
      %3798 = vmatprep.mubr.f32.mxu0 0.0
      %v3799 = vand.u32 %v3380, 4294901760
      %3800 = vmatmul.mubr.f32.gmra.mrb[0].mxu0 %v3799
      %v3801 = vpop.f32.mrb[0].mxu0
      %v3802 = vadd.f32 %v3719, %v3801
      %v3803 = vpop.f32.mrb[0].mxu0
      %3804 = vdwg.mxu0
      %3805 = vmatprep.subr.mxu0 0.0
      %v3806 = vand.u32 %v264, 4294901760
      %3807 = vmatpush1.msra.mxu0 %v3806
      %3808 = vmatprep.subr.mxu0 0.0
      %v3809 = vand.u32 %v265, 4294901760
      %3810 = vmatpush1.msra.mxu0 %v3809
      %3811 = vmatprep.subr.mxu0 0.0
      %3812 = vmatpush1.msra.mxu0 0.0
      %3813 = vmatprep.subr.mxu0 0.0
      %3814 = vmatpush1.msra.mxu0 0.0
      %3815 = vmatprep.subr.mxu0 0.0
      %3816 = vmatpush1.msra.mxu0 0.0
      %3817 = vmatprep.subr.mxu0 0.0
      %3818 = vmatpush1.msra.mxu0 0.0
      %3819 = vmatprep.subr.mxu0 0.0
      %3820 = vmatpush1.msra.mxu0 0.0
      %3821 = vmatprep.subr.mxu0 0.0
      %3822 = vmatpush1.msra.mxu0 0.0
      %3823 = vmatprep.subr.mxu0 0.0
      %3824 = vmatpush1.msra.mxu0 0.0
      %3825 = vmatprep.subr.mxu0 0.0
      %3826 = vmatpush1.msra.mxu0 0.0
      %3827 = vmatprep.subr.mxu0 0.0
      %3828 = vmatpush1.msra.mxu0 0.0
      %3829 = vmatprep.subr.mxu0 0.0
      %3830 = vmatpush1.msra.mxu0 0.0
      %3831 = vmatprep.subr.mxu0 0.0
      %3832 = vmatpush1.msra.mxu0 0.0
      %3833 = vmatprep.subr.mxu0 0.0
      %3834 = vmatpush1.msra.mxu0 0.0
      %3835 = vmatprep.subr.mxu0 0.0
      %3836 = vmatpush1.msra.mxu0 0.0
      %3837 = vmatprep.subr.mxu0 0.0
      %3838 = vmatpush1.msra.mxu0 0.0
      %3839 = vmatprep.subr.mxu0 0.0
      %3840 = vmatpush1.msra.mxu0 0.0
      %3841 = vmatprep.subr.mxu0 0.0
      %3842 = vmatpush1.msra.mxu0 0.0
      %3843 = vmatprep.subr.mxu0 0.0
      %3844 = vmatpush1.msra.mxu0 0.0
      %3845 = vmatprep.subr.mxu0 0.0
      %3846 = vmatpush1.msra.mxu0 0.0
      %3847 = vmatprep.subr.mxu0 0.0
      %3848 = vmatpush1.msra.mxu0 0.0
      %3849 = vmatprep.subr.mxu0 0.0
      %3850 = vmatpush1.msra.mxu0 0.0
      %3851 = vmatprep.subr.mxu0 0.0
      %3852 = vmatpush1.msra.mxu0 0.0
      %3853 = vmatprep.subr.mxu0 0.0
      %3854 = vmatpush1.msra.mxu0 0.0
      %3855 = vmatprep.subr.mxu0 0.0
      %3856 = vmatpush1.msra.mxu0 0.0
      %3857 = vmatprep.subr.mxu0 0.0
      %3858 = vmatpush1.msra.mxu0 0.0
      %3859 = vmatprep.subr.mxu0 0.0
      %3860 = vmatpush1.msra.mxu0 0.0
      %3861 = vmatprep.subr.mxu0 0.0
      %3862 = vmatpush1.msra.mxu0 0.0
      %3863 = vmatprep.subr.mxu0 0.0
      %3864 = vmatpush1.msra.mxu0 0.0
      %3865 = vmatprep.subr.mxu0 0.0
      %3866 = vmatpush1.msra.mxu0 0.0
      %3867 = vmatprep.subr.mxu0 0.0
      %3868 = vmatpush1.msra.mxu0 0.0
      %3869 = vmatprep.subr.mxu0 0.0
      %3870 = vmatpush1.msra.mxu0 0.0
      %3871 = vmatprep.mubr.f32.mxu0 0.0
      %v3872 = vand.u32 %v3377, 4294901760
      %3873 = vmatmul.mubr.f32.gmra.mrb[0].mxu0 %v3872
      %v3874 = vpop.f32.mrb[0].mxu0
      %v3875 = vadd.f32 %v3796, %v3874
      %v3876 = vpop.f32.mrb[0].mxu0
      %3877 = vmatprep.mubr.f32.mxu0 0.0
      %v3878 = vand.u32 %v3380, 4294901760
      %3879 = vmatmul.mubr.f32.gmra.mrb[0].mxu0 %v3878
      %v3880 = vpop.f32.mrb[0].mxu0
      %v3881 = vadd.f32 %v3802, %v3880
      %v3882 = vpop.f32.mrb[0].mxu0
      %3883 = vdwg.mxu0
      %v3884 = vmax.f32 %v3374, %v3875
      %v3885 = vmax.f32 %v3375, %v3881
      %v3886 = vsub.f32 %v2346, %v3884
      %v3887 = vsub.f32 %v2352, %v3885
      %v3888 = vmul.f32 %v3886, 1.442695
      %v3889 = vpow.pop %v3888
      %v3890 = vmul.f32 %v3887, 1.442695
      %v3891 = vpow.pop %v3890
      %v3893 = vsel %vm2355, %v3889, 0
      %v3896 = vsel %vm2355, %v3891, 0
      %3898 = vmatprep.subr.mxu0 0.0
      %v3899 = vand.u32 %v267, 4294901760
      %3900 = vmatpush1.msra.mxu0 %v3899
      %3901 = vmatprep.subr.mxu0 0.0
      %v3902 = vand.u32 %v268, 4294901760
      %3903 = vmatpush1.msra.mxu0 %v3902
      %3904 = vmatprep.subr.mxu0 0.0
      %3905 = vmatpush1.msra.mxu0 0.0
      %3906 = vmatprep.subr.mxu0 0.0
      %3907 = vmatpush1.msra.mxu0 0.0
      %3908 = vmatprep.subr.mxu0 0.0
      %3909 = vmatpush1.msra.mxu0 0.0
      %3910 = vmatprep.subr.mxu0 0.0
      %3911 = vmatpush1.msra.mxu0 0.0
      %3912 = vmatprep.subr.mxu0 0.0
      %3913 = vmatpush1.msra.mxu0 0.0
      %3914 = vmatprep.subr.mxu0 0.0
      %3915 = vmatpush1.msra.mxu0 0.0
      %3916 = vmatprep.subr.mxu0 0.0
      %3917 = vmatpush1.msra.mxu0 0.0
      %3918 = vmatprep.subr.mxu0 0.0
      %3919 = vmatpush1.msra.mxu0 0.0
      %3920 = vmatprep.subr.mxu0 0.0
      %3921 = vmatpush1.msra.mxu0 0.0
      %3922 = vmatprep.subr.mxu0 0.0
      %3923 = vmatpush1.msra.mxu0 0.0
      %3924 = vmatprep.subr.mxu0 0.0
      %3925 = vmatpush1.msra.mxu0 0.0
      %3926 = vmatprep.subr.mxu0 0.0
      %3927 = vmatpush1.msra.mxu0 0.0
      %3928 = vmatprep.subr.mxu0 0.0
      %3929 = vmatpush1.msra.mxu0 0.0
      %3930 = vmatprep.subr.mxu0 0.0
      %3931 = vmatpush1.msra.mxu0 0.0
      %3932 = vmatprep.subr.mxu0 0.0
      %3933 = vmatpush1.msra.mxu0 0.0
      %3934 = vmatprep.subr.mxu0 0.0
      %3935 = vmatpush1.msra.mxu0 0.0
      %3936 = vmatprep.subr.mxu0 0.0
      %3937 = vmatpush1.msra.mxu0 0.0
      %3938 = vmatprep.subr.mxu0 0.0
      %3939 = vmatpush1.msra.mxu0 0.0
      %3940 = vmatprep.subr.mxu0 0.0
      %3941 = vmatpush1.msra.mxu0 0.0
      %3942 = vmatprep.subr.mxu0 0.0
      %3943 = vmatpush1.msra.mxu0 0.0
      %3944 = vmatprep.subr.mxu0 0.0
      %3945 = vmatpush1.msra.mxu0 0.0
      %3946 = vmatprep.subr.mxu0 0.0
      %3947 = vmatpush1.msra.mxu0 0.0
      %3948 = vmatprep.subr.mxu0 0.0
      %3949 = vmatpush1.msra.mxu0 0.0
      %3950 = vmatprep.subr.mxu0 0.0
      %3951 = vmatpush1.msra.mxu0 0.0
      %3952 = vmatprep.subr.mxu0 0.0
      %3953 = vmatpush1.msra.mxu0 0.0
      %3954 = vmatprep.subr.mxu0 0.0
      %3955 = vmatpush1.msra.mxu0 0.0
      %3956 = vmatprep.subr.mxu0 0.0
      %3957 = vmatpush1.msra.mxu0 0.0
      %3958 = vmatprep.subr.mxu0 0.0
      %3959 = vmatpush1.msra.mxu0 0.0
      %3960 = vmatprep.subr.mxu0 0.0
      %3961 = vmatpush1.msra.mxu0 0.0
      %3962 = vmatprep.subr.mxu0 0.0
      %3963 = vmatpush1.msra.mxu0 0.0
      %3964 = vmatprep.mubr.f32.mxu0 0.0
      %v3965 = vand.u32 %v3893, 4294901760
      %v3966 = vsub.f32 %v3893, %v3965
      %v3967 = vand.u32 %v3966, 4294901760
      %v3968 = vsub.f32 %v3966, %v3967
      %v3969 = vand.u32 %v3968, 4294901760
      %3970 = vmatmul.mubr.f32.gmra.mrb[0].mxu0 %v3969
      %v3971 = vpop.f32.mrb[0].mxu0
      %v3972 = vadd.f32 0.0, %v3971
      %v3973 = vpop.f32.mrb[0].mxu0
      %3974 = vmatprep.mubr.f32.mxu0 0.0
      %v3975 = vand.u32 %v3896, 4294901760
      %v3976 = vsub.f32 %v3896, %v3975
      %v3977 = vand.u32 %v3976, 4294901760
      %v3978 = vsub.f32 %v3976, %v3977
      %v3979 = vand.u32 %v3978, 4294901760
      %3980 = vmatmul.mubr.f32.gmra.mrb[0].mxu0 %v3979
      %v3981 = vpop.f32.mrb[0].mxu0
      %v3982 = vadd.f32 0.0, %v3981
      %v3983 = vpop.f32.mrb[0].mxu0
      %3984 = vdwg.mxu0
      %3985 = vmatprep.subr.mxu0 0.0
      %v3986 = vand.u32 %v267, 4294901760
      %v3987 = vsub.f32 %v267, %v3986
      %v3988 = vand.u32 %v3987, 4294901760
      %v3989 = vsub.f32 %v3987, %v3988
      %v3990 = vand.u32 %v3989, 4294901760
      %3991 = vmatpush1.msra.mxu0 %v3990
      %3992 = vmatprep.subr.mxu0 0.0
      %v3993 = vand.u32 %v268, 4294901760
      %v3994 = vsub.f32 %v268, %v3993
      %v3995 = vand.u32 %v3994, 4294901760
      %v3996 = vsub.f32 %v3994, %v3995
      %v3997 = vand.u32 %v3996, 4294901760
      %3998 = vmatpush1.msra.mxu0 %v3997
      %3999 = vmatprep.subr.mxu0 0.0
      %4000 = vmatpush1.msra.mxu0 0.0
      %4001 = vmatprep.subr.mxu0 0.0
      %4002 = vmatpush1.msra.mxu0 0.0
      %4003 = vmatprep.subr.mxu0 0.0
      %4004 = vmatpush1.msra.mxu0 0.0
      %4005 = vmatprep.subr.mxu0 0.0
      %4006 = vmatpush1.msra.mxu0 0.0
      %4007 = vmatprep.subr.mxu0 0.0
      %4008 = vmatpush1.msra.mxu0 0.0
      %4009 = vmatprep.subr.mxu0 0.0
      %4010 = vmatpush1.msra.mxu0 0.0
      %4011 = vmatprep.subr.mxu0 0.0
      %4012 = vmatpush1.msra.mxu0 0.0
      %4013 = vmatprep.subr.mxu0 0.0
      %4014 = vmatpush1.msra.mxu0 0.0
      %4015 = vmatprep.subr.mxu0 0.0
      %4016 = vmatpush1.msra.mxu0 0.0
      %4017 = vmatprep.subr.mxu0 0.0
      %4018 = vmatpush1.msra.mxu0 0.0
      %4019 = vmatprep.subr.mxu0 0.0
      %4020 = vmatpush1.msra.mxu0 0.0
      %4021 = vmatprep.subr.mxu0 0.0
      %4022 = vmatpush1.msra.mxu0 0.0
      %4023 = vmatprep.subr.mxu0 0.0
      %4024 = vmatpush1.msra.mxu0 0.0
      %4025 = vmatprep.subr.mxu0 0.0
      %4026 = vmatpush1.msra.mxu0 0.0
      %4027 = vmatprep.subr.mxu0 0.0
      %4028 = vmatpush1.msra.mxu0 0.0
      %4029 = vmatprep.subr.mxu0 0.0
      %4030 = vmatpush1.msra.mxu0 0.0
      %4031 = vmatprep.subr.mxu0 0.0
      %4032 = vmatpush1.msra.mxu0 0.0
      %4033 = vmatprep.subr.mxu0 0.0
      %4034 = vmatpush1.msra.mxu0 0.0
      %4035 = vmatprep.subr.mxu0 0.0
      %4036 = vmatpush1.msra.mxu0 0.0
      %4037 = vmatprep.subr.mxu0 0.0
      %4038 = vmatpush1.msra.mxu0 0.0
      %4039 = vmatprep.subr.mxu0 0.0
      %4040 = vmatpush1.msra.mxu0 0.0
      %4041 = vmatprep.subr.mxu0 0.0
      %4042 = vmatpush1.msra.mxu0 0.0
      %4043 = vmatprep.subr.mxu0 0.0
      %4044 = vmatpush1.msra.mxu0 0.0
      %4045 = vmatprep.subr.mxu0 0.0
      %4046 = vmatpush1.msra.mxu0 0.0
      %4047 = vmatprep.subr.mxu0 0.0
      %4048 = vmatpush1.msra.mxu0 0.0
      %4049 = vmatprep.subr.mxu0 0.0
      %4050 = vmatpush1.msra.mxu0 0.0
      %4051 = vmatprep.subr.mxu0 0.0
      %4052 = vmatpush1.msra.mxu0 0.0
      %4053 = vmatprep.subr.mxu0 0.0
      %4054 = vmatpush1.msra.mxu0 0.0
      %4055 = vmatprep.subr.mxu0 0.0
      %4056 = vmatpush1.msra.mxu0 0.0
      %4057 = vmatprep.subr.mxu0 0.0
      %4058 = vmatpush1.msra.mxu0 0.0
      %4059 = vmatprep.mubr.f32.mxu0 0.0
      %v4060 = vand.u32 %v3893, 4294901760
      %4061 = vmatmul.mubr.f32.gmra.mrb[0].mxu0 %v4060
      %v4062 = vpop.f32.mrb[0].mxu0
      %v4063 = vadd.f32 %v3972, %v4062
      %v4064 = vpop.f32.mrb[0].mxu0
      %4065 = vmatprep.mubr.f32.mxu0 0.0
      %v4066 = vand.u32 %v3896, 4294901760
      %4067 = vmatmul.mubr.f32.gmra.mrb[0].mxu0 %v4066
      %v4068 = vpop.f32.mrb[0].mxu0
      %v4069 = vadd.f32 %v3982, %v4068
      %v4070 = vpop.f32.mrb[0].mxu0
      %4071 = vdwg.mxu0
      %4072 = vmatprep.subr.mxu0 0.0
      %v4073 = vand.u32 %v267, 4294901760
      %v4074 = vsub.f32 %v267, %v4073
      %4075 = vmatpush1.msra.mxu0 %v4074
      %4076 = vmatprep.subr.mxu0 0.0
      %v4077 = vand.u32 %v268, 4294901760
      %v4078 = vsub.f32 %v268, %v4077
      %4079 = vmatpush1.msra.mxu0 %v4078
      %4080 = vmatprep.subr.mxu0 0.0
      %4081 = vmatpush1.msra.mxu0 0.0
      %4082 = vmatprep.subr.mxu0 0.0
      %4083 = vmatpush1.msra.mxu0 0.0
      %4084 = vmatprep.subr.mxu0 0.0
      %4085 = vmatpush1.msra.mxu0 0.0
      %4086 = vmatprep.subr.mxu0 0.0
      %4087 = vmatpush1.msra.mxu0 0.0
      %4088 = vmatprep.subr.mxu0 0.0
      %4089 = vmatpush1.msra.mxu0 0.0
      %4090 = vmatprep.subr.mxu0 0.0
      %4091 = vmatpush1.msra.mxu0 0.0
      %4092 = vmatprep.subr.mxu0 0.0
      %4093 = vmatpush1.msra.mxu0 0.0
      %4094 = vmatprep.subr.mxu0 0.0
      %4095 = vmatpush1.msra.mxu0 0.0
      %4096 = vmatprep.subr.mxu0 0.0
      %4097 = vmatpush1.msra.mxu0 0.0
      %4098 = vmatprep.subr.mxu0 0.0
      %4099 = vmatpush1.msra.mxu0 0.0
      %4100 = vmatprep.subr.mxu0 0.0
      %4101 = vmatpush1.msra.mxu0 0.0
      %4102 = vmatprep.subr.mxu0 0.0
      %4103 = vmatpush1.msra.mxu0 0.0
      %4104 = vmatprep.subr.mxu0 0.0
      %4105 = vmatpush1.msra.mxu0 0.0
      %4106 = vmatprep.subr.mxu0 0.0
      %4107 = vmatpush1.msra.mxu0 0.0
      %4108 = vmatprep.subr.mxu0 0.0
      %4109 = vmatpush1.msra.mxu0 0.0
      %4110 = vmatprep.subr.mxu0 0.0
      %4111 = vmatpush1.msra.mxu0 0.0
      %4112 = vmatprep.subr.mxu0 0.0
      %4113 = vmatpush1.msra.mxu0 0.0
      %4114 = vmatprep.subr.mxu0 0.0
      %4115 = vmatpush1.msra.mxu0 0.0
      %4116 = vmatprep.subr.mxu0 0.0
      %4117 = vmatpush1.msra.mxu0 0.0
      %4118 = vmatprep.subr.mxu0 0.0
      %4119 = vmatpush1.msra.mxu0 0.0
      %4120 = vmatprep.subr.mxu0 0.0
      %4121 = vmatpush1.msra.mxu0 0.0
      %4122 = vmatprep.subr.mxu0 0.0
      %4123 = vmatpush1.msra.mxu0 0.0
      %4124 = vmatprep.subr.mxu0 0.0
      %4125 = vmatpush1.msra.mxu0 0.0
      %4126 = vmatprep.subr.mxu0 0.0
      %4127 = vmatpush1.msra.mxu0 0.0
      %4128 = vmatprep.subr.mxu0 0.0
      %4129 = vmatpush1.msra.mxu0 0.0
      %4130 = vmatprep.subr.mxu0 0.0
      %4131 = vmatpush1.msra.mxu0 0.0
      %4132 = vmatprep.subr.mxu0 0.0
      %4133 = vmatpush1.msra.mxu0 0.0
      %4134 = vmatprep.subr.mxu0 0.0
      %4135 = vmatpush1.msra.mxu0 0.0
      %4136 = vmatprep.subr.mxu0 0.0
      %4137 = vmatpush1.msra.mxu0 0.0
      %4138 = vmatprep.subr.mxu0 0.0
      %4139 = vmatpush1.msra.mxu0 0.0
      %4140 = vmatprep.mubr.f32.mxu0 0.0
      %v4141 = vand.u32 %v3893, 4294901760
      %v4142 = vsub.f32 %v3893, %v4141
      %4143 = vmatmul.mubr.f32.gmra.mrb[0].mxu0 %v4142
      %v4144 = vpop.f32.mrb[0].mxu0
      %v4145 = vadd.f32 %v4063, %v4144
      %v4146 = vpop.f32.mrb[0].mxu0
      %4147 = vmatprep.mubr.f32.mxu0 0.0
      %v4148 = vand.u32 %v3896, 4294901760
      %v4149 = vsub.f32 %v3896, %v4148
      %4150 = vmatmul.mubr.f32.gmra.mrb[0].mxu0 %v4149
      %v4151 = vpop.f32.mrb[0].mxu0
      %v4152 = vadd.f32 %v4069, %v4151
      %v4153 = vpop.f32.mrb[0].mxu0
      %4154 = vdwg.mxu0
      %4155 = vmatprep.subr.mxu0 0.0
      %v4156 = vand.u32 %v267, 4294901760
      %4157 = vmatpush1.msra.mxu0 %v4156
      %4158 = vmatprep.subr.mxu0 0.0
      %v4159 = vand.u32 %v268, 4294901760
      %4160 = vmatpush1.msra.mxu0 %v4159
      %4161 = vmatprep.subr.mxu0 0.0
      %4162 = vmatpush1.msra.mxu0 0.0
      %4163 = vmatprep.subr.mxu0 0.0
      %4164 = vmatpush1.msra.mxu0 0.0
      %4165 = vmatprep.subr.mxu0 0.0
      %4166 = vmatpush1.msra.mxu0 0.0
      %4167 = vmatprep.subr.mxu0 0.0
      %4168 = vmatpush1.msra.mxu0 0.0
      %4169 = vmatprep.subr.mxu0 0.0
      %4170 = vmatpush1.msra.mxu0 0.0
      %4171 = vmatprep.subr.mxu0 0.0
      %4172 = vmatpush1.msra.mxu0 0.0
      %4173 = vmatprep.subr.mxu0 0.0
      %4174 = vmatpush1.msra.mxu0 0.0
      %4175 = vmatprep.subr.mxu0 0.0
      %4176 = vmatpush1.msra.mxu0 0.0
      %4177 = vmatprep.subr.mxu0 0.0
      %4178 = vmatpush1.msra.mxu0 0.0
      %4179 = vmatprep.subr.mxu0 0.0
      %4180 = vmatpush1.msra.mxu0 0.0
      %4181 = vmatprep.subr.mxu0 0.0
      %4182 = vmatpush1.msra.mxu0 0.0
      %4183 = vmatprep.subr.mxu0 0.0
      %4184 = vmatpush1.msra.mxu0 0.0
      %4185 = vmatprep.subr.mxu0 0.0
      %4186 = vmatpush1.msra.mxu0 0.0
      %4187 = vmatprep.subr.mxu0 0.0
      %4188 = vmatpush1.msra.mxu0 0.0
      %4189 = vmatprep.subr.mxu0 0.0
      %4190 = vmatpush1.msra.mxu0 0.0
      %4191 = vmatprep.subr.mxu0 0.0
      %4192 = vmatpush1.msra.mxu0 0.0
      %4193 = vmatprep.subr.mxu0 0.0
      %4194 = vmatpush1.msra.mxu0 0.0
      %4195 = vmatprep.subr.mxu0 0.0
      %4196 = vmatpush1.msra.mxu0 0.0
      %4197 = vmatprep.subr.mxu0 0.0
      %4198 = vmatpush1.msra.mxu0 0.0
      %4199 = vmatprep.subr.mxu0 0.0
      %4200 = vmatpush1.msra.mxu0 0.0
      %4201 = vmatprep.subr.mxu0 0.0
      %4202 = vmatpush1.msra.mxu0 0.0
      %4203 = vmatprep.subr.mxu0 0.0
      %4204 = vmatpush1.msra.mxu0 0.0
      %4205 = vmatprep.subr.mxu0 0.0
      %4206 = vmatpush1.msra.mxu0 0.0
      %4207 = vmatprep.subr.mxu0 0.0
      %4208 = vmatpush1.msra.mxu0 0.0
      %4209 = vmatprep.subr.mxu0 0.0
      %4210 = vmatpush1.msra.mxu0 0.0
      %4211 = vmatprep.subr.mxu0 0.0
      %4212 = vmatpush1.msra.mxu0 0.0
      %4213 = vmatprep.subr.mxu0 0.0
      %4214 = vmatpush1.msra.mxu0 0.0
      %4215 = vmatprep.subr.mxu0 0.0
      %4216 = vmatpush1.msra.mxu0 0.0
      %4217 = vmatprep.subr.mxu0 0.0
      %4218 = vmatpush1.msra.mxu0 0.0
      %4219 = vmatprep.subr.mxu0 0.0
      %4220 = vmatpush1.msra.mxu0 0.0
      %4221 = vmatprep.mubr.f32.mxu0 0.0
      %v4222 = vand.u32 %v3893, 4294901760
      %v4223 = vsub.f32 %v3893, %v4222
      %v4224 = vand.u32 %v4223, 4294901760
      %4225 = vmatmul.mubr.f32.gmra.mrb[0].mxu0 %v4224
      %v4226 = vpop.f32.mrb[0].mxu0
      %v4227 = vadd.f32 %v4145, %v4226
      %v4228 = vpop.f32.mrb[0].mxu0
      %4229 = vmatprep.mubr.f32.mxu0 0.0
      %v4230 = vand.u32 %v3896, 4294901760
      %v4231 = vsub.f32 %v3896, %v4230
      %v4232 = vand.u32 %v4231, 4294901760
      %4233 = vmatmul.mubr.f32.gmra.mrb[0].mxu0 %v4232
      %v4234 = vpop.f32.mrb[0].mxu0
      %v4235 = vadd.f32 %v4152, %v4234
      %v4236 = vpop.f32.mrb[0].mxu0
      %4237 = vdwg.mxu0
      %4238 = vmatprep.subr.mxu0 0.0
      %v4239 = vand.u32 %v267, 4294901760
      %v4240 = vsub.f32 %v267, %v4239
      %v4241 = vand.u32 %v4240, 4294901760
      %4242 = vmatpush1.msra.mxu0 %v4241
      %4243 = vmatprep.subr.mxu0 0.0
      %v4244 = vand.u32 %v268, 4294901760
      %v4245 = vsub.f32 %v268, %v4244
      %v4246 = vand.u32 %v4245, 4294901760
      %4247 = vmatpush1.msra.mxu0 %v4246
      %4248 = vmatprep.subr.mxu0 0.0
      %4249 = vmatpush1.msra.mxu0 0.0
      %4250 = vmatprep.subr.mxu0 0.0
      %4251 = vmatpush1.msra.mxu0 0.0
      %4252 = vmatprep.subr.mxu0 0.0
      %4253 = vmatpush1.msra.mxu0 0.0
      %4254 = vmatprep.subr.mxu0 0.0
      %4255 = vmatpush1.msra.mxu0 0.0
      %4256 = vmatprep.subr.mxu0 0.0
      %4257 = vmatpush1.msra.mxu0 0.0
      %4258 = vmatprep.subr.mxu0 0.0
      %4259 = vmatpush1.msra.mxu0 0.0
      %4260 = vmatprep.subr.mxu0 0.0
      %4261 = vmatpush1.msra.mxu0 0.0
      %4262 = vmatprep.subr.mxu0 0.0
      %4263 = vmatpush1.msra.mxu0 0.0
      %4264 = vmatprep.subr.mxu0 0.0
      %4265 = vmatpush1.msra.mxu0 0.0
      %4266 = vmatprep.subr.mxu0 0.0
      %4267 = vmatpush1.msra.mxu0 0.0
      %4268 = vmatprep.subr.mxu0 0.0
      %4269 = vmatpush1.msra.mxu0 0.0
      %4270 = vmatprep.subr.mxu0 0.0
      %4271 = vmatpush1.msra.mxu0 0.0
      %4272 = vmatprep.subr.mxu0 0.0
      %4273 = vmatpush1.msra.mxu0 0.0
      %4274 = vmatprep.subr.mxu0 0.0
      %4275 = vmatpush1.msra.mxu0 0.0
      %4276 = vmatprep.subr.mxu0 0.0
      %4277 = vmatpush1.msra.mxu0 0.0
      %4278 = vmatprep.subr.mxu0 0.0
      %4279 = vmatpush1.msra.mxu0 0.0
      %4280 = vmatprep.subr.mxu0 0.0
      %4281 = vmatpush1.msra.mxu0 0.0
      %4282 = vmatprep.subr.mxu0 0.0
      %4283 = vmatpush1.msra.mxu0 0.0
      %4284 = vmatprep.subr.mxu0 0.0
      %4285 = vmatpush1.msra.mxu0 0.0
      %4286 = vmatprep.subr.mxu0 0.0
      %4287 = vmatpush1.msra.mxu0 0.0
      %4288 = vmatprep.subr.mxu0 0.0
      %4289 = vmatpush1.msra.mxu0 0.0
      %4290 = vmatprep.subr.mxu0 0.0
      %4291 = vmatpush1.msra.mxu0 0.0
      %4292 = vmatprep.subr.mxu0 0.0
      %4293 = vmatpush1.msra.mxu0 0.0
      %4294 = vmatprep.subr.mxu0 0.0
      %4295 = vmatpush1.msra.mxu0 0.0
      %4296 = vmatprep.subr.mxu0 0.0
      %4297 = vmatpush1.msra.mxu0 0.0
      %4298 = vmatprep.subr.mxu0 0.0
      %4299 = vmatpush1.msra.mxu0 0.0
      %4300 = vmatprep.subr.mxu0 0.0
      %4301 = vmatpush1.msra.mxu0 0.0
      %4302 = vmatprep.subr.mxu0 0.0
      %4303 = vmatpush1.msra.mxu0 0.0
      %4304 = vmatprep.subr.mxu0 0.0
      %4305 = vmatpush1.msra.mxu0 0.0
      %4306 = vmatprep.subr.mxu0 0.0
      %4307 = vmatpush1.msra.mxu0 0.0
      %4308 = vmatprep.mubr.f32.mxu0 0.0
      %v4309 = vand.u32 %v3893, 4294901760
      %4310 = vmatmul.mubr.f32.gmra.mrb[0].mxu0 %v4309
      %v4311 = vpop.f32.mrb[0].mxu0
      %v4312 = vadd.f32 %v4227, %v4311
      %v4313 = vpop.f32.mrb[0].mxu0
      %4314 = vmatprep.mubr.f32.mxu0 0.0
      %v4315 = vand.u32 %v3896, 4294901760
      %4316 = vmatmul.mubr.f32.gmra.mrb[0].mxu0 %v4315
      %v4317 = vpop.f32.mrb[0].mxu0
      %v4318 = vadd.f32 %v4235, %v4317
      %v4319 = vpop.f32.mrb[0].mxu0
      %4320 = vdwg.mxu0
      %4321 = vmatprep.subr.mxu0 0.0
      %v4322 = vand.u32 %v267, 4294901760
      %4323 = vmatpush1.msra.mxu0 %v4322
      %4324 = vmatprep.subr.mxu0 0.0
      %v4325 = vand.u32 %v268, 4294901760
      %4326 = vmatpush1.msra.mxu0 %v4325
      %4327 = vmatprep.subr.mxu0 0.0
      %4328 = vmatpush1.msra.mxu0 0.0
      %4329 = vmatprep.subr.mxu0 0.0
      %4330 = vmatpush1.msra.mxu0 0.0
      %4331 = vmatprep.subr.mxu0 0.0
      %4332 = vmatpush1.msra.mxu0 0.0
      %4333 = vmatprep.subr.mxu0 0.0
      %4334 = vmatpush1.msra.mxu0 0.0
      %4335 = vmatprep.subr.mxu0 0.0
      %4336 = vmatpush1.msra.mxu0 0.0
      %4337 = vmatprep.subr.mxu0 0.0
      %4338 = vmatpush1.msra.mxu0 0.0
      %4339 = vmatprep.subr.mxu0 0.0
      %4340 = vmatpush1.msra.mxu0 0.0
      %4341 = vmatprep.subr.mxu0 0.0
      %4342 = vmatpush1.msra.mxu0 0.0
      %4343 = vmatprep.subr.mxu0 0.0
      %4344 = vmatpush1.msra.mxu0 0.0
      %4345 = vmatprep.subr.mxu0 0.0
      %4346 = vmatpush1.msra.mxu0 0.0
      %4347 = vmatprep.subr.mxu0 0.0
      %4348 = vmatpush1.msra.mxu0 0.0
      %4349 = vmatprep.subr.mxu0 0.0
      %4350 = vmatpush1.msra.mxu0 0.0
      %4351 = vmatprep.subr.mxu0 0.0
      %4352 = vmatpush1.msra.mxu0 0.0
      %4353 = vmatprep.subr.mxu0 0.0
      %4354 = vmatpush1.msra.mxu0 0.0
      %4355 = vmatprep.subr.mxu0 0.0
      %4356 = vmatpush1.msra.mxu0 0.0
      %4357 = vmatprep.subr.mxu0 0.0
      %4358 = vmatpush1.msra.mxu0 0.0
      %4359 = vmatprep.subr.mxu0 0.0
      %4360 = vmatpush1.msra.mxu0 0.0
      %4361 = vmatprep.subr.mxu0 0.0
      %4362 = vmatpush1.msra.mxu0 0.0
      %4363 = vmatprep.subr.mxu0 0.0
      %4364 = vmatpush1.msra.mxu0 0.0
      %4365 = vmatprep.subr.mxu0 0.0
      %4366 = vmatpush1.msra.mxu0 0.0
      %4367 = vmatprep.subr.mxu0 0.0
      %4368 = vmatpush1.msra.mxu0 0.0
      %4369 = vmatprep.subr.mxu0 0.0
      %4370 = vmatpush1.msra.mxu0 0.0
      %4371 = vmatprep.subr.mxu0 0.0
      %4372 = vmatpush1.msra.mxu0 0.0
      %4373 = vmatprep.subr.mxu0 0.0
      %4374 = vmatpush1.msra.mxu0 0.0
      %4375 = vmatprep.subr.mxu0 0.0
      %4376 = vmatpush1.msra.mxu0 0.0
      %4377 = vmatprep.subr.mxu0 0.0
      %4378 = vmatpush1.msra.mxu0 0.0
      %4379 = vmatprep.subr.mxu0 0.0
      %4380 = vmatpush1.msra.mxu0 0.0
      %4381 = vmatprep.subr.mxu0 0.0
      %4382 = vmatpush1.msra.mxu0 0.0
      %4383 = vmatprep.subr.mxu0 0.0
      %4384 = vmatpush1.msra.mxu0 0.0
      %4385 = vmatprep.subr.mxu0 0.0
      %4386 = vmatpush1.msra.mxu0 0.0
      %4387 = vmatprep.mubr.f32.mxu0 0.0
      %v4388 = vand.u32 %v3893, 4294901760
      %4389 = vmatmul.mubr.f32.gmra.mrb[0].mxu0 %v4388
      %v4390 = vpop.f32.mrb[0].mxu0
      %v4391 = vadd.f32 %v4312, %v4390
      %v4392 = vpop.f32.mrb[0].mxu0
      %4393 = vmatprep.mubr.f32.mxu0 0.0
      %v4394 = vand.u32 %v3896, 4294901760
      %4395 = vmatmul.mubr.f32.gmra.mrb[0].mxu0 %v4394
      %v4396 = vpop.f32.mrb[0].mxu0
      %v4397 = vadd.f32 %v4318, %v4396
      %v4398 = vpop.f32.mrb[0].mxu0
      %4399 = vdwg.mxu0
      %v4400 = vrcp.pop %v4391
      %v4401 = vmul.f32 %v3889, %v4400
      %v4402 = vrcp.pop %v4397
      %v4403 = vmul.f32 %v3891, %v4402
      %4404 = vst.msk [vmem:[%s226] sm:$0xff] %vm2355, %v4401
      %4405 = vst.msk [vmem:[%s226 + $0x8] sm:$0xff] %vm2355, %v4403
      %s4406 = smul.u32 2, %s16
      %p4407 = scmp.lt.s32.totalorder %s4406, 7
      %s4408 = scalar_select %p4407, %s4406, 7
      %s4409 = smul.addr %s4408, 8
      %s4410 = scalar_lea.vmem %s5, %s4409
      // Predicated region
      $region41: #{gating_forward.1} parent=39 // pred_check
        %p4411 = pneg %p144
      $region42: #{gating_forward.1} parent=39 // pred_check_branch
        %4413 = sbr.rel (%p4411) target = $region44
      $region43: #{gating_forward.1} parent=39 // pred_region
        %s4414 = smul.u32 2, %s16
      $region44: #{gating_forward.1} parent=39 // pred_fallthru
        _
    $region40: #{gating_forward.1} parent=5 // pred_fallthru
      _
    %p4415 = scmp.le.s32.totalorder 2, %s11
    // Predicated region
    $region45: #{gating_forward.1} parent=5 // pred_check
      %p4416 = pneg %p4415
    $region46: #{gating_forward.1} parent=5 // pred_check_branch
      %4418 = sbr.rel (%p4416) target = $region48
    $region47: #{gating_forward.1} parent=5 // pred_region
      %s4419 = ssub.s32 %s11, 2
      // Predicated region
      $region49: #{gating_forward.1} parent=47 // pred_check
        %p4420 = pneg %p150
      $region50: #{gating_forward.1} parent=47 // pred_check_branch
        %4422 = sbr.rel (%p4420) target = $region52
      $region51: #{gating_forward.1} parent=47 // pred_region
        %s4423 = smul.u32 2, %s17
        %p4424 = scmp.lt.s32.totalorder %s4423, 7
        %s4425 = scalar_select %p4424, %s4423, 7
        %s4426 = smul.addr %s4425, 8
        %s4427 = scalar_lea.vmem %s5, %s4426
      $region52: #{gating_forward.1} parent=47 // pred_fallthru
        _
    $region48: #{gating_forward.1} parent=5 // pred_fallthru
      _
  $region6: #{gating_forward.1} parent=0 // loop_footer
    %s15 = sadd.s32 1, %s11
  $region7: #{gating_forward.1} parent=0 // loop_footer_branch
    %10 = sbr.rel target = $region3
  $region8: #{gating_forward.1} parent=0 // loop_exit
    _

</llo_original>
